<compile_context>
chip_gen: v7x
topology: tpu7x:2x2x1
jax: 0.10.0
libtpu: 0.0.40
codegen_flags: <defaults>
</compile_context>

<pallas_src>
import functools
import math

import numpy as np
import jax
import jax.numpy as jnp
from jax import lax
from jax.experimental import pallas as pl
from jax.experimental.pallas import tpu as pltpu


# ----------------------------------------------------------------- utilities

def _round_up(x, m):
    return ((x + m - 1) // m) * m


def _row_tile(M, target=512):
    """Row tile: largest multiple of 8 that is <= target; cdiv grid masks the tail."""
    return min(target, _round_up(M, 8))


def _reduction_tile(F, target=1024):
    """Tile for an accumulated (reduction) axis: must divide F exactly."""
    for t in (target, 512, 256, 128):
        if F % t == 0:
            return t
    return F


def _compiler_params(sem, block_bytes, extra=0):
    """dimension_semantics + explicit scoped-VMEM budget: 2x blocks (double
    buffering) + slack, floored at 8 MiB and capped at v7x's 64 MiB physical."""
    limit = int(2 * (block_bytes + extra)) + (2 << 20)
    limit = max(8 << 20, min(limit, 64 << 20))
    return pltpu.CompilerParams(dimension_semantics=sem, vmem_limit_bytes=limit)


# ------------------------------------------------------------------ kernels

def _ln_linear_kernel(x_ref, g_ref, b_ref, w_ref, bias_ref, o_ref):
    """LayerNorm (f32 stats) fused with a linear projection (bf16 MXU, f32 acc)."""
    x = x_ref[...]                                            # (tm, D) f32
    mu = jnp.mean(x, axis=-1, keepdims=True)
    xc = x - mu
    var = jnp.mean(xc * xc, axis=-1, keepdims=True)
    xn = xc * lax.rsqrt(var + 1e-5) * g_ref[...] + b_ref[...]  # PyTorch LN eps
    o_ref[...] = (jnp.dot(xn.astype(jnp.bfloat16), w_ref[...],
                          preferred_element_type=jnp.float32)
                  + bias_ref[...]).astype(o_ref.dtype)


def _linear_kernel(x_ref, w_ref, b_ref, o_ref):
    o_ref[...] = (jnp.dot(x_ref[...].astype(jnp.bfloat16), w_ref[...],
                          preferred_element_type=jnp.float32)
                  + b_ref[...]).astype(o_ref.dtype)


def _ffn_kernel(x_ref, w1_ref, b1_ref, w2_ref, b2_ref, o_ref, acc_ref):
    """F-tiled FFN: x @ W1[:, jF] + b1 -> ReLU -> @ W2[jF, :], accumulated in f32."""
    @pl.when(pl.program_id(1) == 0)
    def _init():
        acc_ref[...] = jnp.zeros_like(acc_ref)

    h = jnp.dot(x_ref[...].astype(jnp.bfloat16), w1_ref[...],
                preferred_element_type=jnp.float32) + b1_ref[...]
    h = jnp.maximum(h, 0.0)                                   # relu_dropout = 0
    acc_ref[...] += jnp.dot(h.astype(jnp.bfloat16), w2_ref[...],
                            preferred_element_type=jnp.float32)

    @pl.when(pl.program_id(1) == pl.num_programs(1) - 1)
    def _done():
        o_ref[...] = (acc_ref[...] + b2_ref[...]).astype(o_ref.dtype)


def _self_attn_kernel(q_ref, k_ref, v_ref, x_ref, wo_ref, bo_ref, o_ref, *, scale):
    """Causal self-attention, grid = (batch, q-tile, head).

    Per-head out-projection is folded (ctx_h @ Wo_h) and accumulated into the
    resident output block over the innermost head axis; the block is
    initialised to residual + out-proj bias at head 0.
    """
    @pl.when(pl.program_id(2) == 0)
    def _init():
        o_ref[0] = x_ref[0] + bo_ref[...]                     # residual + bias (f32)

    q = q_ref[0, 0]                                           # (tq, dh) bf16
    k = k_ref[0, 0]                                           # (T,  dh) bf16
    v = v_ref[0, 0]                                           # (T,  dh) bf16

    s = lax.dot_general(q, k, (((1,), (1,)), ((), ())),
                        preferred_element_type=jnp.float32) * scale   # (tq, T)
    tq, T = s.shape
    q0 = pl.program_id(1) * tq
    row = lax.broadcasted_iota(jnp.int32, (tq, T), 0) + q0
    col = lax.broadcasted_iota(jnp.int32, (tq, T), 1)
    s = jnp.where(col <= row, s, jnp.float32(-1e9))           # causal, in-kernel
    s = s - jnp.max(s, axis=-1, keepdims=True)
    p = jnp.exp(s)
    p = p * pl.reciprocal(jnp.sum(p, axis=-1, keepdims=True), approx=True)

    ctx = jnp.dot(p.astype(jnp.bfloat16), v,
                  preferred_element_type=jnp.float32)         # (tq, dh)
    o_ref[0] += jnp.dot(ctx.astype(jnp.bfloat16), wo_ref[...],
                        preferred_element_type=jnp.float32)   # (tq, D)


def _cross_attn_kernel(q_ref, k_ref, v_ref, mb_ref, res_ref, wo_ref, bo_ref,
                       o_ref, *, scale):
    """Encoder attention, grid = (batch, q-tile, head); same accumulation scheme.

    NOTE: a fully-masked encoder row degrades to a uniform attention
    distribution (same behaviour as the finite -1e9 masked softmax here and in
    the reference's neginf fill).
    """
    @pl.when(pl.program_id(2) == 0)
    def _init():
        o_ref[0] = res_ref[0] + bo_ref[...]

    q = q_ref[0, 0]                                           # (tq, dh) bf16
    k = k_ref[0, 0]                                           # (S,  dh) bf16
    v = v_ref[0, 0]

    s = lax.dot_general(q, k, (((1,), (1,)), ((), ())),
                        preferred_element_type=jnp.float32) * scale   # (tq, S)
    s = s + mb_ref[0]                                         # (1, S) additive key-pad bias
    s = s - jnp.max(s, axis=-1, keepdims=True)
    p = jnp.exp(s)
    p = p * pl.reciprocal(jnp.sum(p, axis=-1, keepdims=True), approx=True)

    ctx = jnp.dot(p.astype(jnp.bfloat16), v,
                  preferred_element_type=jnp.float32)         # (tq, dh)
    o_ref[0] += jnp.dot(ctx.astype(jnp.bfloat16), wo_ref[...],
                        preferred_element_type=jnp.float32)   # (tq, D)


# ------------------------------------------------------------------ wrappers

def ln_linear(x2d, gamma, beta, w, bias, *, out_dtype, block_n=None, block_m=512):
    M, D = x2d.shape
    N = w.shape[1]
    tm = _row_tile(M, block_m)
    tn = N if block_n is None else min(block_n, N)
    blk = (tm * D * 4 + 2 * D * 4 + D * tn * 2 + tn * 4
           + tm * tn * jnp.dtype(out_dtype).itemsize)
    return pl.pallas_call(
        _ln_linear_kernel,
        out_shape=jax.ShapeDtypeStruct((M, N), out_dtype),
        grid=(pl.cdiv(M, tm), pl.cdiv(N, tn)),
        in_specs=[
            pl.BlockSpec((tm, D), lambda i, j: (i, 0)),
            pl.BlockSpec((1, D), lambda i, j: (0, 0)),
            pl.BlockSpec((1, D), lambda i, j: (0, 0)),
            pl.BlockSpec((D, tn), lambda i, j: (0, j)),
            pl.BlockSpec((1, tn), lambda i, j: (0, j)),
        ],
        out_specs=pl.BlockSpec((tm, tn), lambda i, j: (i, j)),
        compiler_params=_compiler_params(("parallel", "parallel"), blk),
    )(x2d, gamma.reshape(1, D), beta.reshape(1, D), w, bias.reshape(1, N))


def linear(x2d, w, b, *, out_dtype, block_m=512):
    M, D = x2d.shape
    N = w.shape[1]
    tm = _row_tile(M, block_m)
    blk = tm * D * 4 + D * N * 2 + N * 4 + tm * N * jnp.dtype(out_dtype).itemsize
    return pl.pallas_call(
        _linear_kernel,
        out_shape=jax.ShapeDtypeStruct((M, N), out_dtype),
        grid=(pl.cdiv(M, tm),),
        in_specs=[
            pl.BlockSpec((tm, D), lambda i: (i, 0)),
            pl.BlockSpec((D, N), lambda i: (0, 0)),
            pl.BlockSpec((1, N), lambda i: (0, 0)),
        ],
        out_specs=pl.BlockSpec((tm, N), lambda i: (i, 0)),
        compiler_params=_compiler_params(("parallel",), blk),
    )(x2d, w, b.reshape(1, N))


def ffn(x2d, w1, b1, w2, b2, *, block_m=512):
    M, D = x2d.shape
    F = w1.shape[1]
    tm = _row_tile(M, block_m)
    tf = _reduction_tile(F)
    blk = tm * D * 4 + D * tf * 2 + tf * 4 + tf * D * 2 + D * 4 + tm * D * 4
    return pl.pallas_call(
        _ffn_kernel,
        out_shape=jax.ShapeDtypeStruct((M, D), jnp.float32),
        grid=(pl.cdiv(M, tm), F // tf),
        in_specs=[
            pl.BlockSpec((tm, D), lambda i, j: (i, 0)),
            pl.BlockSpec((D, tf), lambda i, j: (0, j)),
            pl.BlockSpec((1, tf), lambda i, j: (0, j)),
            pl.BlockSpec((tf, D), lambda i, j: (j, 0)),
            pl.BlockSpec((1, D), lambda i, j: (0, 0)),
        ],
        out_specs=pl.BlockSpec((tm, D), lambda i, j: (i, 0)),
        scratch_shapes=[pltpu.VMEM((tm, D), jnp.float32)],
        compiler_params=_compiler_params(("parallel", "arbitrary"), blk,
                                         extra=tm * D * 4),
    )(x2d, w1, b1.reshape(1, F), w2, b2.reshape(1, D))


def self_attention(q_h, k_h, v_h, x, wo, bo, *, block_q=256):
    """q_h/k_h/v_h: (B, H, T, dh) bf16; x: (B, T, D) f32 residual stream."""
    B, H, T, dh = q_h.shape
    D = H * dh
    tq = min(block_q, _round_up(T, 8))
    kern = functools.partial(_self_attn_kernel, scale=1.0 / math.sqrt(dh))
    blk = tq * dh * 2 + 2 * T * dh * 2 + tq * D * 4 + dh * D * 2 + D * 4 + tq * D * 4
    return pl.pallas_call(
        kern,
        out_shape=jax.ShapeDtypeStruct((B, T, D), jnp.float32),
        grid=(B, pl.cdiv(T, tq), H),
        in_specs=[
            pl.BlockSpec((1, 1, tq, dh), lambda b, qi, h: (b, h, qi, 0)),
            pl.BlockSpec((1, 1, T, dh), lambda b, qi, h: (b, h, 0, 0)),
            pl.BlockSpec((1, 1, T, dh), lambda b, qi, h: (b, h, 0, 0)),
            pl.BlockSpec((1, tq, D), lambda b, qi, h: (b, qi, 0)),
            pl.BlockSpec((dh, D), lambda b, qi, h: (h, 0)),
            pl.BlockSpec((1, D), lambda b, qi, h: (0, 0)),
        ],
        out_specs=pl.BlockSpec((1, tq, D), lambda b, qi, h: (b, qi, 0)),
        compiler_params=_compiler_params(
            ("parallel", "parallel", "arbitrary"), blk),
    )(q_h, k_h, v_h, x, wo, bo.reshape(1, D))


def cross_attention(q_h, k_h, v_h, enc_bias, residual, wo, bo, *, block_q=256):
    """q_h: (B, H, T, dh) bf16; k_h/v_h: (B, H, S, dh) bf16; enc_bias: (B, 1, S) f32."""
    B, H, T, dh = q_h.shape
    S = k_h.shape[2]
    D = H * dh
    tq = min(block_q, _round_up(T, 8))
    kern = functools.partial(_cross_attn_kernel, scale=1.0 / math.sqrt(dh))
    blk = (tq * dh * 2 + 2 * S * dh * 2 + S * 4 + tq * D * 4 + dh * D * 2
           + D * 4 + tq * D * 4)
    return pl.pallas_call(
        kern,
        out_shape=jax.ShapeDtypeStruct((B, T, D), jnp.float32),
        grid=(B, pl.cdiv(T, tq), H),
        in_specs=[
            pl.BlockSpec((1, 1, tq, dh), lambda b, qi, h: (b, h, qi, 0)),
            pl.BlockSpec((1, 1, S, dh), lambda b, qi, h: (b, h, 0, 0)),
            pl.BlockSpec((1, 1, S, dh), lambda b, qi, h: (b, h, 0, 0)),
            pl.BlockSpec((1, 1, S), lambda b, qi, h: (b, 0, 0)),
            pl.BlockSpec((1, tq, D), lambda b, qi, h: (b, qi, 0)),
            pl.BlockSpec((dh, D), lambda b, qi, h: (h, 0)),
            pl.BlockSpec((1, D), lambda b, qi, h: (0, 0)),
        ],
        out_specs=pl.BlockSpec((1, tq, D), lambda b, qi, h: (b, qi, 0)),
        compiler_params=_compiler_params(
            ("parallel", "parallel", "arbitrary"), blk),
    )(q_h, k_h, v_h, enc_bias, residual, wo, bo.reshape(1, D))


# ------------------------------------------------------------------ model glue

def decoder_layer(p, x, encoder_output, enc_bias, num_heads):
    """TransformerDecoderLayer.forward, is_training=True (all dropouts p=0)."""
    B, T, D = x.shape
    S = encoder_output.shape[1]
    H = num_heads
    dh = D // H

    # 1) LN1 + fused QKV projection (bf16 intermediate in HBM).
    qkv = ln_linear(x.reshape(-1, D), p["ln1_g"], p["ln1_b"],
                    p["sa_wqkv"], p["sa_bqkv"], out_dtype=jnp.bfloat16)
    # Head-major layout so per-head blocks arrive dense via BlockSpec (no
    # in-kernel lane slicing / concat); transpose is cheap bf16 XLA work.
    qkv_h = qkv.reshape(B, T, 3, H, dh).transpose(2, 0, 3, 1, 4)  # (3,B,H,T,dh)
    # 2) causal self-attention + folded out-proj + residual.
    query = self_attention(qkv_h[0], qkv_h[1], qkv_h[2], x,
                           p["sa_wo"], p["sa_bo"])

    # 3) LN2 + cross-attention query projection.
    q2 = ln_linear(query.reshape(-1, D), p["ln2_g"], p["ln2_b"],
                   p["ea_wq"], p["ea_bq"], out_dtype=jnp.bfloat16)
    q2_h = q2.reshape(B, T, H, dh).transpose(0, 2, 1, 3)          # (B,H,T,dh)
    # 4) fused encoder K/V projection.
    kv2 = linear(encoder_output.reshape(-1, D), p["ea_wkv"], p["ea_bkv"],
                 out_dtype=jnp.bfloat16)
    kv2_h = kv2.reshape(B, S, 2, H, dh).transpose(2, 0, 3, 1, 4)  # (2,B,H,S,dh)
    # 5) cross-attention + folded out-proj + residual(query) == inter + query.
    ffn_in = cross_attention(q2_h, kv2_h[0], kv2_h[1], enc_bias, query,
                             p["ea_wo"], p["ea_bo"])

    # 6) FFN (F-tiled, f32 accumulator). The reference layer returns the FFN
    # output directly (no post-FFN residual add and no norm3).
    out = ffn(ffn_in.reshape(-1, D), p["ffn_w1"], p["ffn_b1"],
              p["ffn_w2"], p["ffn_b2"])
    return out.reshape(B, T, D)


def transformer_decoder_forward(params, encoder_output, encoder_mask, target,
                                num_heads, vocab):
    """TransformerDecoder.forward with is_training=True."""
    D = params["embedding"].shape[1]
    B, L = target.shape
    T = L - 1
    tokens = target[:, :T]                                     # (B, T)

    x = params["embedding"][tokens] / np.sqrt(D)               # embedding_scale=True
    x = x + params["pos_embedding"][:T][None, :, :]

    S = encoder_output.shape[1]
    # Additive key-padding bias (0 keep / -1e9 mask), computed once and reused
    # by every layer's cross-attention.
    enc_bias = ((1.0 - encoder_mask.astype(jnp.float32)) * jnp.float32(-1e9)
                ).reshape(B, 1, S)

    for lp in params["layers"]:
        x = decoder_layer(lp, x, encoder_output, enc_bias, num_heads)

    # Final LayerNorm + output projection, N-tiled so out_w never needs to be a
    # single resident VMEM block at production vocab sizes; vocab padded to a
    # multiple of 128 so every logits store is lane-dense, then sliced back.
    logits = ln_linear(x.reshape(-1, D), params["ln_g"], params["ln_b"],
                       params["out_w"], params["out_b"],
                       out_dtype=jnp.float32, block_n=2048)
    return logits.reshape(B, T, -1)[:, :, :vocab]


# ------------------------------------------------------------------ params

def sinusoidal_position_embedding(n_pos, dim):
    pe = np.zeros((n_pos, dim), dtype=np.float32)
    enc = np.array([[pos / np.power(10000, 2.0 * j / dim) for j in range(dim // 2)]
                    for pos in range(n_pos)], dtype=np.float32)
    pe[:, 0::2] = np.sin(enc)
    pe[:, 1::2] = np.cos(enc)
    return jnp.asarray(pe)


def init_params(key, vocab, num_positions, num_layers, num_heads, D, F):
    def nrm(k, shape, s=0.02):
        return s * jax.random.normal(k, shape, jnp.float32)

    def w_bf16(k, shape, s=0.02):                              # MXU weights in bf16
        return nrm(k, shape, s).astype(jnp.bfloat16)

    v_pad = ((vocab + 127) // 128) * 128                       # lane-dense logits
    keys = iter(jax.random.split(key, 8 + num_layers * 16))
    out_w = jnp.zeros((D, v_pad), jnp.float32).at[:, :vocab].set(
        nrm(next(keys), (D, vocab)))
    params = {
        "embedding": nrm(next(keys), (vocab, D), 1.0),
        "pos_embedding": sinusoidal_position_embedding(num_positions, D),
        "ln_g": jnp.ones((D,), jnp.float32),
        "ln_b": jnp.zeros((D,), jnp.float32),
        "out_w": out_w.astype(jnp.bfloat16),
        "out_b": jnp.zeros((v_pad,), jnp.float32),
        "layers": [],
    }
    for _ in range(num_layers):
        params["layers"].append({
            "ln1_g": jnp.ones((D,), jnp.float32), "ln1_b": jnp.zeros((D,), jnp.float32),
            "sa_wqkv": w_bf16(next(keys), (D, 3 * D)),         # fused q/k/v weights
            "sa_bqkv": jnp.zeros((3 * D,), jnp.float32),
            "sa_wo": w_bf16(next(keys), (D, D)),
            "sa_bo": jnp.zeros((D,), jnp.float32),
            "ln2_g": jnp.ones((D,), jnp.float32), "ln2_b": jnp.zeros((D,), jnp.float32),
            "ea_wq": w_bf16(next(keys), (D, D)),
            "ea_bq": jnp.zeros((D,), jnp.float32),
            "ea_wkv": w_bf16(next(keys), (D, 2 * D)),          # fused k/v weights
            "ea_bkv": jnp.zeros((2 * D,), jnp.float32),
            "ea_wo": w_bf16(next(keys), (D, D)),
            "ea_bo": jnp.zeros((D,), jnp.float32),
            "ffn_w1": w_bf16(next(keys), (D, F)),
            "ffn_b1": jnp.zeros((F,), jnp.float32),
            "ffn_w2": w_bf16(next(keys), (F, D)),
            "ffn_b2": jnp.zeros((D,), jnp.float32),
        })
    return params


# ------------------------------------------------------------------ main

if __name__ == "__main__":
    B, L, ENC_LEN = 2, 9, 8          # target length L -> decoded length L-1 = 8
    D, H, F = 32, 4, 64
    VOCAB, NUM_POS, NUM_LAYERS = 50, 64, 2

    root = jax.random.PRNGKey(0)
    kp, kt, ke = jax.random.split(root, 3)

    params = init_params(kp, VOCAB, NUM_POS, NUM_LAYERS, H, D, F)
    target = jax.random.randint(kt, (B, L), 0, VOCAB)
    encoder_output = jax.random.normal(ke, (B, ENC_LEN, D), jnp.float32)
    encoder_mask = jnp.ones((B, ENC_LEN), jnp.int32).at[1, 6:].set(0)  # pad last 2 of batch 1

    # TODO(synk): inference-mode greedy/beam decode loops (_take_step / beam_forward)
    # are host-side control flow and are not implemented; this covers is_training=True.
    fwd = jax.jit(functools.partial(transformer_decoder_forward,
                                    num_heads=H, vocab=VOCAB))
    logits = fwd(params, encoder_output, encoder_mask, target)
    jax.block_until_ready(logits)
    assert logits.shape == (B, L - 1, VOCAB), logits.shape
    assert bool(jnp.all(jnp.isfinite(logits)))
    print("KERNEL_OK")
</pallas_src>

<mosaic_0001>
module attributes {stable_mosaic.version = 11 : i64} {
  func.func @_ln_linear_kernel(%arg0: i32, %arg1: i32, %arg2: memref<16x32xf32, #tpu.memory_space<vmem>>, %arg3: memref<1x32xf32, #tpu.memory_space<vmem>>, %arg4: memref<1x32xf32, #tpu.memory_space<vmem>>, %arg5: memref<32x96xbf16, #tpu.memory_space<vmem>>, %arg6: memref<1x96xf32, #tpu.memory_space<vmem>>, %arg7: memref<16x96xbf16, #tpu.memory_space<vmem>>) attributes {dimension_semantics = [#tpu.dimension_semantics<parallel>, #tpu.dimension_semantics<parallel>], iteration_bounds = array<i64: 1, 1>, scalar_prefetch = 0 : i64, scratch_operands = 0 : i64, tpu.core_type = #tpu.core_type<tc>, window_params = [{transform_indices = @transform_0, window_bounds = array<i64: 16, 32>}, {pipeline_mode = #tpu.pipeline_mode<synchronous>, transform_indices = @transform_1, window_bounds = array<i64: 1, 32>}, {pipeline_mode = #tpu.pipeline_mode<synchronous>, transform_indices = @transform_2, window_bounds = array<i64: 1, 32>}, {transform_indices = @transform_3, window_bounds = array<i64: 32, 96>}, {transform_indices = @transform_4, window_bounds = array<i64: 1, 96>}, {transform_indices = @transform_5, window_bounds = array<i64: 16, 96>}]} {
    %c0 = arith.constant 0 : index
    %c0_0 = arith.constant 0 : index
    %0 = vector.load %arg2[%c0, %c0_0] : memref<16x32xf32, #tpu.memory_space<vmem>>, vector<16x32xf32>
    %cst = arith.constant dense<0.000000e+00> : vector<16xf32>
    %1 = vector.multi_reduction <add>, %0, %cst [1] : vector<16x32xf32> to vector<16xf32>
    %2 = vector.shape_cast %1 : vector<16xf32> to vector<16x1xf32>
    %cst_1 = arith.constant 3.200000e+01 : f32
    %3 = vector.broadcast %cst_1 : f32 to vector<16x1xf32>
    %4 = arith.divf %2, %3 : vector<16x1xf32>
    %5 = vector.broadcast %4 : vector<16x1xf32> to vector<16x32xf32>
    %6 = arith.subf %0, %5 : vector<16x32xf32>
    %7 = arith.mulf %6, %6 : vector<16x32xf32>
    %cst_2 = arith.constant dense<0.000000e+00> : vector<16xf32>
    %8 = vector.multi_reduction <add>, %7, %cst_2 [1] : vector<16x32xf32> to vector<16xf32>
    %9 = vector.shape_cast %8 : vector<16xf32> to vector<16x1xf32>
    %cst_3 = arith.constant 3.200000e+01 : f32
    %10 = vector.broadcast %cst_3 : f32 to vector<16x1xf32>
    %11 = arith.divf %9, %10 : vector<16x1xf32>
    %cst_4 = arith.constant 9.99999974E-6 : f32
    %12 = vector.broadcast %cst_4 : f32 to vector<16x1xf32>
    %13 = arith.addf %11, %12 : vector<16x1xf32>
    %14 = math.rsqrt %13 : vector<16x1xf32>
    %15 = vector.broadcast %14 : vector<16x1xf32> to vector<16x32xf32>
    %16 = arith.mulf %6, %15 : vector<16x32xf32>
    %c0_5 = arith.constant 0 : index
    %c0_6 = arith.constant 0 : index
    %17 = vector.load %arg3[%c0_5, %c0_6] : memref<1x32xf32, #tpu.memory_space<vmem>>, vector<1x32xf32>
    %18 = vector.broadcast %17 : vector<1x32xf32> to vector<16x32xf32>
    %19 = arith.mulf %16, %18 : vector<16x32xf32>
    %c0_7 = arith.constant 0 : index
    %c0_8 = arith.constant 0 : index
    %20 = vector.load %arg4[%c0_7, %c0_8] : memref<1x32xf32, #tpu.memory_space<vmem>>, vector<1x32xf32>
    %21 = vector.broadcast %20 : vector<1x32xf32> to vector<16x32xf32>
    %22 = arith.addf %19, %21 : vector<16x32xf32>
    %23 = arith.truncf %22 : vector<16x32xf32> to vector<16x32xbf16>
    %c0_9 = arith.constant 0 : index
    %c0_10 = arith.constant 0 : index
    %24 = vector.load %arg5[%c0_9, %c0_10] : memref<32x96xbf16, #tpu.memory_space<vmem>>, vector<32x96xbf16>
    %cst_11 = arith.constant dense<0.000000e+00> : vector<16x96xf32>
    %25 = tpu.matmul %23, %24, %cst_11 {dimension_numbers = #tpu.dot_dimension_numbers<[1], [0], [0], [1], [0, 0, 1, 1], [], []>} : vector<16x32xbf16>, vector<32x96xbf16>, vector<16x96xf32> -> vector<16x96xf32>
    %c0_12 = arith.constant 0 : index
    %c0_13 = arith.constant 0 : index
    %26 = vector.load %arg6[%c0_12, %c0_13] : memref<1x96xf32, #tpu.memory_space<vmem>>, vector<1x96xf32>
    %27 = vector.broadcast %26 : vector<1x96xf32> to vector<16x96xf32>
    %28 = arith.addf %25, %27 : vector<16x96xf32>
    %29 = arith.truncf %28 : vector<16x96xf32> to vector<16x96xbf16>
    %c0_14 = arith.constant 0 : index
    %c0_15 = arith.constant 0 : index
    %30 = vector.load %arg7[%c0_14, %c0_15] : memref<16x96xbf16, #tpu.memory_space<vmem>>, vector<16x96xbf16>
    tpu.vector_store %arg7[%c0_14, %c0_15], %29 {strides = array<i32>} : memref<16x96xbf16, #tpu.memory_space<vmem>>, vector<16x96xbf16>,
    return
  }
  func.func @transform_0(%arg0: i32, %arg1: i32) -> (i32, i32) {
    %c0_i32 = arith.constant 0 : i32
    %c0_i32_0 = arith.constant 0 : i32
    return %arg0, %c0_i32 : i32, i32
  }
  func.func @transform_1(%arg0: i32, %arg1: i32) -> (i32, i32) {
    %c0_i32 = arith.constant 0 : i32
    %c0_i32_0 = arith.constant 0 : i32
    %c0_i32_1 = arith.constant 0 : i32
    return %c0_i32, %c0_i32_0 : i32, i32
  }
  func.func @transform_2(%arg0: i32, %arg1: i32) -> (i32, i32) {
    %c0_i32 = arith.constant 0 : i32
    %c0_i32_0 = arith.constant 0 : i32
    %c0_i32_1 = arith.constant 0 : i32
    return %c0_i32, %c0_i32_0 : i32, i32
  }
  func.func @transform_3(%arg0: i32, %arg1: i32) -> (i32, i32) {
    %c0_i32 = arith.constant 0 : i32
    %c0_i32_0 = arith.constant 0 : i32
    return %c0_i32, %arg1 : i32, i32
  }
  func.func @transform_4(%arg0: i32, %arg1: i32) -> (i32, i32) {
    %c0_i32 = arith.constant 0 : i32
    %c0_i32_0 = arith.constant 0 : i32
    return %c0_i32, %arg1 : i32, i32
  }
  func.func @transform_5(%arg0: i32, %arg1: i32) -> (i32, i32) {
    %c0_i32 = arith.constant 0 : i32
    return %arg0, %arg1 : i32, i32
  }
}

module attributes {stable_mosaic.version = 11 : i64} {
  func.func @_ln_linear_kernel(%arg0: i32, %arg1: i32, %arg2: memref<16x32xf32, #tpu.memory_space<vmem>>, %arg3: memref<1x32xf32, #tpu.memory_space<vmem>>, %arg4: memref<1x32xf32, #tpu.memory_space<vmem>>, %arg5: memref<32x32xbf16, #tpu.memory_space<vmem>>, %arg6: memref<1x32xf32, #tpu.memory_space<vmem>>, %arg7: memref<16x32xbf16, #tpu.memory_space<vmem>>) attributes {dimension_semantics = [#tpu.dimension_semantics<parallel>, #tpu.dimension_semantics<parallel>], iteration_bounds = array<i64: 1, 1>, scalar_prefetch = 0 : i64, scratch_operands = 0 : i64, tpu.core_type = #tpu.core_type<tc>, window_params = [{transform_indices = @transform_0, window_bounds = array<i64: 16, 32>}, {pipeline_mode = #tpu.pipeline_mode<synchronous>, transform_indices = @transform_1, window_bounds = array<i64: 1, 32>}, {pipeline_mode = #tpu.pipeline_mode<synchronous>, transform_indices = @transform_2, window_bounds = array<i64: 1, 32>}, {transform_indices = @transform_3, window_bounds = array<i64: 32, 32>}, {transform_indices = @transform_4, window_bounds = array<i64: 1, 32>}, {transform_indices = @transform_5, window_bounds = array<i64: 16, 32>}]} {
    %c0 = arith.constant 0 : index
    %c0_0 = arith.constant 0 : index
    %0 = vector.load %arg2[%c0, %c0_0] : memref<16x32xf32, #tpu.memory_space<vmem>>, vector<16x32xf32>
    %cst = arith.constant dense<0.000000e+00> : vector<16xf32>
    %1 = vector.multi_reduction <add>, %0, %cst [1] : vector<16x32xf32> to vector<16xf32>
    %2 = vector.shape_cast %1 : vector<16xf32> to vector<16x1xf32>
    %cst_1 = arith.constant 3.200000e+01 : f32
    %3 = vector.broadcast %cst_1 : f32 to vector<16x1xf32>
    %4 = arith.divf %2, %3 : vector<16x1xf32>
    %5 = vector.broadcast %4 : vector<16x1xf32> to vector<16x32xf32>
    %6 = arith.subf %0, %5 : vector<16x32xf32>
    %7 = arith.mulf %6, %6 : vector<16x32xf32>
    %cst_2 = arith.constant dense<0.000000e+00> : vector<16xf32>
    %8 = vector.multi_reduction <add>, %7, %cst_2 [1] : vector<16x32xf32> to vector<16xf32>
    %9 = vector.shape_cast %8 : vector<16xf32> to vector<16x1xf32>
    %cst_3 = arith.constant 3.200000e+01 : f32
    %10 = vector.broadcast %cst_3 : f32 to vector<16x1xf32>
    %11 = arith.divf %9, %10 : vector<16x1xf32>
    %cst_4 = arith.constant 9.99999974E-6 : f32
    %12 = vector.broadcast %cst_4 : f32 to vector<16x1xf32>
    %13 = arith.addf %11, %12 : vector<16x1xf32>
    %14 = math.rsqrt %13 : vector<16x1xf32>
    %15 = vector.broadcast %14 : vector<16x1xf32> to vector<16x32xf32>
    %16 = arith.mulf %6, %15 : vector<16x32xf32>
    %c0_5 = arith.constant 0 : index
    %c0_6 = arith.constant 0 : index
    %17 = vector.load %arg3[%c0_5, %c0_6] : memref<1x32xf32, #tpu.memory_space<vmem>>, vector<1x32xf32>
    %18 = vector.broadcast %17 : vector<1x32xf32> to vector<16x32xf32>
    %19 = arith.mulf %16, %18 : vector<16x32xf32>
    %c0_7 = arith.constant 0 : index
    %c0_8 = arith.constant 0 : index
    %20 = vector.load %arg4[%c0_7, %c0_8] : memref<1x32xf32, #tpu.memory_space<vmem>>, vector<1x32xf32>
    %21 = vector.broadcast %20 : vector<1x32xf32> to vector<16x32xf32>
    %22 = arith.addf %19, %21 : vector<16x32xf32>
    %23 = arith.truncf %22 : vector<16x32xf32> to vector<16x32xbf16>
    %c0_9 = arith.constant 0 : index
    %c0_10 = arith.constant 0 : index
    %24 = vector.load %arg5[%c0_9, %c0_10] : memref<32x32xbf16, #tpu.memory_space<vmem>>, vector<32x32xbf16>
    %cst_11 = arith.constant dense<0.000000e+00> : vector<16x32xf32>
    %25 = tpu.matmul %23, %24, %cst_11 {dimension_numbers = #tpu.dot_dimension_numbers<[1], [0], [0], [1], [0, 0, 1, 1], [], []>} : vector<16x32xbf16>, vector<32x32xbf16>, vector<16x32xf32> -> vector<16x32xf32>
    %c0_12 = arith.constant 0 : index
    %c0_13 = arith.constant 0 : index
    %26 = vector.load %arg6[%c0_12, %c0_13] : memref<1x32xf32, #tpu.memory_space<vmem>>, vector<1x32xf32>
    %27 = vector.broadcast %26 : vector<1x32xf32> to vector<16x32xf32>
    %28 = arith.addf %25, %27 : vector<16x32xf32>
    %29 = arith.truncf %28 : vector<16x32xf32> to vector<16x32xbf16>
    %c0_14 = arith.constant 0 : index
    %c0_15 = arith.constant 0 : index
    %30 = vector.load %arg7[%c0_14, %c0_15] : memref<16x32xbf16, #tpu.memory_space<vmem>>, vector<16x32xbf16>
    tpu.vector_store %arg7[%c0_14, %c0_15], %29 {strides = array<i32>} : memref<16x32xbf16, #tpu.memory_space<vmem>>, vector<16x32xbf16>,
    return
  }
  func.func @transform_0(%arg0: i32, %arg1: i32) -> (i32, i32) {
    %c0_i32 = arith.constant 0 : i32
    %c0_i32_0 = arith.constant 0 : i32
    return %arg0, %c0_i32 : i32, i32
  }
  func.func @transform_1(%arg0: i32, %arg1: i32) -> (i32, i32) {
    %c0_i32 = arith.constant 0 : i32
    %c0_i32_0 = arith.constant 0 : i32
    %c0_i32_1 = arith.constant 0 : i32
    return %c0_i32, %c0_i32_0 : i32, i32
  }
  func.func @transform_2(%arg0: i32, %arg1: i32) -> (i32, i32) {
    %c0_i32 = arith.constant 0 : i32
    %c0_i32_0 = arith.constant 0 : i32
    %c0_i32_1 = arith.constant 0 : i32
    return %c0_i32, %c0_i32_0 : i32, i32
  }
  func.func @transform_3(%arg0: i32, %arg1: i32) -> (i32, i32) {
    %c0_i32 = arith.constant 0 : i32
    %c0_i32_0 = arith.constant 0 : i32
    return %c0_i32, %arg1 : i32, i32
  }
  func.func @transform_4(%arg0: i32, %arg1: i32) -> (i32, i32) {
    %c0_i32 = arith.constant 0 : i32
    %c0_i32_0 = arith.constant 0 : i32
    return %c0_i32, %arg1 : i32, i32
  }
  func.func @transform_5(%arg0: i32, %arg1: i32) -> (i32, i32) {
    %c0_i32 = arith.constant 0 : i32
    return %arg0, %arg1 : i32, i32
  }
}

module attributes {stable_mosaic.version = 11 : i64} {
  func.func @_self_attn_kernel(%arg0: i32, %arg1: i32, %arg2: i32, %arg3: memref<1x1x8x8xbf16, #tpu.memory_space<vmem>>, %arg4: memref<1x1x8x8xbf16, #tpu.memory_space<vmem>>, %arg5: memref<1x1x8x8xbf16, #tpu.memory_space<vmem>>, %arg6: memref<1x8x32xf32, #tpu.memory_space<vmem>>, %arg7: memref<8x32xbf16, #tpu.memory_space<vmem>>, %arg8: memref<1x32xf32, #tpu.memory_space<vmem>>, %arg9: memref<1x8x32xf32, #tpu.memory_space<vmem>>) attributes {dimension_semantics = [#tpu.dimension_semantics<parallel>, #tpu.dimension_semantics<parallel>, #tpu.dimension_semantics<arbitrary>], iteration_bounds = array<i64: 2, 1, 4>, scalar_prefetch = 0 : i64, scratch_operands = 0 : i64, tpu.core_type = #tpu.core_type<tc>, window_params = [{transform_indices = @transform_0, window_bounds = array<i64: 1, 1, 8, 8>}, {transform_indices = @transform_1, window_bounds = array<i64: 1, 1, 8, 8>}, {transform_indices = @transform_2, window_bounds = array<i64: 1, 1, 8, 8>}, {transform_indices = @transform_3, window_bounds = array<i64: 1, 8, 32>}, {transform_indices = @transform_4, window_bounds = array<i64: 8, 32>}, {pipeline_mode = #tpu.pipeline_mode<synchronous>, transform_indices = @transform_5, window_bounds = array<i64: 1, 32>}, {transform_indices = @transform_6, window_bounds = array<i64: 1, 8, 32>}]} {
    %c0_i32 = arith.constant 0 : i32
    %0 = arith.cmpi eq, %arg2, %c0_i32 : i32
    %1 = arith.extui %0 : i1 to i32
    %c0_i32_0 = arith.constant 0 : i32
    %2 = arith.cmpi ne, %1, %c0_i32_0 : i32
    scf.if %2 {
      %c0_26 = arith.constant 0 : index
      %c0_27 = arith.constant 0 : index
      %c0_28 = arith.constant 0 : index
      %41 = vector.load %arg6[%c0_26, %c0_27, %c0_28] : memref<1x8x32xf32, #tpu.memory_space<vmem>>, vector<1x8x32xf32>
      %42 = vector.shape_cast %41 : vector<1x8x32xf32> to vector<8x32xf32>
      %c0_29 = arith.constant 0 : index
      %c0_30 = arith.constant 0 : index
      %43 = vector.load %arg8[%c0_29, %c0_30] : memref<1x32xf32, #tpu.memory_space<vmem>>, vector<1x32xf32>
      %44 = vector.broadcast %43 : vector<1x32xf32> to vector<8x32xf32>
      %45 = arith.addf %42, %44 : vector<8x32xf32>
      %c0_31 = arith.constant 0 : index
      %c0_32 = arith.constant 0 : index
      %c0_33 = arith.constant 0 : index
      %46 = vector.load %arg9[%c0_31, %c0_32, %c0_33] : memref<1x8x32xf32, #tpu.memory_space<vmem>>, vector<1x8x32xf32>
      %47 = vector.shape_cast %46 : vector<1x8x32xf32> to vector<8x32xf32>
      %48 = vector.shape_cast %45 : vector<8x32xf32> to vector<1x8x32xf32>
      tpu.vector_store %arg9[%c0_31, %c0_32, %c0_33], %48 {strides = array<i32>} : memref<1x8x32xf32, #tpu.memory_space<vmem>>, vector<1x8x32xf32>,
    } else {
    }
    %c0 = arith.constant 0 : index
    %c0_1 = arith.constant 0 : index
    %c0_2 = arith.constant 0 : index
    %c0_3 = arith.constant 0 : index
    %3 = vector.load %arg3[%c0, %c0_1, %c0_2, %c0_3] : memref<1x1x8x8xbf16, #tpu.memory_space<vmem>>, vector<1x1x8x8xbf16>
    %4 = vector.shape_cast %3 : vector<1x1x8x8xbf16> to vector<8x8xbf16>
    %c0_4 = arith.constant 0 : index
    %c0_5 = arith.constant 0 : index
    %c0_6 = arith.constant 0 : index
    %c0_7 = arith.constant 0 : index
    %5 = vector.load %arg4[%c0_4, %c0_5, %c0_6, %c0_7] : memref<1x1x8x8xbf16, #tpu.memory_space<vmem>>, vector<1x1x8x8xbf16>
    %6 = vector.shape_cast %5 : vector<1x1x8x8xbf16> to vector<8x8xbf16>
    %c0_8 = arith.constant 0 : index
    %c0_9 = arith.constant 0 : index
    %c0_10 = arith.constant 0 : index
    %c0_11 = arith.constant 0 : index
    %7 = vector.load %arg5[%c0_8, %c0_9, %c0_10, %c0_11] : memref<1x1x8x8xbf16, #tpu.memory_space<vmem>>, vector<1x1x8x8xbf16>
    %8 = vector.shape_cast %7 : vector<1x1x8x8xbf16> to vector<8x8xbf16>
    %cst = arith.constant dense<0.000000e+00> : vector<8x8xf32>
    %9 = tpu.matmul %4, %6, %cst {dimension_numbers = #tpu.dot_dimension_numbers<[1], [1], [0], [0], [0, 0, 1, 0], [], []>} : vector<8x8xbf16>, vector<8x8xbf16>, vector<8x8xf32> -> vector<8x8xf32>
    %cst_12 = arith.constant 0.353553385 : f32
    %10 = vector.broadcast %cst_12 : f32 to vector<8x8xf32>
    %11 = arith.mulf %9, %10 : vector<8x8xf32>
    %c8_i32 = arith.constant 8 : i32
    %12 = arith.muli %arg1, %c8_i32 : i32
    %13 = tpu.iota {dimensions = array<i32: 0>} : vector<8x8xi32>
    %14 = vector.broadcast %12 : i32 to vector<8x8xi32>
    %15 = arith.addi %13, %14 : vector<8x8xi32>
    %16 = tpu.iota {dimensions = array<i32: 1>} : vector<8x8xi32>
    %17 = arith.cmpi sle, %16, %15 : vector<8x8xi32>
    %cst_13 = arith.constant -1.000000e+09 : f32
    %18 = vector.broadcast %cst_13 : f32 to vector<8x8xf32>
    %19 = arith.select %17, %11, %18 : vector<8x8xi1>, vector<8x8xf32>
    %cst_14 = arith.constant dense<0xFF800000> : vector<8xf32>
    %20 = vector.multi_reduction <maximumf>, %19, %cst_14 [1] : vector<8x8xf32> to vector<8xf32>
    %21 = vector.shape_cast %20 : vector<8xf32> to vector<8x1xf32>
    %22 = vector.broadcast %21 : vector<8x1xf32> to vector<8x8xf32>
    %23 = arith.subf %19, %22 : vector<8x8xf32>
    %24 = math.exp %23 : vector<8x8xf32>
    %cst_15 = arith.constant dense<0.000000e+00> : vector<8xf32>
    %25 = vector.multi_reduction <add>, %24, %cst_15 [1] : vector<8x8xf32> to vector<8xf32>
    %26 = vector.shape_cast %25 : vector<8xf32> to vector<8x1xf32>
    %27 = tpu.reciprocal %26 {approx = true} : vector<8x1xf32> -> vector<8x1xf32>
    %28 = vector.broadcast %27 : vector<8x1xf32> to vector<8x8xf32>
    %29 = arith.mulf %24, %28 : vector<8x8xf32>
    %30 = arith.truncf %29 : vector<8x8xf32> to vector<8x8xbf16>
    %cst_16 = arith.constant dense<0.000000e+00> : vector<8x8xf32>
    %31 = tpu.matmul %30, %8, %cst_16 {dimension_numbers = #tpu.dot_dimension_numbers<[1], [0], [0], [1], [0, 0, 1, 1], [], []>} : vector<8x8xbf16>, vector<8x8xbf16>, vector<8x8xf32> -> vector<8x8xf32>
    %c0_17 = arith.constant 0 : index
    %c0_18 = arith.constant 0 : index
    %c0_19 = arith.constant 0 : index
    %32 = vector.load %arg9[%c0_17, %c0_18, %c0_19] : memref<1x8x32xf32, #tpu.memory_space<vmem>>, vector<1x8x32xf32>
    %33 = vector.shape_cast %32 : vector<1x8x32xf32> to vector<8x32xf32>
    %34 = arith.truncf %31 : vector<8x8xf32> to vector<8x8xbf16>
    %c0_20 = arith.constant 0 : index
    %c0_21 = arith.constant 0 : index
    %35 = vector.load %arg7[%c0_20, %c0_21] : memref<8x32xbf16, #tpu.memory_space<vmem>>, vector<8x32xbf16>
    %cst_22 = arith.constant dense<0.000000e+00> : vector<8x32xf32>
    %36 = tpu.matmul %34, %35, %cst_22 {dimension_numbers = #tpu.dot_dimension_numbers<[1], [0], [0], [1], [0, 0, 1, 1], [], []>} : vector<8x8xbf16>, vector<8x32xbf16>, vector<8x32xf32> -> vector<8x32xf32>
    %37 = arith.addf %33, %36 : vector<8x32xf32>
    %c0_23 = arith.constant 0 : index
    %c0_24 = arith.constant 0 : index
    %c0_25 = arith.constant 0 : index
    %38 = vector.load %arg9[%c0_23, %c0_24, %c0_25] : memref<1x8x32xf32, #tpu.memory_space<vmem>>, vector<1x8x32xf32>
    %39 = vector.shape_cast %38 : vector<1x8x32xf32> to vector<8x32xf32>
    %40 = vector.shape_cast %37 : vector<8x32xf32> to vector<1x8x32xf32>
    tpu.vector_store %arg9[%c0_23, %c0_24, %c0_25], %40 {strides = array<i32>} : memref<1x8x32xf32, #tpu.memory_space<vmem>>, vector<1x8x32xf32>,
    return
  }
  func.func @transform_0(%arg0: i32, %arg1: i32, %arg2: i32) -> (i32, i32, i32, i32) {
    %c0_i32 = arith.constant 0 : i32
    %c0_i32_0 = arith.constant 0 : i32
    return %arg0, %arg2, %arg1, %c0_i32 : i32, i32, i32, i32
  }
  func.func @transform_1(%arg0: i32, %arg1: i32, %arg2: i32) -> (i32, i32, i32, i32) {
    %c0_i32 = arith.constant 0 : i32
    %c0_i32_0 = arith.constant 0 : i32
    %c0_i32_1 = arith.constant 0 : i32
    return %arg0, %arg2, %c0_i32, %c0_i32_0 : i32, i32, i32, i32
  }
  func.func @transform_2(%arg0: i32, %arg1: i32, %arg2: i32) -> (i32, i32, i32, i32) {
    %c0_i32 = arith.constant 0 : i32
    %c0_i32_0 = arith.constant 0 : i32
    %c0_i32_1 = arith.constant 0 : i32
    return %arg0, %arg2, %c0_i32, %c0_i32_0 : i32, i32, i32, i32
  }
  func.func @transform_3(%arg0: i32, %arg1: i32, %arg2: i32) -> (i32, i32, i32) {
    %c0_i32 = arith.constant 0 : i32
    %c0_i32_0 = arith.constant 0 : i32
    return %arg0, %arg1, %c0_i32 : i32, i32, i32
  }
  func.func @transform_4(%arg0: i32, %arg1: i32, %arg2: i32) -> (i32, i32) {
    %c0_i32 = arith.constant 0 : i32
    %c0_i32_0 = arith.constant 0 : i32
    return %arg2, %c0_i32 : i32, i32
  }
  func.func @transform_5(%arg0: i32, %arg1: i32, %arg2: i32) -> (i32, i32) {
    %c0_i32 = arith.constant 0 : i32
    %c0_i32_0 = arith.constant 0 : i32
    %c0_i32_1 = arith.constant 0 : i32
    return %c0_i32, %c0_i32_0 : i32, i32
  }
  func.func @transform_6(%arg0: i32, %arg1: i32, %arg2: i32) -> (i32, i32, i32) {
    %c0_i32 = arith.constant 0 : i32
    %c0_i32_0 = arith.constant 0 : i32
    return %arg0, %arg1, %c0_i32 : i32, i32, i32
  }
}

module attributes {stable_mosaic.version = 11 : i64} {
  func.func @_linear_kernel(%arg0: i32, %arg1: memref<16x32xf32, #tpu.memory_space<vmem>>, %arg2: memref<32x64xbf16, #tpu.memory_space<vmem>>, %arg3: memref<1x64xf32, #tpu.memory_space<vmem>>, %arg4: memref<16x64xbf16, #tpu.memory_space<vmem>>) attributes {dimension_semantics = [#tpu.dimension_semantics<parallel>], iteration_bounds = array<i64: 1>, scalar_prefetch = 0 : i64, scratch_operands = 0 : i64, tpu.core_type = #tpu.core_type<tc>, window_params = [{transform_indices = @transform_0, window_bounds = array<i64: 16, 32>}, {pipeline_mode = #tpu.pipeline_mode<synchronous>, transform_indices = @transform_1, window_bounds = array<i64: 32, 64>}, {pipeline_mode = #tpu.pipeline_mode<synchronous>, transform_indices = @transform_2, window_bounds = array<i64: 1, 64>}, {transform_indices = @transform_3, window_bounds = array<i64: 16, 64>}]} {
    %c0 = arith.constant 0 : index
    %c0_0 = arith.constant 0 : index
    %0 = vector.load %arg1[%c0, %c0_0] : memref<16x32xf32, #tpu.memory_space<vmem>>, vector<16x32xf32>
    %1 = arith.truncf %0 : vector<16x32xf32> to vector<16x32xbf16>
    %c0_1 = arith.constant 0 : index
    %c0_2 = arith.constant 0 : index
    %2 = vector.load %arg2[%c0_1, %c0_2] : memref<32x64xbf16, #tpu.memory_space<vmem>>, vector<32x64xbf16>
    %cst = arith.constant dense<0.000000e+00> : vector<16x64xf32>
    %3 = tpu.matmul %1, %2, %cst {dimension_numbers = #tpu.dot_dimension_numbers<[1], [0], [0], [1], [0, 0, 1, 1], [], []>} : vector<16x32xbf16>, vector<32x64xbf16>, vector<16x64xf32> -> vector<16x64xf32>
    %c0_3 = arith.constant 0 : index
    %c0_4 = arith.constant 0 : index
    %4 = vector.load %arg3[%c0_3, %c0_4] : memref<1x64xf32, #tpu.memory_space<vmem>>, vector<1x64xf32>
    %5 = vector.broadcast %4 : vector<1x64xf32> to vector<16x64xf32>
    %6 = arith.addf %3, %5 : vector<16x64xf32>
    %7 = arith.truncf %6 : vector<16x64xf32> to vector<16x64xbf16>
    %c0_5 = arith.constant 0 : index
    %c0_6 = arith.constant 0 : index
    %8 = vector.load %arg4[%c0_5, %c0_6] : memref<16x64xbf16, #tpu.memory_space<vmem>>, vector<16x64xbf16>
    tpu.vector_store %arg4[%c0_5, %c0_6], %7 {strides = array<i32>} : memref<16x64xbf16, #tpu.memory_space<vmem>>, vector<16x64xbf16>,
    return
  }
  func.func @transform_0(%arg0: i32) -> (i32, i32) {
    %c0_i32 = arith.constant 0 : i32
    %c0_i32_0 = arith.constant 0 : i32
    return %arg0, %c0_i32 : i32, i32
  }
  func.func @transform_1(%arg0: i32) -> (i32, i32) {
    %c0_i32 = arith.constant 0 : i32
    %c0_i32_0 = arith.constant 0 : i32
    %c0_i32_1 = arith.constant 0 : i32
    return %c0_i32, %c0_i32_0 : i32, i32
  }
  func.func @transform_2(%arg0: i32) -> (i32, i32) {
    %c0_i32 = arith.constant 0 : i32
    %c0_i32_0 = arith.constant 0 : i32
    %c0_i32_1 = arith.constant 0 : i32
    return %c0_i32, %c0_i32_0 : i32, i32
  }
  func.func @transform_3(%arg0: i32) -> (i32, i32) {
    %c0_i32 = arith.constant 0 : i32
    %c0_i32_0 = arith.constant 0 : i32
    return %arg0, %c0_i32 : i32, i32
  }
}

module attributes {stable_mosaic.version = 11 : i64} {
  func.func @_cross_attn_kernel(%arg0: i32, %arg1: i32, %arg2: i32, %arg3: memref<1x1x8x8xbf16, #tpu.memory_space<vmem>>, %arg4: memref<1x1x8x8xbf16, #tpu.memory_space<vmem>>, %arg5: memref<1x1x8x8xbf16, #tpu.memory_space<vmem>>, %arg6: memref<1x1x8xf32, #tpu.memory_space<vmem>>, %arg7: memref<1x8x32xf32, #tpu.memory_space<vmem>>, %arg8: memref<8x32xbf16, #tpu.memory_space<vmem>>, %arg9: memref<1x32xf32, #tpu.memory_space<vmem>>, %arg10: memref<1x8x32xf32, #tpu.memory_space<vmem>>) attributes {dimension_semantics = [#tpu.dimension_semantics<parallel>, #tpu.dimension_semantics<parallel>, #tpu.dimension_semantics<arbitrary>], iteration_bounds = array<i64: 2, 1, 4>, scalar_prefetch = 0 : i64, scratch_operands = 0 : i64, tpu.core_type = #tpu.core_type<tc>, window_params = [{transform_indices = @transform_0, window_bounds = array<i64: 1, 1, 8, 8>}, {transform_indices = @transform_1, window_bounds = array<i64: 1, 1, 8, 8>}, {transform_indices = @transform_2, window_bounds = array<i64: 1, 1, 8, 8>}, {transform_indices = @transform_3, window_bounds = array<i64: 1, 1, 8>}, {transform_indices = @transform_4, window_bounds = array<i64: 1, 8, 32>}, {transform_indices = @transform_5, window_bounds = array<i64: 8, 32>}, {pipeline_mode = #tpu.pipeline_mode<synchronous>, transform_indices = @transform_6, window_bounds = array<i64: 1, 32>}, {transform_indices = @transform_7, window_bounds = array<i64: 1, 8, 32>}]} {
    %c0_i32 = arith.constant 0 : i32
    %0 = arith.cmpi eq, %arg2, %c0_i32 : i32
    %1 = arith.extui %0 : i1 to i32
    %c0_i32_0 = arith.constant 0 : i32
    %2 = arith.cmpi ne, %1, %c0_i32_0 : i32
    scf.if %2 {
      %c0_28 = arith.constant 0 : index
      %c0_29 = arith.constant 0 : index
      %c0_30 = arith.constant 0 : index
      %37 = vector.load %arg7[%c0_28, %c0_29, %c0_30] : memref<1x8x32xf32, #tpu.memory_space<vmem>>, vector<1x8x32xf32>
      %38 = vector.shape_cast %37 : vector<1x8x32xf32> to vector<8x32xf32>
      %c0_31 = arith.constant 0 : index
      %c0_32 = arith.constant 0 : index
      %39 = vector.load %arg9[%c0_31, %c0_32] : memref<1x32xf32, #tpu.memory_space<vmem>>, vector<1x32xf32>
      %40 = vector.broadcast %39 : vector<1x32xf32> to vector<8x32xf32>
      %41 = arith.addf %38, %40 : vector<8x32xf32>
      %c0_33 = arith.constant 0 : index
      %c0_34 = arith.constant 0 : index
      %c0_35 = arith.constant 0 : index
      %42 = vector.load %arg10[%c0_33, %c0_34, %c0_35] : memref<1x8x32xf32, #tpu.memory_space<vmem>>, vector<1x8x32xf32>
      %43 = vector.shape_cast %42 : vector<1x8x32xf32> to vector<8x32xf32>
      %44 = vector.shape_cast %41 : vector<8x32xf32> to vector<1x8x32xf32>
      tpu.vector_store %arg10[%c0_33, %c0_34, %c0_35], %44 {strides = array<i32>} : memref<1x8x32xf32, #tpu.memory_space<vmem>>, vector<1x8x32xf32>,
    } else {
    }
    %c0 = arith.constant 0 : index
    %c0_1 = arith.constant 0 : index
    %c0_2 = arith.constant 0 : index
    %c0_3 = arith.constant 0 : index
    %3 = vector.load %arg3[%c0, %c0_1, %c0_2, %c0_3] : memref<1x1x8x8xbf16, #tpu.memory_space<vmem>>, vector<1x1x8x8xbf16>
    %4 = vector.shape_cast %3 : vector<1x1x8x8xbf16> to vector<8x8xbf16>
    %c0_4 = arith.constant 0 : index
    %c0_5 = arith.constant 0 : index
    %c0_6 = arith.constant 0 : index
    %c0_7 = arith.constant 0 : index
    %5 = vector.load %arg4[%c0_4, %c0_5, %c0_6, %c0_7] : memref<1x1x8x8xbf16, #tpu.memory_space<vmem>>, vector<1x1x8x8xbf16>
    %6 = vector.shape_cast %5 : vector<1x1x8x8xbf16> to vector<8x8xbf16>
    %c0_8 = arith.constant 0 : index
    %c0_9 = arith.constant 0 : index
    %c0_10 = arith.constant 0 : index
    %c0_11 = arith.constant 0 : index
    %7 = vector.load %arg5[%c0_8, %c0_9, %c0_10, %c0_11] : memref<1x1x8x8xbf16, #tpu.memory_space<vmem>>, vector<1x1x8x8xbf16>
    %8 = vector.shape_cast %7 : vector<1x1x8x8xbf16> to vector<8x8xbf16>
    %cst = arith.constant dense<0.000000e+00> : vector<8x8xf32>
    %9 = tpu.matmul %4, %6, %cst {dimension_numbers = #tpu.dot_dimension_numbers<[1], [1], [0], [0], [0, 0, 1, 0], [], []>} : vector<8x8xbf16>, vector<8x8xbf16>, vector<8x8xf32> -> vector<8x8xf32>
    %cst_12 = arith.constant 0.353553385 : f32
    %10 = vector.broadcast %cst_12 : f32 to vector<8x8xf32>
    %11 = arith.mulf %9, %10 : vector<8x8xf32>
    %c0_13 = arith.constant 0 : index
    %c0_14 = arith.constant 0 : index
    %c0_15 = arith.constant 0 : index
    %12 = vector.load %arg6[%c0_13, %c0_14, %c0_15] : memref<1x1x8xf32, #tpu.memory_space<vmem>>, vector<1x1x8xf32>
    %13 = vector.shape_cast %12 : vector<1x1x8xf32> to vector<1x8xf32>
    %14 = vector.broadcast %13 : vector<1x8xf32> to vector<8x8xf32>
    %15 = arith.addf %11, %14 : vector<8x8xf32>
    %cst_16 = arith.constant dense<0xFF800000> : vector<8xf32>
    %16 = vector.multi_reduction <maximumf>, %15, %cst_16 [1] : vector<8x8xf32> to vector<8xf32>
    %17 = vector.shape_cast %16 : vector<8xf32> to vector<8x1xf32>
    %18 = vector.broadcast %17 : vector<8x1xf32> to vector<8x8xf32>
    %19 = arith.subf %15, %18 : vector<8x8xf32>
    %20 = math.exp %19 : vector<8x8xf32>
    %cst_17 = arith.constant dense<0.000000e+00> : vector<8xf32>
    %21 = vector.multi_reduction <add>, %20, %cst_17 [1] : vector<8x8xf32> to vector<8xf32>
    %22 = vector.shape_cast %21 : vector<8xf32> to vector<8x1xf32>
    %23 = tpu.reciprocal %22 {approx = true} : vector<8x1xf32> -> vector<8x1xf32>
    %24 = vector.broadcast %23 : vector<8x1xf32> to vector<8x8xf32>
    %25 = arith.mulf %20, %24 : vector<8x8xf32>
    %26 = arith.truncf %25 : vector<8x8xf32> to vector<8x8xbf16>
    %cst_18 = arith.constant dense<0.000000e+00> : vector<8x8xf32>
    %27 = tpu.matmul %26, %8, %cst_18 {dimension_numbers = #tpu.dot_dimension_numbers<[1], [0], [0], [1], [0, 0, 1, 1], [], []>} : vector<8x8xbf16>, vector<8x8xbf16>, vector<8x8xf32> -> vector<8x8xf32>
    %c0_19 = arith.constant 0 : index
    %c0_20 = arith.constant 0 : index
    %c0_21 = arith.constant 0 : index
    %28 = vector.load %arg10[%c0_19, %c0_20, %c0_21] : memref<1x8x32xf32, #tpu.memory_space<vmem>>, vector<1x8x32xf32>
    %29 = vector.shape_cast %28 : vector<1x8x32xf32> to vector<8x32xf32>
    %30 = arith.truncf %27 : vector<8x8xf32> to vector<8x8xbf16>
    %c0_22 = arith.constant 0 : index
    %c0_23 = arith.constant 0 : index
    %31 = vector.load %arg8[%c0_22, %c0_23] : memref<8x32xbf16, #tpu.memory_space<vmem>>, vector<8x32xbf16>
    %cst_24 = arith.constant dense<0.000000e+00> : vector<8x32xf32>
    %32 = tpu.matmul %30, %31, %cst_24 {dimension_numbers = #tpu.dot_dimension_numbers<[1], [0], [0], [1], [0, 0, 1, 1], [], []>} : vector<8x8xbf16>, vector<8x32xbf16>, vector<8x32xf32> -> vector<8x32xf32>
    %33 = arith.addf %29, %32 : vector<8x32xf32>
    %c0_25 = arith.constant 0 : index
    %c0_26 = arith.constant 0 : index
    %c0_27 = arith.constant 0 : index
    %34 = vector.load %arg10[%c0_25, %c0_26, %c0_27] : memref<1x8x32xf32, #tpu.memory_space<vmem>>, vector<1x8x32xf32>
    %35 = vector.shape_cast %34 : vector<1x8x32xf32> to vector<8x32xf32>
    %36 = vector.shape_cast %33 : vector<8x32xf32> to vector<1x8x32xf32>
    tpu.vector_store %arg10[%c0_25, %c0_26, %c0_27], %36 {strides = array<i32>} : memref<1x8x32xf32, #tpu.memory_space<vmem>>, vector<1x8x32xf32>,
    return
  }
  func.func @transform_0(%arg0: i32, %arg1: i32, %arg2: i32) -> (i32, i32, i32, i32) {
    %c0_i32 = arith.constant 0 : i32
    %c0_i32_0 = arith.constant 0 : i32
    return %arg0, %arg2, %arg1, %c0_i32 : i32, i32, i32, i32
  }
  func.func @transform_1(%arg0: i32, %arg1: i32, %arg2: i32) -> (i32, i32, i32, i32) {
    %c0_i32 = arith.constant 0 : i32
    %c0_i32_0 = arith.constant 0 : i32
    %c0_i32_1 = arith.constant 0 : i32
    return %arg0, %arg2, %c0_i32, %c0_i32_0 : i32, i32, i32, i32
  }
  func.func @transform_2(%arg0: i32, %arg1: i32, %arg2: i32) -> (i32, i32, i32, i32) {
    %c0_i32 = arith.constant 0 : i32
    %c0_i32_0 = arith.constant 0 : i32
    %c0_i32_1 = arith.constant 0 : i32
    return %arg0, %arg2, %c0_i32, %c0_i32_0 : i32, i32, i32, i32
  }
  func.func @transform_3(%arg0: i32, %arg1: i32, %arg2: i32) -> (i32, i32, i32) {
    %c0_i32 = arith.constant 0 : i32
    %c0_i32_0 = arith.constant 0 : i32
    %c0_i32_1 = arith.constant 0 : i32
    return %arg0, %c0_i32, %c0_i32_0 : i32, i32, i32
  }
  func.func @transform_4(%arg0: i32, %arg1: i32, %arg2: i32) -> (i32, i32, i32) {
    %c0_i32 = arith.constant 0 : i32
    %c0_i32_0 = arith.constant 0 : i32
    return %arg0, %arg1, %c0_i32 : i32, i32, i32
  }
  func.func @transform_5(%arg0: i32, %arg1: i32, %arg2: i32) -> (i32, i32) {
    %c0_i32 = arith.constant 0 : i32
    %c0_i32_0 = arith.constant 0 : i32
    return %arg2, %c0_i32 : i32, i32
  }
  func.func @transform_6(%arg0: i32, %arg1: i32, %arg2: i32) -> (i32, i32) {
    %c0_i32 = arith.constant 0 : i32
    %c0_i32_0 = arith.constant 0 : i32
    %c0_i32_1 = arith.constant 0 : i32
    return %c0_i32, %c0_i32_0 : i32, i32
  }
  func.func @transform_7(%arg0: i32, %arg1: i32, %arg2: i32) -> (i32, i32, i32) {
    %c0_i32 = arith.constant 0 : i32
    %c0_i32_0 = arith.constant 0 : i32
    return %arg0, %arg1, %c0_i32 : i32, i32, i32
  }
}

module attributes {stable_mosaic.version = 11 : i64} {
  func.func @_ffn_kernel(%arg0: i32, %arg1: i32, %arg2: memref<16x32xf32, #tpu.memory_space<vmem>>, %arg3: memref<32x64xbf16, #tpu.memory_space<vmem>>, %arg4: memref<1x64xf32, #tpu.memory_space<vmem>>, %arg5: memref<64x32xbf16, #tpu.memory_space<vmem>>, %arg6: memref<1x32xf32, #tpu.memory_space<vmem>>, %arg7: memref<16x32xf32, #tpu.memory_space<vmem>>, %arg8: memref<16x32xf32, #tpu.memory_space<vmem>>) attributes {dimension_semantics = [#tpu.dimension_semantics<parallel>, #tpu.dimension_semantics<arbitrary>], iteration_bounds = array<i64: 1, 1>, scalar_prefetch = 0 : i64, scratch_operands = 1 : i64, tpu.core_type = #tpu.core_type<tc>, window_params = [{transform_indices = @transform_0, window_bounds = array<i64: 16, 32>}, {transform_indices = @transform_1, window_bounds = array<i64: 32, 64>}, {transform_indices = @transform_2, window_bounds = array<i64: 1, 64>}, {transform_indices = @transform_3, window_bounds = array<i64: 64, 32>}, {pipeline_mode = #tpu.pipeline_mode<synchronous>, transform_indices = @transform_4, window_bounds = array<i64: 1, 32>}, {transform_indices = @transform_5, window_bounds = array<i64: 16, 32>}]} {
    %c0_i32 = arith.constant 0 : i32
    %0 = arith.cmpi eq, %arg1, %c0_i32 : i32
    %1 = arith.extui %0 : i1 to i32
    %c0_i32_0 = arith.constant 0 : i32
    %2 = arith.cmpi ne, %1, %c0_i32_0 : i32
    scf.if %2 {
      %cst_16 = arith.constant 0.000000e+00 : f32
      %21 = vector.broadcast %cst_16 : f32 to vector<16x32xf32>
      %c0_17 = arith.constant 0 : index
      %c0_18 = arith.constant 0 : index
      %22 = vector.load %arg8[%c0_17, %c0_18] : memref<16x32xf32, #tpu.memory_space<vmem>>, vector<16x32xf32>
      tpu.vector_store %arg8[%c0_17, %c0_18], %21 {strides = array<i32>} : memref<16x32xf32, #tpu.memory_space<vmem>>, vector<16x32xf32>,
    } else {
    }
    %c0 = arith.constant 0 : index
    %c0_1 = arith.constant 0 : index
    %3 = vector.load %arg2[%c0, %c0_1] : memref<16x32xf32, #tpu.memory_space<vmem>>, vector<16x32xf32>
    %4 = arith.truncf %3 : vector<16x32xf32> to vector<16x32xbf16>
    %c0_2 = arith.constant 0 : index
    %c0_3 = arith.constant 0 : index
    %5 = vector.load %arg3[%c0_2, %c0_3] : memref<32x64xbf16, #tpu.memory_space<vmem>>, vector<32x64xbf16>
    %cst = arith.constant dense<0.000000e+00> : vector<16x64xf32>
    %6 = tpu.matmul %4, %5, %cst {dimension_numbers = #tpu.dot_dimension_numbers<[1], [0], [0], [1], [0, 0, 1, 1], [], []>} : vector<16x32xbf16>, vector<32x64xbf16>, vector<16x64xf32> -> vector<16x64xf32>
    %c0_4 = arith.constant 0 : index
    %c0_5 = arith.constant 0 : index
    %7 = vector.load %arg4[%c0_4, %c0_5] : memref<1x64xf32, #tpu.memory_space<vmem>>, vector<1x64xf32>
    %8 = vector.broadcast %7 : vector<1x64xf32> to vector<16x64xf32>
    %9 = arith.addf %6, %8 : vector<16x64xf32>
    %cst_6 = arith.constant 0.000000e+00 : f32
    %10 = vector.broadcast %cst_6 : f32 to vector<16x64xf32>
    %11 = arith.maximumf %9, %10 : vector<16x64xf32>
    %c0_7 = arith.constant 0 : index
    %c0_8 = arith.constant 0 : index
    %12 = vector.load %arg8[%c0_7, %c0_8] : memref<16x32xf32, #tpu.memory_space<vmem>>, vector<16x32xf32>
    %13 = arith.truncf %11 : vector<16x64xf32> to vector<16x64xbf16>
    %c0_9 = arith.constant 0 : index
    %c0_10 = arith.constant 0 : index
    %14 = vector.load %arg5[%c0_9, %c0_10] : memref<64x32xbf16, #tpu.memory_space<vmem>>, vector<64x32xbf16>
    %cst_11 = arith.constant dense<0.000000e+00> : vector<16x32xf32>
    %15 = tpu.matmul %13, %14, %cst_11 {dimension_numbers = #tpu.dot_dimension_numbers<[1], [0], [0], [1], [0, 0, 1, 1], [], []>} : vector<16x64xbf16>, vector<64x32xbf16>, vector<16x32xf32> -> vector<16x32xf32>
    %16 = arith.addf %12, %15 : vector<16x32xf32>
    %c0_12 = arith.constant 0 : index
    %c0_13 = arith.constant 0 : index
    %17 = vector.load %arg8[%c0_12, %c0_13] : memref<16x32xf32, #tpu.memory_space<vmem>>, vector<16x32xf32>
    tpu.vector_store %arg8[%c0_12, %c0_13], %16 {strides = array<i32>} : memref<16x32xf32, #tpu.memory_space<vmem>>, vector<16x32xf32>,
    %c0_i32_14 = arith.constant 0 : i32
    %18 = arith.cmpi eq, %arg1, %c0_i32_14 : i32
    %19 = arith.extui %18 : i1 to i32
    %c0_i32_15 = arith.constant 0 : i32
    %20 = arith.cmpi ne, %19, %c0_i32_15 : i32
    scf.if %20 {
      %c0_16 = arith.constant 0 : index
      %c0_17 = arith.constant 0 : index
      %21 = vector.load %arg8[%c0_16, %c0_17] : memref<16x32xf32, #tpu.memory_space<vmem>>, vector<16x32xf32>
      %c0_18 = arith.constant 0 : index
      %c0_19 = arith.constant 0 : index
      %22 = vector.load %arg6[%c0_18, %c0_19] : memref<1x32xf32, #tpu.memory_space<vmem>>, vector<1x32xf32>
      %23 = vector.broadcast %22 : vector<1x32xf32> to vector<16x32xf32>
      %24 = arith.addf %21, %23 : vector<16x32xf32>
      %c0_20 = arith.constant 0 : index
      %c0_21 = arith.constant 0 : index
      %25 = vector.load %arg7[%c0_20, %c0_21] : memref<16x32xf32, #tpu.memory_space<vmem>>, vector<16x32xf32>
      tpu.vector_store %arg7[%c0_20, %c0_21], %24 {strides = array<i32>} : memref<16x32xf32, #tpu.memory_space<vmem>>, vector<16x32xf32>,
    } else {
    }
    return
  }
  func.func @transform_0(%arg0: i32, %arg1: i32) -> (i32, i32) {
    %c0_i32 = arith.constant 0 : i32
    %c0_i32_0 = arith.constant 0 : i32
    return %arg0, %c0_i32 : i32, i32
  }
  func.func @transform_1(%arg0: i32, %arg1: i32) -> (i32, i32) {
    %c0_i32 = arith.constant 0 : i32
    %c0_i32_0 = arith.constant 0 : i32
    return %c0_i32, %arg1 : i32, i32
  }
  func.func @transform_2(%arg0: i32, %arg1: i32) -> (i32, i32) {
    %c0_i32 = arith.constant 0 : i32
    %c0_i32_0 = arith.constant 0 : i32
    return %c0_i32, %arg1 : i32, i32
  }
  func.func @transform_3(%arg0: i32, %arg1: i32) -> (i32, i32) {
    %c0_i32 = arith.constant 0 : i32
    %c0_i32_0 = arith.constant 0 : i32
    return %arg1, %c0_i32 : i32, i32
  }
  func.func @transform_4(%arg0: i32, %arg1: i32) -> (i32, i32) {
    %c0_i32 = arith.constant 0 : i32
    %c0_i32_0 = arith.constant 0 : i32
    %c0_i32_1 = arith.constant 0 : i32
    return %c0_i32, %c0_i32_0 : i32, i32
  }
  func.func @transform_5(%arg0: i32, %arg1: i32) -> (i32, i32) {
    %c0_i32 = arith.constant 0 : i32
    %c0_i32_0 = arith.constant 0 : i32
    return %arg0, %c0_i32 : i32, i32
  }
}

module attributes {stable_mosaic.version = 11 : i64} {
  func.func @_ln_linear_kernel(%arg0: i32, %arg1: i32, %arg2: memref<16x32xf32, #tpu.memory_space<vmem>>, %arg3: memref<1x32xf32, #tpu.memory_space<vmem>>, %arg4: memref<1x32xf32, #tpu.memory_space<vmem>>, %arg5: memref<32x128xbf16, #tpu.memory_space<vmem>>, %arg6: memref<1x128xf32, #tpu.memory_space<vmem>>, %arg7: memref<16x128xf32, #tpu.memory_space<vmem>>) attributes {dimension_semantics = [#tpu.dimension_semantics<parallel>, #tpu.dimension_semantics<parallel>], iteration_bounds = array<i64: 1, 1>, scalar_prefetch = 0 : i64, scratch_operands = 0 : i64, tpu.core_type = #tpu.core_type<tc>, window_params = [{transform_indices = @transform_0, window_bounds = array<i64: 16, 32>}, {pipeline_mode = #tpu.pipeline_mode<synchronous>, transform_indices = @transform_1, window_bounds = array<i64: 1, 32>}, {pipeline_mode = #tpu.pipeline_mode<synchronous>, transform_indices = @transform_2, window_bounds = array<i64: 1, 32>}, {transform_indices = @transform_3, window_bounds = array<i64: 32, 128>}, {transform_indices = @transform_4, window_bounds = array<i64: 1, 128>}, {transform_indices = @transform_5, window_bounds = array<i64: 16, 128>}]} {
    %c0 = arith.constant 0 : index
    %c0_0 = arith.constant 0 : index
    %0 = vector.load %arg2[%c0, %c0_0] : memref<16x32xf32, #tpu.memory_space<vmem>>, vector<16x32xf32>
    %cst = arith.constant dense<0.000000e+00> : vector<16xf32>
    %1 = vector.multi_reduction <add>, %0, %cst [1] : vector<16x32xf32> to vector<16xf32>
    %2 = vector.shape_cast %1 : vector<16xf32> to vector<16x1xf32>
    %cst_1 = arith.constant 3.200000e+01 : f32
    %3 = vector.broadcast %cst_1 : f32 to vector<16x1xf32>
    %4 = arith.divf %2, %3 : vector<16x1xf32>
    %5 = vector.broadcast %4 : vector<16x1xf32> to vector<16x32xf32>
    %6 = arith.subf %0, %5 : vector<16x32xf32>
    %7 = arith.mulf %6, %6 : vector<16x32xf32>
    %cst_2 = arith.constant dense<0.000000e+00> : vector<16xf32>
    %8 = vector.multi_reduction <add>, %7, %cst_2 [1] : vector<16x32xf32> to vector<16xf32>
    %9 = vector.shape_cast %8 : vector<16xf32> to vector<16x1xf32>
    %cst_3 = arith.constant 3.200000e+01 : f32
    %10 = vector.broadcast %cst_3 : f32 to vector<16x1xf32>
    %11 = arith.divf %9, %10 : vector<16x1xf32>
    %cst_4 = arith.constant 9.99999974E-6 : f32
    %12 = vector.broadcast %cst_4 : f32 to vector<16x1xf32>
    %13 = arith.addf %11, %12 : vector<16x1xf32>
    %14 = math.rsqrt %13 : vector<16x1xf32>
    %15 = vector.broadcast %14 : vector<16x1xf32> to vector<16x32xf32>
    %16 = arith.mulf %6, %15 : vector<16x32xf32>
    %c0_5 = arith.constant 0 : index
    %c0_6 = arith.constant 0 : index
    %17 = vector.load %arg3[%c0_5, %c0_6] : memref<1x32xf32, #tpu.memory_space<vmem>>, vector<1x32xf32>
    %18 = vector.broadcast %17 : vector<1x32xf32> to vector<16x32xf32>
    %19 = arith.mulf %16, %18 : vector<16x32xf32>
    %c0_7 = arith.constant 0 : index
    %c0_8 = arith.constant 0 : index
    %20 = vector.load %arg4[%c0_7, %c0_8] : memref<1x32xf32, #tpu.memory_space<vmem>>, vector<1x32xf32>
    %21 = vector.broadcast %20 : vector<1x32xf32> to vector<16x32xf32>
    %22 = arith.addf %19, %21 : vector<16x32xf32>
    %23 = arith.truncf %22 : vector<16x32xf32> to vector<16x32xbf16>
    %c0_9 = arith.constant 0 : index
    %c0_10 = arith.constant 0 : index
    %24 = vector.load %arg5[%c0_9, %c0_10] : memref<32x128xbf16, #tpu.memory_space<vmem>>, vector<32x128xbf16>
    %cst_11 = arith.constant dense<0.000000e+00> : vector<16x128xf32>
    %25 = tpu.matmul %23, %24, %cst_11 {dimension_numbers = #tpu.dot_dimension_numbers<[1], [0], [0], [1], [0, 0, 1, 1], [], []>} : vector<16x32xbf16>, vector<32x128xbf16>, vector<16x128xf32> -> vector<16x128xf32>
    %c0_12 = arith.constant 0 : index
    %c0_13 = arith.constant 0 : index
    %26 = vector.load %arg6[%c0_12, %c0_13] : memref<1x128xf32, #tpu.memory_space<vmem>>, vector<1x128xf32>
    %27 = vector.broadcast %26 : vector<1x128xf32> to vector<16x128xf32>
    %28 = arith.addf %25, %27 : vector<16x128xf32>
    %c0_14 = arith.constant 0 : index
    %c0_15 = arith.constant 0 : index
    %29 = vector.load %arg7[%c0_14, %c0_15] : memref<16x128xf32, #tpu.memory_space<vmem>>, vector<16x128xf32>
    tpu.vector_store %arg7[%c0_14, %c0_15], %28 {strides = array<i32>} : memref<16x128xf32, #tpu.memory_space<vmem>>, vector<16x128xf32>,
    return
  }
  func.func @transform_0(%arg0: i32, %arg1: i32) -> (i32, i32) {
    %c0_i32 = arith.constant 0 : i32
    %c0_i32_0 = arith.constant 0 : i32
    return %arg0, %c0_i32 : i32, i32
  }
  func.func @transform_1(%arg0: i32, %arg1: i32) -> (i32, i32) {
    %c0_i32 = arith.constant 0 : i32
    %c0_i32_0 = arith.constant 0 : i32
    %c0_i32_1 = arith.constant 0 : i32
    return %c0_i32, %c0_i32_0 : i32, i32
  }
  func.func @transform_2(%arg0: i32, %arg1: i32) -> (i32, i32) {
    %c0_i32 = arith.constant 0 : i32
    %c0_i32_0 = arith.constant 0 : i32
    %c0_i32_1 = arith.constant 0 : i32
    return %c0_i32, %c0_i32_0 : i32, i32
  }
  func.func @transform_3(%arg0: i32, %arg1: i32) -> (i32, i32) {
    %c0_i32 = arith.constant 0 : i32
    %c0_i32_0 = arith.constant 0 : i32
    return %c0_i32, %arg1 : i32, i32
  }
  func.func @transform_4(%arg0: i32, %arg1: i32) -> (i32, i32) {
    %c0_i32 = arith.constant 0 : i32
    %c0_i32_0 = arith.constant 0 : i32
    return %c0_i32, %arg1 : i32, i32
  }
  func.func @transform_5(%arg0: i32, %arg1: i32) -> (i32, i32) {
    %c0_i32 = arith.constant 0 : i32
    return %arg0, %arg1 : i32, i32
  }
}

</mosaic_0001>

<llo_original>
// kernel: transformer_decoder_forward.15
$region0: #{transformer_decoder_forward.15}
  #allocation0 [shape = 'u32[]', space=smem, size = 0x4, offset = 0x4, fixed_abs, tag = 'smem constant byte address 0x4 - core index']
  #allocation1 [shape = 'u32[144,128]{1,0:T(1,128)}', space=vmem, size = 0x12000, scoped, tag = 'internal scratch']
  %s0 = inlined_call_operand.vmem [shape: f32[16,32], index: 0, kind: input, shape index: {}]
  %s1 = inlined_call_operand.vmem [shape: f32[1,32], index: 1, kind: input, shape index: {}]
  %s2 = inlined_call_operand.vmem [shape: f32[1,32], index: 2, kind: input, shape index: {}]
  %s3 = inlined_call_operand.vmem [shape: bf16[32,32], index: 3, kind: input, shape index: {}]
  %s4 = inlined_call_operand.vmem [shape: f32[1,32], index: 4, kind: input, shape index: {}]
  %s5 = inlined_call_operand.vmem [shape: bf16[16,32], index: 5, kind: output, shape index: {}]
  %s6 = sld [smem:[#allocation0]]
  $region30: #{transformer_decoder_forward.15} parent=0
    _
  %s8 = ssub.s32 1, %s6
  %s9 = scalar_select 0, %s8, %s6
  // Predicated region
  $region2: #{transformer_decoder_forward.15} parent=0 // pred_check
    _
  $region3: #{transformer_decoder_forward.15} parent=0 // pred_check_branch
    %11 = sbr.rel (0) target = $region5
  $region4: #{transformer_decoder_forward.15} parent=0 // pred_region
    _
  $region5: #{transformer_decoder_forward.15} parent=0 // pred_fallthru
    _
  // Predicated region
  $region6: #{transformer_decoder_forward.15} parent=0 // pred_check
    _
  $region7: #{transformer_decoder_forward.15} parent=0 // pred_check_branch
    %13 = sbr.rel (0) target = $region9
  $region8: #{transformer_decoder_forward.15} parent=0 // pred_region
    _
  $region9: #{transformer_decoder_forward.15} parent=0 // pred_fallthru
    _
  // Predicated region
  $region10: #{transformer_decoder_forward.15} parent=0 // pred_check
    _
  $region11: #{transformer_decoder_forward.15} parent=0 // pred_check_branch
    %15 = sbr.rel (0) target = $region13
  $region12: #{transformer_decoder_forward.15} parent=0 // pred_region
    _
  $region13: #{transformer_decoder_forward.15} parent=0 // pred_fallthru
    _
  // Predicated region
  $region14: #{transformer_decoder_forward.15} parent=0 // pred_check
    _
  $region15: #{transformer_decoder_forward.15} parent=0 // pred_check_branch
    %17 = sbr.rel (0) target = $region17
  $region16: #{transformer_decoder_forward.15} parent=0 // pred_region
    _
  $region17: #{transformer_decoder_forward.15} parent=0 // pred_fallthru
    _
  // Predicated region
  $region18: #{transformer_decoder_forward.15} parent=0 // pred_check
    _
  $region19: #{transformer_decoder_forward.15} parent=0 // pred_check_branch
    %19 = sbr.rel (0) target = $region21
  $region20: #{transformer_decoder_forward.15} parent=0 // pred_region
    _
  $region21: #{transformer_decoder_forward.15} parent=0 // pred_fallthru
    _
  %v21 = vld [vmem:[%s0] sm:$0xff]
  %v22 = vld [vmem:[%s0 + $0x8] sm:$0xff]
  %vm23 = vcmask 261120
  %v24 = vsel %vm23, %v21, 0.0
  %25 = vadd.xlane.f32.xlu0 %v24
  %v26 = vpop.xlane.xlu0 %25
  %v27 = vsel %vm23, %v22, 0.0
  %28 = vadd.xlane.f32.xlu0 %v27
  %v29 = vpop.xlane.xlu0 %28
  %v30 = vrcp.pop 32.0
  %v31 = vmul.f32 %v26, %v30
  %v32 = vmul.f32 %v29, %v30
  %v33 = vsub.f32 %v21, %v31
  %v34 = vsub.f32 %v22, %v32
  %v35 = vmul.f32 %v33, %v33
  %v36 = vmul.f32 %v34, %v34
  %v37 = vsel %vm23, %v35, 0.0
  %38 = vadd.xlane.f32.xlu0 %v37
  %v39 = vpop.xlane.xlu0 %38
  %v40 = vsel %vm23, %v36, 0.0
  %41 = vadd.xlane.f32.xlu0 %v40
  %v42 = vpop.xlane.xlu0 %41
  %v43 = vmul.f32 %v39, %v30
  %v44 = vmul.f32 %v42, %v30
  %v45 = vadd.f32 %v43, 1e-05
  %v46 = vadd.f32 %v44, 1e-05
  %v47 = vrsqrt.pop %v45
  %v48 = vrsqrt.pop %v46
  %v49 = vmul.f32 %v33, %v47
  %v50 = vmul.f32 %v34, %v48
  %v51 = vld [vmem:[%s1] sm:$0x1]
  %v53 = vlaneseq
  %v54 = vshrl.u32 %v53, 7
  %v55 = vsub.s32 0, %v54
  %v56 = vrot.slane %v51, %v55
  %v58 = vmul.f32 %v49, %v56
  %v59 = vmul.f32 %v50, %v56
  %v60 = vld [vmem:[%s2] sm:$0x1]
  %v62 = vlaneseq
  %v63 = vshrl.u32 %v62, 7
  %v64 = vsub.s32 0, %v63
  %v65 = vrot.slane %v60, %v64
  %v67 = vadd.f32 %v58, %v65
  %v68 = vadd.f32 %v59, %v65
  %v69 = vpack.c.bf16 %v68, %v67
  %v70 = vld [vmem:[%s3] sm:$0xf]
  %v71 = vld [vmem:[%s3 + $0x4] sm:$0xf]
  %v72 = vld [vmem:[%s3 + $0x8] sm:$0xf]
  %v73 = vld [vmem:[%s3 + $0xc] sm:$0xf]
  %v74 = vld [vmem:[%s4] sm:$0x1]
  %v76 = vlaneseq
  %v77 = vshrl.u32 %v76, 7
  %v78 = vsub.s32 0, %v77
  %v79 = vrot.slane %v74, %v78
  %v85 = vunpack.c.l.b16 %v70
  %v86 = vunpack.c.l.b16 %v71
  %v87 = vunpack.c.l.b16 %v72
  %v88 = vunpack.c.l.b16 %v73
  %v89 = vpack.c.b16 %v86, %v85
  %v90 = vpack.c.b16 %v88, %v87
  %v94 = vsel %vm23, %v69, 0
  %96 = vmatprep.subr.bf16.mxu0 0
  %97 = vmatpush1.bf16.msra.mxu0 %v89
  %98 = vmatprep.subr.bf16.mxu0 0
  %99 = vmatpush1.bf16.msra.mxu0 %v90
  %100 = vmatprep.subr.bf16.mxu0 0
  %101 = vmatpush1.bf16.msra.mxu0 0
  %102 = vmatprep.subr.bf16.mxu0 0
  %103 = vmatpush1.bf16.msra.mxu0 0
  %104 = vmatprep.subr.bf16.mxu0 0
  %105 = vmatpush1.bf16.msra.mxu0 0
  %106 = vmatprep.subr.bf16.mxu0 0
  %107 = vmatpush1.bf16.msra.mxu0 0
  %108 = vmatprep.subr.bf16.mxu0 0
  %109 = vmatpush1.bf16.msra.mxu0 0
  %110 = vmatprep.subr.bf16.mxu0 0
  %111 = vmatpush1.bf16.msra.mxu0 0
  %112 = vmatprep.subr.bf16.mxu0 0
  %113 = vmatpush1.bf16.msra.mxu0 0
  %114 = vmatprep.subr.bf16.mxu0 0
  %115 = vmatpush1.bf16.msra.mxu0 0
  %116 = vmatprep.subr.bf16.mxu0 0
  %117 = vmatpush1.bf16.msra.mxu0 0
  %118 = vmatprep.subr.bf16.mxu0 0
  %119 = vmatpush1.bf16.msra.mxu0 0
  %120 = vmatprep.subr.bf16.mxu0 0
  %121 = vmatpush1.bf16.msra.mxu0 0
  %122 = vmatprep.subr.bf16.mxu0 0
  %123 = vmatpush1.bf16.msra.mxu0 0
  %124 = vmatprep.subr.bf16.mxu0 0
  %125 = vmatpush1.bf16.msra.mxu0 0
  %126 = vmatprep.subr.bf16.mxu0 0
  %127 = vmatpush1.bf16.msra.mxu0 0
  %128 = vmatprep.mubr.bf16.mxu0 0
  %129 = vmatmul.mubr.bf16.gmra.mrb[0].mxu0 %v94
  %v130 = vpop.f32.mrb[0].mxu0
  %v131 = vadd.f32 %v79, %v130
  %v132 = vpop.f32.mrb[0].mxu0
  %v133 = vpop.f32.mrb[0].mxu0
  %v134 = vadd.f32 %v79, %v133
  %v135 = vpop.f32.mrb[0].mxu0
  %136 = vdwg.mxu0
  %v137 = vpack.c.bf16 %v134, %v131
  %v139 = vunpack.c.l.b16 %v137
  %v140 = vunpack.c.h.b16 %v137
  %v141 = vpack.c.b16 %v139, %v139
  %v142 = vpack.c.b16 %v140, %v140
  %vm145 = vcmask 257024
  %146 = vst.msk [vmem:[%s5] sm:$0xf] %vm145, %v141
  %147 = vst.msk [vmem:[%s5 + $0x4] sm:$0xf] %vm145, %v142
  // Predicated region
  $region22: #{transformer_decoder_forward.15} parent=0 // pred_check
    _
  $region23: #{transformer_decoder_forward.15} parent=0 // pred_check_branch
    %149 = sbr.rel (0) target = $region25
  $region24: #{transformer_decoder_forward.15} parent=0 // pred_region
    _
  $region25: #{transformer_decoder_forward.15} parent=0 // pred_fallthru
    _
  // Predicated region
  $region26: #{transformer_decoder_forward.15} parent=0 // pred_check
    _
  $region27: #{transformer_decoder_forward.15} parent=0 // pred_check_branch
    %151 = sbr.rel (0) target = $region29
  $region28: #{transformer_decoder_forward.15} parent=0 // pred_region
    _
  $region29: #{transformer_decoder_forward.15} parent=0 // pred_fallthru
    _

// kernel: transformer_decoder_forward.13
$region0: #{transformer_decoder_forward.13}
  #allocation0 [shape = 'u32[]', space=smem, size = 0x4, offset = 0x4, fixed_abs, tag = 'smem constant byte address 0x4 - core index']
  #allocation1 [shape = 'u32[144,128]{1,0:T(1,128)}', space=vmem, size = 0x12000, scoped, tag = 'internal scratch']
  %s0 = inlined_call_operand.vmem [shape: f32[16,32], index: 0, kind: input, shape index: {}]
  %s1 = inlined_call_operand.vmem [shape: f32[1,32], index: 1, kind: input, shape index: {}]
  %s2 = inlined_call_operand.vmem [shape: f32[1,32], index: 2, kind: input, shape index: {}]
  %s3 = inlined_call_operand.vmem [shape: bf16[32,96], index: 3, kind: input, shape index: {}]
  %s4 = inlined_call_operand.vmem [shape: f32[1,96], index: 4, kind: input, shape index: {}]
  %s5 = inlined_call_operand.vmem [shape: bf16[16,96], index: 5, kind: output, shape index: {}]
  %s6 = sld [smem:[#allocation0]]
  $region30: #{transformer_decoder_forward.13} parent=0
    _
  %s8 = ssub.s32 1, %s6
  %s9 = scalar_select 0, %s8, %s6
  // Predicated region
  $region2: #{transformer_decoder_forward.13} parent=0 // pred_check
    _
  $region3: #{transformer_decoder_forward.13} parent=0 // pred_check_branch
    %11 = sbr.rel (0) target = $region5
  $region4: #{transformer_decoder_forward.13} parent=0 // pred_region
    _
  $region5: #{transformer_decoder_forward.13} parent=0 // pred_fallthru
    _
  // Predicated region
  $region6: #{transformer_decoder_forward.13} parent=0 // pred_check
    _
  $region7: #{transformer_decoder_forward.13} parent=0 // pred_check_branch
    %13 = sbr.rel (0) target = $region9
  $region8: #{transformer_decoder_forward.13} parent=0 // pred_region
    _
  $region9: #{transformer_decoder_forward.13} parent=0 // pred_fallthru
    _
  // Predicated region
  $region10: #{transformer_decoder_forward.13} parent=0 // pred_check
    _
  $region11: #{transformer_decoder_forward.13} parent=0 // pred_check_branch
    %15 = sbr.rel (0) target = $region13
  $region12: #{transformer_decoder_forward.13} parent=0 // pred_region
    _
  $region13: #{transformer_decoder_forward.13} parent=0 // pred_fallthru
    _
  // Predicated region
  $region14: #{transformer_decoder_forward.13} parent=0 // pred_check
    _
  $region15: #{transformer_decoder_forward.13} parent=0 // pred_check_branch
    %17 = sbr.rel (0) target = $region17
  $region16: #{transformer_decoder_forward.13} parent=0 // pred_region
    _
  $region17: #{transformer_decoder_forward.13} parent=0 // pred_fallthru
    _
  // Predicated region
  $region18: #{transformer_decoder_forward.13} parent=0 // pred_check
    _
  $region19: #{transformer_decoder_forward.13} parent=0 // pred_check_branch
    %19 = sbr.rel (0) target = $region21
  $region20: #{transformer_decoder_forward.13} parent=0 // pred_region
    _
  $region21: #{transformer_decoder_forward.13} parent=0 // pred_fallthru
    _
  %v21 = vld [vmem:[%s0] sm:$0xff]
  %v22 = vld [vmem:[%s0 + $0x8] sm:$0xff]
  %vm23 = vcmask 261120
  %v24 = vsel %vm23, %v21, 0.0
  %25 = vadd.xlane.f32.xlu0 %v24
  %v26 = vpop.xlane.xlu0 %25
  %v27 = vsel %vm23, %v22, 0.0
  %28 = vadd.xlane.f32.xlu0 %v27
  %v29 = vpop.xlane.xlu0 %28
  %v30 = vrcp.pop 32.0
  %v31 = vmul.f32 %v26, %v30
  %v32 = vmul.f32 %v29, %v30
  %v33 = vsub.f32 %v21, %v31
  %v34 = vsub.f32 %v22, %v32
  %v35 = vmul.f32 %v33, %v33
  %v36 = vmul.f32 %v34, %v34
  %v37 = vsel %vm23, %v35, 0.0
  %38 = vadd.xlane.f32.xlu0 %v37
  %v39 = vpop.xlane.xlu0 %38
  %v40 = vsel %vm23, %v36, 0.0
  %41 = vadd.xlane.f32.xlu0 %v40
  %v42 = vpop.xlane.xlu0 %41
  %v43 = vmul.f32 %v39, %v30
  %v44 = vmul.f32 %v42, %v30
  %v45 = vadd.f32 %v43, 1e-05
  %v46 = vadd.f32 %v44, 1e-05
  %v47 = vrsqrt.pop %v45
  %v48 = vrsqrt.pop %v46
  %v49 = vmul.f32 %v33, %v47
  %v50 = vmul.f32 %v34, %v48
  %v51 = vld [vmem:[%s1] sm:$0x1]
  %v53 = vlaneseq
  %v54 = vshrl.u32 %v53, 7
  %v55 = vsub.s32 0, %v54
  %v56 = vrot.slane %v51, %v55
  %v58 = vmul.f32 %v49, %v56
  %v59 = vmul.f32 %v50, %v56
  %v60 = vld [vmem:[%s2] sm:$0x1]
  %v62 = vlaneseq
  %v63 = vshrl.u32 %v62, 7
  %v64 = vsub.s32 0, %v63
  %v65 = vrot.slane %v60, %v64
  %v67 = vadd.f32 %v58, %v65
  %v68 = vadd.f32 %v59, %v65
  %v69 = vpack.c.bf16 %v68, %v67
  %v70 = vld [vmem:[%s3] sm:$0xf]
  %v71 = vld [vmem:[%s3 + $0x4] sm:$0xf]
  %v72 = vld [vmem:[%s3 + $0x8] sm:$0xf]
  %v73 = vld [vmem:[%s3 + $0xc] sm:$0xf]
  %v74 = vld [vmem:[%s4] sm:$0x1]
  %v76 = vlaneseq
  %v77 = vshrl.u32 %v76, 7
  %v78 = vsub.s32 0, %v77
  %v79 = vrot.slane %v74, %v78
  %v85 = vunpack.c.l.b16 %v70
  %v86 = vunpack.c.l.b16 %v71
  %v87 = vunpack.c.l.b16 %v72
  %v88 = vunpack.c.l.b16 %v73
  %v89 = vpack.c.b16 %v86, %v85
  %v90 = vpack.c.b16 %v88, %v87
  %v94 = vsel %vm23, %v69, 0
  %96 = vmatprep.subr.bf16.mxu0 0
  %97 = vmatpush1.bf16.msra.mxu0 %v89
  %98 = vmatprep.subr.bf16.mxu0 0
  %99 = vmatpush1.bf16.msra.mxu0 %v90
  %100 = vmatprep.subr.bf16.mxu0 0
  %101 = vmatpush1.bf16.msra.mxu0 0
  %102 = vmatprep.subr.bf16.mxu0 0
  %103 = vmatpush1.bf16.msra.mxu0 0
  %104 = vmatprep.subr.bf16.mxu0 0
  %105 = vmatpush1.bf16.msra.mxu0 0
  %106 = vmatprep.subr.bf16.mxu0 0
  %107 = vmatpush1.bf16.msra.mxu0 0
  %108 = vmatprep.subr.bf16.mxu0 0
  %109 = vmatpush1.bf16.msra.mxu0 0
  %110 = vmatprep.subr.bf16.mxu0 0
  %111 = vmatpush1.bf16.msra.mxu0 0
  %112 = vmatprep.subr.bf16.mxu0 0
  %113 = vmatpush1.bf16.msra.mxu0 0
  %114 = vmatprep.subr.bf16.mxu0 0
  %115 = vmatpush1.bf16.msra.mxu0 0
  %116 = vmatprep.subr.bf16.mxu0 0
  %117 = vmatpush1.bf16.msra.mxu0 0
  %118 = vmatprep.subr.bf16.mxu0 0
  %119 = vmatpush1.bf16.msra.mxu0 0
  %120 = vmatprep.subr.bf16.mxu0 0
  %121 = vmatpush1.bf16.msra.mxu0 0
  %122 = vmatprep.subr.bf16.mxu0 0
  %123 = vmatpush1.bf16.msra.mxu0 0
  %124 = vmatprep.subr.bf16.mxu0 0
  %125 = vmatpush1.bf16.msra.mxu0 0
  %126 = vmatprep.subr.bf16.mxu0 0
  %127 = vmatpush1.bf16.msra.mxu0 0
  %128 = vmatprep.mubr.bf16.mxu0 0
  %129 = vmatmul.mubr.bf16.gmra.mrb[0].mxu0 %v94
  %v130 = vpop.f32.mrb[0].mxu0
  %v131 = vadd.f32 %v79, %v130
  %v132 = vpop.f32.mrb[0].mxu0
  %v133 = vpop.f32.mrb[0].mxu0
  %v134 = vadd.f32 %v79, %v133
  %v135 = vpop.f32.mrb[0].mxu0
  %136 = vdwg.mxu0
  %v137 = vpack.c.bf16 %v134, %v131
  %v139 = vunpack.c.l.b16 %v137
  %v140 = vunpack.c.h.b16 %v137
  %v141 = vpack.c.b16 %v139, %v139
  %v142 = vpack.c.b16 %v140, %v140
  %vm145 = vcmask 781312
  %146 = vst.msk [vmem:[%s5] sm:$0xf] %vm145, %v141
  %147 = vst.msk [vmem:[%s5 + $0x4] sm:$0xf] %vm145, %v142
  // Predicated region
  $region22: #{transformer_decoder_forward.13} parent=0 // pred_check
    _
  $region23: #{transformer_decoder_forward.13} parent=0 // pred_check_branch
    %149 = sbr.rel (0) target = $region25
  $region24: #{transformer_decoder_forward.13} parent=0 // pred_region
    _
  $region25: #{transformer_decoder_forward.13} parent=0 // pred_fallthru
    _
  // Predicated region
  $region26: #{transformer_decoder_forward.13} parent=0 // pred_check
    _
  $region27: #{transformer_decoder_forward.13} parent=0 // pred_check_branch
    %151 = sbr.rel (0) target = $region29
  $region28: #{transformer_decoder_forward.13} parent=0 // pred_region
    _
  $region29: #{transformer_decoder_forward.13} parent=0 // pred_fallthru
    _

// kernel: transformer_decoder_forward.14
$region0: #{transformer_decoder_forward.14}
  #allocation0 [shape = 'u32[]', space=smem, size = 0x4, offset = 0x4, fixed_abs, tag = 'smem constant byte address 0x4 - core index']
  #allocation1 [shape = 'u32[144,128]{1,0:T(1,128)}', space=vmem, size = 0x12000, scoped, tag = 'internal scratch']
  %s0 = inlined_call_operand.vmem [shape: bf16[2,4,8,8], index: 0, kind: input, shape index: {}]
  %s1 = inlined_call_operand.vmem [shape: bf16[2,4,8,8], index: 1, kind: input, shape index: {}]
  %s2 = inlined_call_operand.vmem [shape: bf16[2,4,8,8], index: 2, kind: input, shape index: {}]
  %s3 = inlined_call_operand.vmem [shape: f32[2,8,32], index: 3, kind: input, shape index: {}]
  %s4 = inlined_call_operand.vmem [shape: bf16[32,32], index: 4, kind: input, shape index: {}]
  %s5 = inlined_call_operand.vmem [shape: f32[1,32], index: 5, kind: input, shape index: {}]
  %s6 = inlined_call_operand.vmem [shape: f32[2,8,32], index: 6, kind: output, shape index: {}]
  %s7 = sld [smem:[#allocation0]]
  $region61: #{transformer_decoder_forward.14} parent=0
    _
  %s9 = ssub.s32 1, %s7
  %s10 = scalar_select 0, %s9, %s7
  loop: start=0, step=1, limit=10
  $region2: #{transformer_decoder_forward.14} parent=0 // loop_pre_header
    _
  $region3: #{transformer_decoder_forward.14} parent=0 // loop_header
    %s12 = sphi 0, %s16
    %p13 = scmp.ge.s32.totalorder %s12, 10
    %s19 = sphi 0, %s38
    %s20 = sphi 0, %s34
    %s21 = sphi 0, %s30
    %s22 = sphi 0, %s19
    %s23 = sphi 0, %s20
    %s24 = sphi 0, %s21
    %s25 = sphi 0, %s22
    %s26 = sphi 0, %s23
    %s27 = sphi 0, %s24
    %s45 = sphi 0, %s47
    %s48 = sphi 0, %s45
    %s49 = sphi 0, %s48
    %s65 = sphi 0, %s49
    %s73 = sphi 0, %s75
    %s76 = sphi 0, %s73
    %s77 = sphi 0, %s76
    %s93 = sphi 0, %s77
    %s101 = sphi 0, %s103
    %s104 = sphi 0, %s101
    %s105 = sphi 0, %s104
    %s121 = sphi 0, %s105
    %s129 = sphi 0, %s131
    %s132 = sphi 0, %s129
    %s133 = sphi 0, %s132
    %s149 = sphi 0, %s133
    %s155 = sphi 0, %s157
    %s158 = sphi 0, %s155
    %s159 = sphi 0, %s158
    %s175 = sphi 0, %s159
    %s179 = sphi 0, %s179
    %s181 = sphi 0, %s179
    %s182 = sphi 0, %s181
    %s196 = sphi 0, %s182
    %s204 = sphi 0, %s206
    %s207 = sphi 0, %s204
    %s208 = sphi 0, %s207
    %s224 = sphi 0, %s208
  $region4: #{transformer_decoder_forward.14} parent=0 // loop_header_branch
    %15 = sbr.rel (%p13) target = $region8
  $region5: #{transformer_decoder_forward.14} parent=0 // loop_body
    %s17 = ssub.s32 %s12, 1
    %s18 = ssub.s32 %s12, 2
    %s28 = sadd.s32 1, %s21
    %p29 = scmp.ge.s32.totalorder %s28, 4
    %s30 = scalar_select %p29, 0, %s28
    %s31 = sadd.s32 1, %s20
    %s32 = scalar_select %p29, %s31, %s20
    %p33 = scmp.ge.s32.totalorder %s32, 1
    %s34 = scalar_select %p33, 0, %s32
    %s35 = sadd.s32 1, %s19
    %s36 = scalar_select %p33, %s35, %s19
    %p37 = scmp.ge.s32.totalorder %s36, 2
    %s38 = scalar_select %p37, 0, %s36
    %s39 = ssub.s32 %s19, %s38
    %s40 = ssub.s32 %s21, %s30
    %s41 = sor.u32 %s39, %s40
    %s42 = ssub.s32 %s20, %s34
    %s43 = sor.u32 %s41, %s42
    %p44 = scmp.eq.s32.totalorder %s43, 0
    %s46 = sadd.s32 %s45, 1
    %s47 = scalar_select %p44, %s45, %s46
    %p50 = pneg %p44
    %p51 = scmp.eq.s32.totalorder %s12, 7
    %p52 = por %p50, %p51
    %p53 = scmp.ne.s32.totalorder %s45, %s48
    %p54 = scmp.eq.s32.totalorder %s12, 0
    %p55 = por %p53, %p54
    %p56 = scmp.ne.s32.totalorder %s45, %s48
    %p57 = scmp.eq.s32.totalorder %s17, 7
    %p58 = por %p56, %p57
    %p59 = scmp.ne.s32.totalorder %s48, %s49
    %p60 = scmp.eq.s32.totalorder %s17, 0
    %p61 = por %p59, %p60
    %p62 = scmp.ne.s32.totalorder %s48, %s49
    %p63 = scmp.eq.s32.totalorder %s18, 7
    %p64 = por %p62, %p63
    %p66 = scmp.ne.s32.totalorder %s49, %s65
    %p67 = scmp.eq.s32.totalorder %s18, 0
    %p68 = por %p66, %p67
    %s69 = ssub.s32 %s19, %s38
    %s70 = ssub.s32 %s21, %s30
    %s71 = sor.u32 %s69, %s70
    %p72 = scmp.eq.s32.totalorder %s71, 0
    %s74 = sadd.s32 %s73, 1
    %s75 = scalar_select %p72, %s73, %s74
    %p78 = pneg %p72
    %p79 = scmp.eq.s32.totalorder %s12, 7
    %p80 = por %p78, %p79
    %p81 = scmp.ne.s32.totalorder %s73, %s76
    %p82 = scmp.eq.s32.totalorder %s12, 0
    %p83 = por %p81, %p82
    %p84 = scmp.ne.s32.totalorder %s73, %s76
    %p85 = scmp.eq.s32.totalorder %s17, 7
    %p86 = por %p84, %p85
    %p87 = scmp.ne.s32.totalorder %s76, %s77
    %p88 = scmp.eq.s32.totalorder %s17, 0
    %p89 = por %p87, %p88
    %p90 = scmp.ne.s32.totalorder %s76, %s77
    %p91 = scmp.eq.s32.totalorder %s18, 7
    %p92 = por %p90, %p91
    %p94 = scmp.ne.s32.totalorder %s77, %s93
    %p95 = scmp.eq.s32.totalorder %s18, 0
    %p96 = por %p94, %p95
    %s97 = ssub.s32 %s19, %s38
    %s98 = ssub.s32 %s21, %s30
    %s99 = sor.u32 %s97, %s98
    %p100 = scmp.eq.s32.totalorder %s99, 0
    %s102 = sadd.s32 %s101, 1
    %s103 = scalar_select %p100, %s101, %s102
    %p106 = pneg %p100
    %p107 = scmp.eq.s32.totalorder %s12, 7
    %p108 = por %p106, %p107
    %p109 = scmp.ne.s32.totalorder %s101, %s104
    %p110 = scmp.eq.s32.totalorder %s12, 0
    %p111 = por %p109, %p110
    %p112 = scmp.ne.s32.totalorder %s101, %s104
    %p113 = scmp.eq.s32.totalorder %s17, 7
    %p114 = por %p112, %p113
    %p115 = scmp.ne.s32.totalorder %s104, %s105
    %p116 = scmp.eq.s32.totalorder %s17, 0
    %p117 = por %p115, %p116
    %p118 = scmp.ne.s32.totalorder %s104, %s105
    %p119 = scmp.eq.s32.totalorder %s18, 7
    %p120 = por %p118, %p119
    %p122 = scmp.ne.s32.totalorder %s105, %s121
    %p123 = scmp.eq.s32.totalorder %s18, 0
    %p124 = por %p122, %p123
    %s125 = ssub.s32 %s19, %s38
    %s126 = ssub.s32 %s20, %s34
    %s127 = sor.u32 %s125, %s126
    %p128 = scmp.eq.s32.totalorder %s127, 0
    %s130 = sadd.s32 %s129, 1
    %s131 = scalar_select %p128, %s129, %s130
    %p134 = pneg %p128
    %p135 = scmp.eq.s32.totalorder %s12, 7
    %p136 = por %p134, %p135
    %p137 = scmp.ne.s32.totalorder %s129, %s132
    %p138 = scmp.eq.s32.totalorder %s12, 0
    %p139 = por %p137, %p138
    %p140 = scmp.ne.s32.totalorder %s129, %s132
    %p141 = scmp.eq.s32.totalorder %s17, 7
    %p142 = por %p140, %p141
    %p143 = scmp.ne.s32.totalorder %s132, %s133
    %p144 = scmp.eq.s32.totalorder %s17, 0
    %p145 = por %p143, %p144
    %p146 = scmp.ne.s32.totalorder %s132, %s133
    %p147 = scmp.eq.s32.totalorder %s18, 7
    %p148 = por %p146, %p147
    %p150 = scmp.ne.s32.totalorder %s133, %s149
    %p151 = scmp.eq.s32.totalorder %s18, 0
    %p152 = por %p150, %p151
    %s153 = ssub.s32 %s21, %s30
    %p154 = scmp.eq.s32.totalorder %s153, 0
    %s156 = sadd.s32 %s155, 1
    %s157 = scalar_select %p154, %s155, %s156
    %p160 = pneg %p154
    %p161 = scmp.eq.s32.totalorder %s12, 7
    %p162 = por %p160, %p161
    %p163 = scmp.ne.s32.totalorder %s155, %s158
    %p164 = scmp.eq.s32.totalorder %s12, 0
    %p165 = por %p163, %p164
    %p166 = scmp.ne.s32.totalorder %s155, %s158
    %p167 = scmp.eq.s32.totalorder %s17, 7
    %p168 = por %p166, %p167
    %p169 = scmp.ne.s32.totalorder %s158, %s159
    %p170 = scmp.eq.s32.totalorder %s17, 0
    %p171 = por %p169, %p170
    %p172 = scmp.ne.s32.totalorder %s158, %s159
    %p173 = scmp.eq.s32.totalorder %s18, 7
    %p174 = por %p172, %p173
    %p176 = scmp.ne.s32.totalorder %s159, %s175
    %p177 = scmp.eq.s32.totalorder %s18, 0
    %p178 = por %p176, %p177
    %s180 = sadd.s32 %s179, 1
    %p183 = scmp.eq.s32.totalorder %s12, 7
    %p184 = scmp.ne.s32.totalorder %s179, %s181
    %p185 = scmp.eq.s32.totalorder %s12, 0
    %p186 = por %p184, %p185
    %p187 = scmp.ne.s32.totalorder %s179, %s181
    %p188 = scmp.eq.s32.totalorder %s17, 7
    %p189 = por %p187, %p188
    %p190 = scmp.ne.s32.totalorder %s181, %s182
    %p191 = scmp.eq.s32.totalorder %s17, 0
    %p192 = por %p190, %p191
    %p193 = scmp.ne.s32.totalorder %s181, %s182
    %p194 = scmp.eq.s32.totalorder %s18, 7
    %p195 = por %p193, %p194
    %p197 = scmp.ne.s32.totalorder %s182, %s196
    %p198 = scmp.eq.s32.totalorder %s18, 0
    %p199 = por %p197, %p198
    %s200 = ssub.s32 %s19, %s38
    %s201 = ssub.s32 %s20, %s34
    %s202 = sor.u32 %s200, %s201
    %p203 = scmp.eq.s32.totalorder %s202, 0
    %s205 = sadd.s32 %s204, 1
    %s206 = scalar_select %p203, %s204, %s205
    %p209 = pneg %p203
    %p210 = scmp.eq.s32.totalorder %s12, 7
    %p211 = por %p209, %p210
    %p212 = scmp.ne.s32.totalorder %s204, %s207
    %p213 = scmp.eq.s32.totalorder %s12, 0
    %p214 = por %p212, %p213
    %p215 = scmp.ne.s32.totalorder %s204, %s207
    %p216 = scmp.eq.s32.totalorder %s17, 7
    %p217 = por %p215, %p216
    %p218 = scmp.ne.s32.totalorder %s207, %s208
    %p219 = scmp.eq.s32.totalorder %s17, 0
    %p220 = por %p218, %p219
    %p221 = scmp.ne.s32.totalorder %s207, %s208
    %p222 = scmp.eq.s32.totalorder %s18, 7
    %p223 = por %p221, %p222
    %p225 = scmp.ne.s32.totalorder %s208, %s224
    %p226 = scmp.eq.s32.totalorder %s18, 0
    %p227 = por %p225, %p226
    %p228 = scmp.le.s32.totalorder 1, %s12
    %p229 = scmp.lt.s32.totalorder %s12, 9
    %p230 = pnand %p228, %p229
    %p231 = pneg %p230
    // Predicated region
    $region9: #{transformer_decoder_forward.14} parent=5 // pred_check
      _
    $region10: #{transformer_decoder_forward.14} parent=5 // pred_check_branch
      %233 = sbr.rel (%p230) target = $region12
    $region11: #{transformer_decoder_forward.14} parent=5 // pred_region
      %s234 = ssub.s32 %s12, 1
      // Predicated region
      $region13: #{transformer_decoder_forward.14} parent=11 // pred_check
        %p235 = pneg %p192
      $region14: #{transformer_decoder_forward.14} parent=11 // pred_check_branch
        %237 = sbr.rel (%p235) target = $region16
      $region15: #{transformer_decoder_forward.14} parent=11 // pred_region
        _
      $region16: #{transformer_decoder_forward.14} parent=11 // pred_fallthru
        _
    $region12: #{transformer_decoder_forward.14} parent=5 // pred_fallthru
      _
    %p238 = scmp.lt.s32.totalorder %s12, 8
    // Predicated region
    $region17: #{transformer_decoder_forward.14} parent=5 // pred_check
      %p239 = pneg %p238
    $region18: #{transformer_decoder_forward.14} parent=5 // pred_check_branch
      %241 = sbr.rel (%p239) target = $region20
    $region19: #{transformer_decoder_forward.14} parent=5 // pred_region
      // Predicated region
      $region21: #{transformer_decoder_forward.14} parent=19 // pred_check
        %p242 = pneg %p55
      $region22: #{transformer_decoder_forward.14} parent=19 // pred_check_branch
        %244 = sbr.rel (%p242) target = $region24
      $region23: #{transformer_decoder_forward.14} parent=19 // pred_region
        %p245 = scmp.lt.s32.totalorder %s19, 1
        %s246 = scalar_select %p245, %s19, 1
        %p247 = scmp.lt.s32.totalorder %s21, 3
        %s248 = scalar_select %p247, %s21, 3
        %p249 = scmp.lt.s32.totalorder %s20, 0
        %s250 = scalar_select %p249, %s20, 0
        %s251 = sadd.s32 %s250, %s248
        %s252 = smul.addr %s246, 4
        %s253 = sadd.s32 %s251, %s252
        %s254 = smul.addr %s253, 4
        %s255 = scalar_lea.vmem %s0, %s254
      $region24: #{transformer_decoder_forward.14} parent=19 // pred_fallthru
        _
      // Predicated region
      $region25: #{transformer_decoder_forward.14} parent=19 // pred_check
        %p256 = pneg %p83
      $region26: #{transformer_decoder_forward.14} parent=19 // pred_check_branch
        %258 = sbr.rel (%p256) target = $region28
      $region27: #{transformer_decoder_forward.14} parent=19 // pred_region
        %p259 = scmp.lt.s32.totalorder %s19, 1
        %s260 = scalar_select %p259, %s19, 1
        %p261 = scmp.lt.s32.totalorder %s21, 3
        %s262 = scalar_select %p261, %s21, 3
        %s263 = smul.addr %s260, 4
        %s264 = sadd.s32 %s262, %s263
        %s265 = smul.addr %s264, 4
        %s266 = scalar_lea.vmem %s1, %s265
      $region28: #{transformer_decoder_forward.14} parent=19 // pred_fallthru
        _
      // Predicated region
      $region29: #{transformer_decoder_forward.14} parent=19 // pred_check
        %p267 = pneg %p111
      $region30: #{transformer_decoder_forward.14} parent=19 // pred_check_branch
        %269 = sbr.rel (%p267) target = $region32
      $region31: #{transformer_decoder_forward.14} parent=19 // pred_region
        %p270 = scmp.lt.s32.totalorder %s19, 1
        %s271 = scalar_select %p270, %s19, 1
        %p272 = scmp.lt.s32.totalorder %s21, 3
        %s273 = scalar_select %p272, %s21, 3
        %s274 = smul.addr %s271, 4
        %s275 = sadd.s32 %s273, %s274
        %s276 = smul.addr %s275, 4
        %s277 = scalar_lea.vmem %s2, %s276
      $region32: #{transformer_decoder_forward.14} parent=19 // pred_fallthru
        _
      // Predicated region
      $region33: #{transformer_decoder_forward.14} parent=19 // pred_check
        %p278 = pneg %p139
      $region34: #{transformer_decoder_forward.14} parent=19 // pred_check_branch
        %280 = sbr.rel (%p278) target = $region36
      $region35: #{transformer_decoder_forward.14} parent=19 // pred_region
        %p281 = scmp.lt.s32.totalorder %s19, 1
        %s282 = scalar_select %p281, %s19, 1
        %p283 = scmp.lt.s32.totalorder %s20, 0
        %s284 = scalar_select %p283, %s20, 0
        %s285 = sadd.s32 %s284, %s282
        %s286 = smul.addr %s285, 8
        %s287 = scalar_lea.vmem %s3, %s286
      $region36: #{transformer_decoder_forward.14} parent=19 // pred_fallthru
        _
      // Predicated region
      $region37: #{transformer_decoder_forward.14} parent=19 // pred_check
        %p288 = pneg %p165
      $region38: #{transformer_decoder_forward.14} parent=19 // pred_check_branch
        %290 = sbr.rel (%p288) target = $region40
      $region39: #{transformer_decoder_forward.14} parent=19 // pred_region
        %p291 = scmp.lt.s32.totalorder %s21, 3
        %s292 = scalar_select %p291, %s21, 3
        %s293 = smul.addr %s292, 4
        %s294 = scalar_lea.vmem %s4, %s293
      $region40: #{transformer_decoder_forward.14} parent=19 // pred_fallthru
        _
    $region20: #{transformer_decoder_forward.14} parent=5 // pred_fallthru
      _
    %p295 = scmp.le.s32.totalorder 1, %s12
    %p296 = scmp.lt.s32.totalorder %s12, 9
    %p297 = pnand %p295, %p296
    %p298 = pneg %p297
    // Predicated region
    $region41: #{transformer_decoder_forward.14} parent=5 // pred_check
      _
    $region42: #{transformer_decoder_forward.14} parent=5 // pred_check_branch
      %300 = sbr.rel (%p297) target = $region44
    $region43: #{transformer_decoder_forward.14} parent=5 // pred_region
      %s301 = ssub.s32 %s12, 1
      %p302 = scmp.lt.s32.totalorder %s22, 1
      %s303 = scalar_select %p302, %s22, 1
      %p304 = scmp.lt.s32.totalorder %s24, 3
      %s305 = scalar_select %p304, %s24, 3
      %p306 = scmp.lt.s32.totalorder %s23, 0
      %s307 = scalar_select %p306, %s23, 0
      %s308 = sadd.s32 %s307, %s305
      %s309 = smul.addr %s303, 4
      %s310 = sadd.s32 %s308, %s309
      %s311 = smul.addr %s310, 4
      %s312 = scalar_lea.vmem %s0, %s311
      %p313 = pneg %p61
      %p314 = pneg %p58
      %p315 = scmp.lt.s32.totalorder %s22, 1
      %s316 = scalar_select %p315, %s22, 1
      %p317 = scmp.lt.s32.totalorder %s24, 3
      %s318 = scalar_select %p317, %s24, 3
      %s319 = smul.addr %s316, 4
      %s320 = sadd.s32 %s318, %s319
      %s321 = smul.addr %s320, 4
      %s322 = scalar_lea.vmem %s1, %s321
      %p323 = pneg %p89
      %p324 = pneg %p86
      %p325 = scmp.lt.s32.totalorder %s22, 1
      %s326 = scalar_select %p325, %s22, 1
      %p327 = scmp.lt.s32.totalorder %s24, 3
      %s328 = scalar_select %p327, %s24, 3
      %s329 = smul.addr %s326, 4
      %s330 = sadd.s32 %s328, %s329
      %s331 = smul.addr %s330, 4
      %s332 = scalar_lea.vmem %s2, %s331
      %p333 = pneg %p117
      %p334 = pneg %p114
      %p335 = scmp.lt.s32.totalorder %s22, 1
      %s336 = scalar_select %p335, %s22, 1
      %p337 = scmp.lt.s32.totalorder %s23, 0
      %s338 = scalar_select %p337, %s23, 0
      %s339 = sadd.s32 %s338, %s336
      %s340 = smul.addr %s339, 8
      %s341 = scalar_lea.vmem %s3, %s340
      %p342 = pneg %p145
      %p343 = pneg %p142
      %p344 = scmp.lt.s32.totalorder %s24, 3
      %s345 = scalar_select %p344, %s24, 3
      %s346 = smul.addr %s345, 4
      %s347 = scalar_lea.vmem %s4, %s346
      %p348 = pneg %p171
      %p349 = pneg %p168
      %p350 = pneg %p192
      %p351 = pneg %p189
      %p352 = pneg %p220
      %p353 = pneg %p217
      %p354 = scmp.lt.s32.totalorder %s22, 1
      %s355 = scalar_select %p354, %s22, 1
      %p356 = scmp.lt.s32.totalorder %s23, 0
      %s357 = scalar_select %p356, %s23, 0
      %s358 = sadd.s32 %s357, %s355
      %s359 = smul.addr %s358, 8
      %s360 = scalar_lea.vmem %s6, %s359
      %p361 = scmp.lt.s32.totalorder %s22, 1
      %s362 = scalar_select %p361, %s22, 1
      %p363 = scmp.lt.s32.totalorder %s24, 3
      %s364 = scalar_select %p363, %s24, 3
      %p365 = scmp.lt.s32.totalorder %s23, 0
      %s366 = scalar_select %p365, %s23, 0
      %s367 = sadd.s32 %s366, %s364
      %s368 = smul.addr %s362, 4
      %s369 = sadd.s32 %s367, %s368
      %s370 = smul.addr %s369, 4
      %s371 = scalar_lea.vmem %s0, %s370
      %p372 = scmp.lt.s32.totalorder %s22, 1
      %s373 = scalar_select %p372, %s22, 1
      %p374 = scmp.lt.s32.totalorder %s24, 3
      %s375 = scalar_select %p374, %s24, 3
      %s376 = smul.addr %s373, 4
      %s377 = sadd.s32 %s375, %s376
      %s378 = smul.addr %s377, 4
      %s379 = scalar_lea.vmem %s1, %s378
      %p380 = scmp.lt.s32.totalorder %s22, 1
      %s381 = scalar_select %p380, %s22, 1
      %p382 = scmp.lt.s32.totalorder %s24, 3
      %s383 = scalar_select %p382, %s24, 3
      %s384 = smul.addr %s381, 4
      %s385 = sadd.s32 %s383, %s384
      %s386 = smul.addr %s385, 4
      %s387 = scalar_lea.vmem %s2, %s386
      %p388 = scmp.lt.s32.totalorder %s22, 1
      %s389 = scalar_select %p388, %s22, 1
      %p390 = scmp.lt.s32.totalorder %s23, 0
      %s391 = scalar_select %p390, %s23, 0
      %s392 = sadd.s32 %s391, %s389
      %s393 = smul.addr %s392, 8
      %s394 = scalar_lea.vmem %s3, %s393
      %p395 = scmp.lt.s32.totalorder %s24, 3
      %s396 = scalar_select %p395, %s24, 3
      %s397 = smul.addr %s396, 4
      %s398 = scalar_lea.vmem %s4, %s397
      %p399 = scmp.lt.s32.totalorder %s22, 1
      %s400 = scalar_select %p399, %s22, 1
      %p401 = scmp.lt.s32.totalorder %s23, 0
      %s402 = scalar_select %p401, %s23, 0
      %s403 = sadd.s32 %s402, %s400
      %s404 = smul.addr %s403, 8
      %s405 = scalar_lea.vmem %s6, %s404
      %p407 = scmp.eq.s32.totalorder %s24, 0
      // Predicated region
      $region45: #{transformer_decoder_forward.14} parent=43 // pred_check
        %p408 = pneg %p407
      $region46: #{transformer_decoder_forward.14} parent=43 // pred_check_branch
        %410 = sbr.rel (%p408) target = $region48
      $region47: #{transformer_decoder_forward.14} parent=43 // pred_region
        %v411 = vld [vmem:[%s394] sm:$0xff]
        %v412 = vld [vmem:[%s5] sm:$0x1]
        %v414 = vlaneseq
        %v415 = vshrl.u32 %v414, 7
        %v416 = vsub.s32 0, %v415
        %v417 = vrot.slane %v412, %v416
        %v419 = vadd.f32 %v411, %v417
        %vm420 = vcmask 261120
        %421 = vst.msk [vmem:[%s405] sm:$0xff] %vm420, %v419
      $region48: #{transformer_decoder_forward.14} parent=43 // pred_fallthru
        _
      %v422 = vld [vmem:[%s371] sm:$0xf]
      %v423 = vld [vmem:[%s379] sm:$0xf]
      %v424 = vld [vmem:[%s387] sm:$0xf]
      %vm425 = vcmask 64512
      %v427 = vsel %vm425, %v422, 0
      %v430 = vsel %vm425, %v423, 0
      %432 = vmatprep.subr.bf16.mxu0 0
      %433 = vmatpush1.bf16.xpose.msra.mxu0 %v430
      %434 = vmatprep.subr.bf16.mxu0 0
      %435 = vmatpush1.bf16.xpose.msra.mxu0 0
      %436 = vmatprep.subr.bf16.mxu0 0
      %437 = vmatpush1.bf16.xpose.msra.mxu0 0
      %438 = vmatprep.subr.bf16.mxu0 0
      %439 = vmatpush1.bf16.xpose.msra.mxu0 0
      %440 = vmatprep.subr.bf16.mxu0 0
      %441 = vmatpush1.bf16.xpose.msra.mxu0 0
      %442 = vmatprep.subr.bf16.mxu0 0
      %443 = vmatpush1.bf16.xpose.msra.mxu0 0
      %444 = vmatprep.subr.bf16.mxu0 0
      %445 = vmatpush1.bf16.xpose.msra.mxu0 0
      %446 = vmatprep.subr.bf16.mxu0 0
      %447 = vmatpush1.bf16.xpose.msra.mxu0 0
      %448 = vmatprep.subr.bf16.mxu0 0
      %449 = vmatpush1.bf16.xpose.msra.mxu0 0
      %450 = vmatprep.subr.bf16.mxu0 0
      %451 = vmatpush1.bf16.xpose.msra.mxu0 0
      %452 = vmatprep.subr.bf16.mxu0 0
      %453 = vmatpush1.bf16.xpose.msra.mxu0 0
      %454 = vmatprep.subr.bf16.mxu0 0
      %455 = vmatpush1.bf16.xpose.msra.mxu0 0
      %456 = vmatprep.subr.bf16.mxu0 0
      %457 = vmatpush1.bf16.xpose.msra.mxu0 0
      %458 = vmatprep.subr.bf16.mxu0 0
      %459 = vmatpush1.bf16.xpose.msra.mxu0 0
      %460 = vmatprep.subr.bf16.mxu0 0
      %461 = vmatpush1.bf16.xpose.msra.mxu0 0
      %462 = vmatprep.subr.bf16.mxu0 0
      %463 = vmatpush1.bf16.xpose.msra.mxu0 0
      %464 = vmatprep.mubr.bf16.mxu0 0
      %465 = vmatmul.mubr.bf16.gmra.mrb[0].mxu0 %v427
      %v466 = vpop.f32.mrb[0].mxu0
      %v467 = vadd.f32 0.0, %v466
      %v468 = vpop.f32.mrb[0].mxu0
      %v469 = vpop.f32.mrb[0].mxu0
      %v470 = vpop.f32.mrb[0].mxu0
      %471 = vdwg.mxu0
      %v472 = vmul.f32 %v467, 0.35355338
      %s473 = smul.u32 %s23, 8
      %v474 = vlaneseq
      %v475 = vshrl.u32 %v474, 7
      %v476 = vstv %s473
      %v477 = vadd.s32 %v475, %v476
      %v478 = vlaneseq
      %v479 = vand.u32 %v478, 127
      %vm480 = vcmp.le.s32.totalorder %v479, %v477
      %v481 = vsel %vm480, %v472, -1e+09
      %v482 = vsel %vm425, %v481, -inf
      %483 = vmax.xlane.f32.xlu0 %v482
      %v484 = vpop.xlane.xlu0 %483
      %v485 = vsub.f32 %v481, %v484
      %v486 = vmul.f32 %v485, 1.442695
      %v487 = vpow.pop %v486
      %v488 = vsel %vm425, %v487, 0.0
      %489 = vadd.xlane.f32.xlu0 %v488
      %v490 = vpop.xlane.xlu0 %489
      %v491 = vrcp.pop %v490
      %v492 = vmul.f32 %v487, %v491
      %v493 = vpack.c.bf16 %v492, %v492
      %v495 = vsel %vm425, %v493, 0
      %vm497 = vcmask 1043456
      %v499 = vsel %vm497, %v424, 0
      %501 = vmatprep.subr.bf16.mxu0 0
      %502 = vmatpush1.bf16.msra.mxu0 %v499
      %503 = vmatprep.subr.bf16.mxu0 0
      %504 = vmatpush1.bf16.msra.mxu0 0
      %505 = vmatprep.subr.bf16.mxu0 0
      %506 = vmatpush1.bf16.msra.mxu0 0
      %507 = vmatprep.subr.bf16.mxu0 0
      %508 = vmatpush1.bf16.msra.mxu0 0
      %509 = vmatprep.subr.bf16.mxu0 0
      %510 = vmatpush1.bf16.msra.mxu0 0
      %511 = vmatprep.subr.bf16.mxu0 0
      %512 = vmatpush1.bf16.msra.mxu0 0
      %513 = vmatprep.subr.bf16.mxu0 0
      %514 = vmatpush1.bf16.msra.mxu0 0
      %515 = vmatprep.subr.bf16.mxu0 0
      %516 = vmatpush1.bf16.msra.mxu0 0
      %517 = vmatprep.subr.bf16.mxu0 0
      %518 = vmatpush1.bf16.msra.mxu0 0
      %519 = vmatprep.subr.bf16.mxu0 0
      %520 = vmatpush1.bf16.msra.mxu0 0
      %521 = vmatprep.subr.bf16.mxu0 0
      %522 = vmatpush1.bf16.msra.mxu0 0
      %523 = vmatprep.subr.bf16.mxu0 0
      %524 = vmatpush1.bf16.msra.mxu0 0
      %525 = vmatprep.subr.bf16.mxu0 0
      %526 = vmatpush1.bf16.msra.mxu0 0
      %527 = vmatprep.subr.bf16.mxu0 0
      %528 = vmatpush1.bf16.msra.mxu0 0
      %529 = vmatprep.subr.bf16.mxu0 0
      %530 = vmatpush1.bf16.msra.mxu0 0
      %531 = vmatprep.subr.bf16.mxu0 0
      %532 = vmatpush1.bf16.msra.mxu0 0
      %533 = vmatprep.mubr.bf16.mxu0 0
      %534 = vmatmul.mubr.bf16.gmra.mrb[0].mxu0 %v495
      %v535 = vpop.f32.mrb[0].mxu0
      %v536 = vadd.f32 0.0, %v535
      %v537 = vpop.f32.mrb[0].mxu0
      %v538 = vpop.f32.mrb[0].mxu0
      %v539 = vpop.f32.mrb[0].mxu0
      %540 = vdwg.mxu0
      %v541 = vld [vmem:[%s405] sm:$0xff]
      %v542 = vpack.c.bf16 %v536, %v536
      %v543 = vld [vmem:[%s398] sm:$0xf]
      %v545 = vsel %vm425, %v542, 0
      %v548 = vsel %vm497, %v543, 0
      %550 = vmatprep.subr.bf16.mxu0 0
      %551 = vmatpush1.bf16.msra.mxu0 %v548
      %552 = vmatprep.subr.bf16.mxu0 0
      %553 = vmatpush1.bf16.msra.mxu0 0
      %554 = vmatprep.subr.bf16.mxu0 0
      %555 = vmatpush1.bf16.msra.mxu0 0
      %556 = vmatprep.subr.bf16.mxu0 0
      %557 = vmatpush1.bf16.msra.mxu0 0
      %558 = vmatprep.subr.bf16.mxu0 0
      %559 = vmatpush1.bf16.msra.mxu0 0
      %560 = vmatprep.subr.bf16.mxu0 0
      %561 = vmatpush1.bf16.msra.mxu0 0
      %562 = vmatprep.subr.bf16.mxu0 0
      %563 = vmatpush1.bf16.msra.mxu0 0
      %564 = vmatprep.subr.bf16.mxu0 0
      %565 = vmatpush1.bf16.msra.mxu0 0
      %566 = vmatprep.subr.bf16.mxu0 0
      %567 = vmatpush1.bf16.msra.mxu0 0
      %568 = vmatprep.subr.bf16.mxu0 0
      %569 = vmatpush1.bf16.msra.mxu0 0
      %570 = vmatprep.subr.bf16.mxu0 0
      %571 = vmatpush1.bf16.msra.mxu0 0
      %572 = vmatprep.subr.bf16.mxu0 0
      %573 = vmatpush1.bf16.msra.mxu0 0
      %574 = vmatprep.subr.bf16.mxu0 0
      %575 = vmatpush1.bf16.msra.mxu0 0
      %576 = vmatprep.subr.bf16.mxu0 0
      %577 = vmatpush1.bf16.msra.mxu0 0
      %578 = vmatprep.subr.bf16.mxu0 0
      %579 = vmatpush1.bf16.msra.mxu0 0
      %580 = vmatprep.subr.bf16.mxu0 0
      %581 = vmatpush1.bf16.msra.mxu0 0
      %582 = vmatprep.mubr.bf16.mxu0 0
      %583 = vmatmul.mubr.bf16.gmra.mrb[0].mxu0 %v545
      %v584 = vpop.f32.mrb[0].mxu0
      %v585 = vadd.f32 0.0, %v584
      %v586 = vpop.f32.mrb[0].mxu0
      %v587 = vpop.f32.mrb[0].mxu0
      %v588 = vpop.f32.mrb[0].mxu0
      %589 = vdwg.mxu0
      %v590 = vadd.f32 %v541, %v585
      %vm591 = vcmask 261120
      %592 = vst.msk [vmem:[%s405] sm:$0xff] %vm591, %v590
      %p593 = scmp.lt.s32.totalorder %s22, 1
      %s594 = scalar_select %p593, %s22, 1
      %p595 = scmp.lt.s32.totalorder %s23, 0
      %s596 = scalar_select %p595, %s23, 0
      %s597 = sadd.s32 %s596, %s594
      %s598 = smul.addr %s597, 8
      %s599 = scalar_lea.vmem %s6, %s598
      // Predicated region
      $region49: #{transformer_decoder_forward.14} parent=43 // pred_check
        %p600 = pneg %p217
      $region50: #{transformer_decoder_forward.14} parent=43 // pred_check_branch
        %602 = sbr.rel (%p600) target = $region52
      $region51: #{transformer_decoder_forward.14} parent=43 // pred_region
        _
      $region52: #{transformer_decoder_forward.14} parent=43 // pred_fallthru
        _
    $region44: #{transformer_decoder_forward.14} parent=5 // pred_fallthru
      _
    %p603 = scmp.le.s32.totalorder 2, %s12
    // Predicated region
    $region53: #{transformer_decoder_forward.14} parent=5 // pred_check
      %p604 = pneg %p603
    $region54: #{transformer_decoder_forward.14} parent=5 // pred_check_branch
      %606 = sbr.rel (%p604) target = $region56
    $region55: #{transformer_decoder_forward.14} parent=5 // pred_region
      %s607 = ssub.s32 %s12, 2
      // Predicated region
      $region57: #{transformer_decoder_forward.14} parent=55 // pred_check
        %p608 = pneg %p223
      $region58: #{transformer_decoder_forward.14} parent=55 // pred_check_branch
        %610 = sbr.rel (%p608) target = $region60
      $region59: #{transformer_decoder_forward.14} parent=55 // pred_region
        %p611 = scmp.lt.s32.totalorder %s25, 1
        %s612 = scalar_select %p611, %s25, 1
        %p613 = scmp.lt.s32.totalorder %s26, 0
        %s614 = scalar_select %p613, %s26, 0
        %s615 = sadd.s32 %s614, %s612
        %s616 = smul.addr %s615, 8
        %s617 = scalar_lea.vmem %s6, %s616
      $region60: #{transformer_decoder_forward.14} parent=55 // pred_fallthru
        _
    $region56: #{transformer_decoder_forward.14} parent=5 // pred_fallthru
      _
  $region6: #{transformer_decoder_forward.14} parent=0 // loop_footer
    %s16 = sadd.s32 1, %s12
  $region7: #{transformer_decoder_forward.14} parent=0 // loop_footer_branch
    %11 = sbr.rel target = $region3
  $region8: #{transformer_decoder_forward.14} parent=0 // loop_exit
    _

// kernel: transformer_decoder_forward.16
$region0: #{transformer_decoder_forward.16}
  #allocation0 [shape = 'u32[]', space=smem, size = 0x4, offset = 0x4, fixed_abs, tag = 'smem constant byte address 0x4 - core index']
  #allocation1 [shape = 'u32[144,128]{1,0:T(1,128)}', space=vmem, size = 0x12000, scoped, tag = 'internal scratch']
  %s0 = inlined_call_operand.vmem [shape: f32[16,32], index: 0, kind: input, shape index: {}]
  %s1 = inlined_call_operand.vmem [shape: bf16[32,64], index: 1, kind: input, shape index: {}]
  %s2 = inlined_call_operand.vmem [shape: f32[1,64], index: 2, kind: input, shape index: {}]
  %s3 = inlined_call_operand.vmem [shape: bf16[16,64], index: 3, kind: output, shape index: {}]
  %s4 = sld [smem:[#allocation0]]
  $region22: #{transformer_decoder_forward.16} parent=0
    _
  %s6 = ssub.s32 1, %s4
  %s7 = scalar_select 0, %s6, %s4
  // Predicated region
  $region2: #{transformer_decoder_forward.16} parent=0 // pred_check
    _
  $region3: #{transformer_decoder_forward.16} parent=0 // pred_check_branch
    %9 = sbr.rel (0) target = $region5
  $region4: #{transformer_decoder_forward.16} parent=0 // pred_region
    _
  $region5: #{transformer_decoder_forward.16} parent=0 // pred_fallthru
    _
  // Predicated region
  $region6: #{transformer_decoder_forward.16} parent=0 // pred_check
    _
  $region7: #{transformer_decoder_forward.16} parent=0 // pred_check_branch
    %11 = sbr.rel (0) target = $region9
  $region8: #{transformer_decoder_forward.16} parent=0 // pred_region
    _
  $region9: #{transformer_decoder_forward.16} parent=0 // pred_fallthru
    _
  // Predicated region
  $region10: #{transformer_decoder_forward.16} parent=0 // pred_check
    _
  $region11: #{transformer_decoder_forward.16} parent=0 // pred_check_branch
    %13 = sbr.rel (0) target = $region13
  $region12: #{transformer_decoder_forward.16} parent=0 // pred_region
    _
  $region13: #{transformer_decoder_forward.16} parent=0 // pred_fallthru
    _
  %v15 = vld [vmem:[%s0] sm:$0xff]
  %v16 = vld [vmem:[%s0 + $0x8] sm:$0xff]
  %v17 = vpack.c.bf16 %v16, %v15
  %v18 = vld [vmem:[%s1] sm:$0xf]
  %v19 = vld [vmem:[%s1 + $0x4] sm:$0xf]
  %v20 = vld [vmem:[%s1 + $0x8] sm:$0xf]
  %v21 = vld [vmem:[%s1 + $0xc] sm:$0xf]
  %v22 = vld [vmem:[%s2] sm:$0x1]
  %v24 = vlaneseq
  %v25 = vshrl.u32 %v24, 7
  %v26 = vsub.s32 0, %v25
  %v27 = vrot.slane %v22, %v26
  %v33 = vunpack.c.l.b16 %v18
  %v34 = vunpack.c.l.b16 %v19
  %v35 = vunpack.c.l.b16 %v20
  %v36 = vunpack.c.l.b16 %v21
  %v37 = vpack.c.b16 %v34, %v33
  %v38 = vpack.c.b16 %v36, %v35
  %vm41 = vcmask 261120
  %v43 = vsel %vm41, %v17, 0
  %45 = vmatprep.subr.bf16.mxu0 0
  %46 = vmatpush1.bf16.msra.mxu0 %v37
  %47 = vmatprep.subr.bf16.mxu0 0
  %48 = vmatpush1.bf16.msra.mxu0 %v38
  %49 = vmatprep.subr.bf16.mxu0 0
  %50 = vmatpush1.bf16.msra.mxu0 0
  %51 = vmatprep.subr.bf16.mxu0 0
  %52 = vmatpush1.bf16.msra.mxu0 0
  %53 = vmatprep.subr.bf16.mxu0 0
  %54 = vmatpush1.bf16.msra.mxu0 0
  %55 = vmatprep.subr.bf16.mxu0 0
  %56 = vmatpush1.bf16.msra.mxu0 0
  %57 = vmatprep.subr.bf16.mxu0 0
  %58 = vmatpush1.bf16.msra.mxu0 0
  %59 = vmatprep.subr.bf16.mxu0 0
  %60 = vmatpush1.bf16.msra.mxu0 0
  %61 = vmatprep.subr.bf16.mxu0 0
  %62 = vmatpush1.bf16.msra.mxu0 0
  %63 = vmatprep.subr.bf16.mxu0 0
  %64 = vmatpush1.bf16.msra.mxu0 0
  %65 = vmatprep.subr.bf16.mxu0 0
  %66 = vmatpush1.bf16.msra.mxu0 0
  %67 = vmatprep.subr.bf16.mxu0 0
  %68 = vmatpush1.bf16.msra.mxu0 0
  %69 = vmatprep.subr.bf16.mxu0 0
  %70 = vmatpush1.bf16.msra.mxu0 0
  %71 = vmatprep.subr.bf16.mxu0 0
  %72 = vmatpush1.bf16.msra.mxu0 0
  %73 = vmatprep.subr.bf16.mxu0 0
  %74 = vmatpush1.bf16.msra.mxu0 0
  %75 = vmatprep.subr.bf16.mxu0 0
  %76 = vmatpush1.bf16.msra.mxu0 0
  %77 = vmatprep.mubr.bf16.mxu0 0
  %78 = vmatmul.mubr.bf16.gmra.mrb[0].mxu0 %v43
  %v79 = vpop.f32.mrb[0].mxu0
  %v80 = vadd.f32 %v27, %v79
  %v81 = vpop.f32.mrb[0].mxu0
  %v82 = vpop.f32.mrb[0].mxu0
  %v83 = vadd.f32 %v27, %v82
  %v84 = vpop.f32.mrb[0].mxu0
  %85 = vdwg.mxu0
  %v86 = vpack.c.bf16 %v83, %v80
  %v88 = vunpack.c.l.b16 %v86
  %v89 = vunpack.c.h.b16 %v86
  %v90 = vpack.c.b16 %v88, %v88
  %v91 = vpack.c.b16 %v89, %v89
  %vm94 = vcmask 519168
  %95 = vst.msk [vmem:[%s3] sm:$0xf] %vm94, %v90
  %96 = vst.msk [vmem:[%s3 + $0x4] sm:$0xf] %vm94, %v91
  // Predicated region
  $region14: #{transformer_decoder_forward.16} parent=0 // pred_check
    _
  $region15: #{transformer_decoder_forward.16} parent=0 // pred_check_branch
    %98 = sbr.rel (0) target = $region17
  $region16: #{transformer_decoder_forward.16} parent=0 // pred_region
    _
  $region17: #{transformer_decoder_forward.16} parent=0 // pred_fallthru
    _
  // Predicated region
  $region18: #{transformer_decoder_forward.16} parent=0 // pred_check
    _
  $region19: #{transformer_decoder_forward.16} parent=0 // pred_check_branch
    %100 = sbr.rel (0) target = $region21
  $region20: #{transformer_decoder_forward.16} parent=0 // pred_region
    _
  $region21: #{transformer_decoder_forward.16} parent=0 // pred_fallthru
    _

// kernel: transformer_decoder_forward.25
$region0: #{transformer_decoder_forward.25}
  #allocation0 [shape = 'u32[]', space=smem, size = 0x4, offset = 0x4, fixed_abs, tag = 'smem constant byte address 0x4 - core index']
  #allocation1 [shape = 'u32[144,128]{1,0:T(1,128)}', space=vmem, size = 0x12000, scoped, tag = 'internal scratch']
  %s0 = inlined_call_operand.vmem [shape: f32[16,32], index: 0, kind: input, shape index: {}]
  %s1 = inlined_call_operand.vmem [shape: f32[1,32], index: 1, kind: input, shape index: {}]
  %s2 = inlined_call_operand.vmem [shape: f32[1,32], index: 2, kind: input, shape index: {}]
  %s3 = inlined_call_operand.vmem [shape: bf16[32,128], index: 3, kind: input, shape index: {}]
  %s4 = inlined_call_operand.vmem [shape: f32[1,128], index: 4, kind: input, shape index: {}]
  %s5 = inlined_call_operand.hbm [shape: f32[16,128], index: 5, kind: output, shape index: {}]
  %s6 = sld [smem:[#allocation0]]
  $region30: #{transformer_decoder_forward.25} parent=0
    _
  %s8 = ssub.s32 1, %s6
  %s9 = scalar_select 0, %s8, %s6
  $region1: #{transformer_decoder_forward.25} parent=0
    #allocation2 [shape = 'u8[8192]{0}', space=vmem, size = 0x2000, scoped, tag = 'output window, operand 0, single buffered']
    #allocation3 [shape = 's32[1]{0}', space=sflag, size = 0x4, scoped, tag = 'scoped memory for transformer_decoder_forward.25']
    %10 = vsyncpa [#allocation3], 0
    // Predicated region
    $region2: #{transformer_decoder_forward.25} parent=1 // pred_check
      _
    $region3: #{transformer_decoder_forward.25} parent=1 // pred_check_branch
      %12 = sbr.rel (0) target = $region5
    $region4: #{transformer_decoder_forward.25} parent=1 // pred_region
      _
    $region5: #{transformer_decoder_forward.25} parent=1 // pred_fallthru
      _
    // Predicated region
    $region6: #{transformer_decoder_forward.25} parent=1 // pred_check
      _
    $region7: #{transformer_decoder_forward.25} parent=1 // pred_check_branch
      %14 = sbr.rel (0) target = $region9
    $region8: #{transformer_decoder_forward.25} parent=1 // pred_region
      _
    $region9: #{transformer_decoder_forward.25} parent=1 // pred_fallthru
      _
    // Predicated region
    $region10: #{transformer_decoder_forward.25} parent=1 // pred_check
      _
    $region11: #{transformer_decoder_forward.25} parent=1 // pred_check_branch
      %16 = sbr.rel (0) target = $region13
    $region12: #{transformer_decoder_forward.25} parent=1 // pred_region
      _
    $region13: #{transformer_decoder_forward.25} parent=1 // pred_fallthru
      _
    // Predicated region
    $region14: #{transformer_decoder_forward.25} parent=1 // pred_check
      _
    $region15: #{transformer_decoder_forward.25} parent=1 // pred_check_branch
      %18 = sbr.rel (0) target = $region17
    $region16: #{transformer_decoder_forward.25} parent=1 // pred_region
      _
    $region17: #{transformer_decoder_forward.25} parent=1 // pred_fallthru
      _
    // Predicated region
    $region18: #{transformer_decoder_forward.25} parent=1 // pred_check
      _
    $region19: #{transformer_decoder_forward.25} parent=1 // pred_check_branch
      %20 = sbr.rel (0) target = $region21
    $region20: #{transformer_decoder_forward.25} parent=1 // pred_region
      _
    $region21: #{transformer_decoder_forward.25} parent=1 // pred_fallthru
      _
    %v22 = vld [vmem:[%s0] sm:$0xff]
    %v23 = vld [vmem:[%s0 + $0x8] sm:$0xff]
    %vm24 = vcmask 261120
    %v25 = vsel %vm24, %v22, 0.0
    %26 = vadd.xlane.f32.xlu0 %v25
    %v27 = vpop.xlane.xlu0 %26
    %v28 = vsel %vm24, %v23, 0.0
    %29 = vadd.xlane.f32.xlu0 %v28
    %v30 = vpop.xlane.xlu0 %29
    %v31 = vrcp.pop 32.0
    %v32 = vmul.f32 %v27, %v31
    %v33 = vmul.f32 %v30, %v31
    %v34 = vsub.f32 %v22, %v32
    %v35 = vsub.f32 %v23, %v33
    %v36 = vmul.f32 %v34, %v34
    %v37 = vmul.f32 %v35, %v35
    %v38 = vsel %vm24, %v36, 0.0
    %39 = vadd.xlane.f32.xlu0 %v38
    %v40 = vpop.xlane.xlu0 %39
    %v41 = vsel %vm24, %v37, 0.0
    %42 = vadd.xlane.f32.xlu0 %v41
    %v43 = vpop.xlane.xlu0 %42
    %v44 = vmul.f32 %v40, %v31
    %v45 = vmul.f32 %v43, %v31
    %v46 = vadd.f32 %v44, 1e-05
    %v47 = vadd.f32 %v45, 1e-05
    %v48 = vrsqrt.pop %v46
    %v49 = vrsqrt.pop %v47
    %v50 = vmul.f32 %v34, %v48
    %v51 = vmul.f32 %v35, %v49
    %v52 = vld [vmem:[%s1] sm:$0x1]
    %v54 = vlaneseq
    %v55 = vshrl.u32 %v54, 7
    %v56 = vsub.s32 0, %v55
    %v57 = vrot.slane %v52, %v56
    %v59 = vmul.f32 %v50, %v57
    %v60 = vmul.f32 %v51, %v57
    %v61 = vld [vmem:[%s2] sm:$0x1]
    %v63 = vlaneseq
    %v64 = vshrl.u32 %v63, 7
    %v65 = vsub.s32 0, %v64
    %v66 = vrot.slane %v61, %v65
    %v68 = vadd.f32 %v59, %v66
    %v69 = vadd.f32 %v60, %v66
    %v70 = vpack.c.bf16 %v69, %v68
    %v71 = vld [vmem:[%s3] sm:$0xf]
    %v72 = vld [vmem:[%s3 + $0x4] sm:$0xf]
    %v73 = vld [vmem:[%s3 + $0x8] sm:$0xf]
    %v74 = vld [vmem:[%s3 + $0xc] sm:$0xf]
    %v75 = vld [vmem:[%s4] sm:$0x1]
    %v77 = vlaneseq
    %v78 = vshrl.u32 %v77, 7
    %v79 = vsub.s32 0, %v78
    %v80 = vrot.slane %v75, %v79
    %v86 = vunpack.c.l.b16 %v71
    %v87 = vunpack.c.l.b16 %v72
    %v88 = vunpack.c.l.b16 %v73
    %v89 = vunpack.c.l.b16 %v74
    %v90 = vpack.c.b16 %v87, %v86
    %v91 = vpack.c.b16 %v89, %v88
    %v95 = vsel %vm24, %v70, 0
    %97 = vmatprep.subr.bf16.mxu0 0
    %98 = vmatpush1.bf16.msra.mxu0 %v90
    %99 = vmatprep.subr.bf16.mxu0 0
    %100 = vmatpush1.bf16.msra.mxu0 %v91
    %101 = vmatprep.subr.bf16.mxu0 0
    %102 = vmatpush1.bf16.msra.mxu0 0
    %103 = vmatprep.subr.bf16.mxu0 0
    %104 = vmatpush1.bf16.msra.mxu0 0
    %105 = vmatprep.subr.bf16.mxu0 0
    %106 = vmatpush1.bf16.msra.mxu0 0
    %107 = vmatprep.subr.bf16.mxu0 0
    %108 = vmatpush1.bf16.msra.mxu0 0
    %109 = vmatprep.subr.bf16.mxu0 0
    %110 = vmatpush1.bf16.msra.mxu0 0
    %111 = vmatprep.subr.bf16.mxu0 0
    %112 = vmatpush1.bf16.msra.mxu0 0
    %113 = vmatprep.subr.bf16.mxu0 0
    %114 = vmatpush1.bf16.msra.mxu0 0
    %115 = vmatprep.subr.bf16.mxu0 0
    %116 = vmatpush1.bf16.msra.mxu0 0
    %117 = vmatprep.subr.bf16.mxu0 0
    %118 = vmatpush1.bf16.msra.mxu0 0
    %119 = vmatprep.subr.bf16.mxu0 0
    %120 = vmatpush1.bf16.msra.mxu0 0
    %121 = vmatprep.subr.bf16.mxu0 0
    %122 = vmatpush1.bf16.msra.mxu0 0
    %123 = vmatprep.subr.bf16.mxu0 0
    %124 = vmatpush1.bf16.msra.mxu0 0
    %125 = vmatprep.subr.bf16.mxu0 0
    %126 = vmatpush1.bf16.msra.mxu0 0
    %127 = vmatprep.subr.bf16.mxu0 0
    %128 = vmatpush1.bf16.msra.mxu0 0
    %129 = vmatprep.mubr.bf16.mxu0 0
    %130 = vmatmul.mubr.bf16.gmra.mrb[0].mxu0 %v95
    %v131 = vpop.f32.mrb[0].mxu0
    %v132 = vadd.f32 %v80, %v131
    %v133 = vpop.f32.mrb[0].mxu0
    %v134 = vpop.f32.mrb[0].mxu0
    %v135 = vadd.f32 %v80, %v134
    %v136 = vpop.f32.mrb[0].mxu0
    %137 = vdwg.mxu0
    %138 = vst [vmem:[#allocation2] sm:$0xff] %v132
    %139 = vst [vmem:[#allocation2 + $0x8] sm:$0xff] %v135
    // Predicated region
    $region22: #{transformer_decoder_forward.25} parent=1 // pred_check
      _
    $region23: #{transformer_decoder_forward.25} parent=1 // pred_check_branch
      %141 = sbr.rel (0) target = $region25
    $region24: #{transformer_decoder_forward.25} parent=1 // pred_region
      %s143 = ssub.s32 256, 256
      %144 = vsyncadd [#allocation3], %s143
      %s145 = sshll.u32 [#allocation2], 4
      %s146 = int_to_ptr.vmem [resolvable:$true] %s145
      %151 = dma.vmem_to_hbm [thread:$0]  %s146, 256, %s5, [#allocation3], 128, 128, 8
    $region25: #{transformer_decoder_forward.25} parent=1 // pred_fallthru
      _
    // Predicated region
    $region26: #{transformer_decoder_forward.25} parent=1 // pred_check
      _
    $region27: #{transformer_decoder_forward.25} parent=1 // pred_check_branch
      %153 = sbr.rel (0) target = $region29
    $region28: #{transformer_decoder_forward.25} parent=1 // pred_region
      %154 = dma.done [#allocation3], 256
    $region29: #{transformer_decoder_forward.25} parent=1 // pred_fallthru
      _
    %155 = vsyncpa [#allocation3], 1

// kernel: transformer_decoder_forward.18
$region0: #{transformer_decoder_forward.18}
  #allocation0 [shape = 'u32[]', space=smem, size = 0x4, offset = 0x4, fixed_abs, tag = 'smem constant byte address 0x4 - core index']
  #allocation1 [shape = 'u32[144,128]{1,0:T(1,128)}', space=vmem, size = 0x12000, scoped, tag = 'internal scratch']
  #allocation2 [shape = 'f32[16,32]{1,0:T(8,128)}', space=vmem, size = 0x2000, scoped, tag = 'scratch operand']
  %s0 = inlined_call_operand.vmem [shape: f32[16,32], index: 0, kind: input, shape index: {}]
  %s1 = inlined_call_operand.vmem [shape: bf16[32,64], index: 1, kind: input, shape index: {}]
  %s2 = inlined_call_operand.vmem [shape: f32[1,64], index: 2, kind: input, shape index: {}]
  %s3 = inlined_call_operand.vmem [shape: bf16[64,32], index: 3, kind: input, shape index: {}]
  %s4 = inlined_call_operand.vmem [shape: f32[1,32], index: 4, kind: input, shape index: {}]
  %s5 = inlined_call_operand.vmem [shape: f32[16,32], index: 5, kind: output, shape index: {}]
  %s6 = sld [smem:[#allocation0]]
  $region38: #{transformer_decoder_forward.18} parent=0
    _
  %s8 = ssub.s32 1, %s6
  %s9 = scalar_select 0, %s8, %s6
  // Predicated region
  $region2: #{transformer_decoder_forward.18} parent=0 // pred_check
    _
  $region3: #{transformer_decoder_forward.18} parent=0 // pred_check_branch
    %11 = sbr.rel (0) target = $region5
  $region4: #{transformer_decoder_forward.18} parent=0 // pred_region
    _
  $region5: #{transformer_decoder_forward.18} parent=0 // pred_fallthru
    _
  // Predicated region
  $region6: #{transformer_decoder_forward.18} parent=0 // pred_check
    _
  $region7: #{transformer_decoder_forward.18} parent=0 // pred_check_branch
    %13 = sbr.rel (0) target = $region9
  $region8: #{transformer_decoder_forward.18} parent=0 // pred_region
    _
  $region9: #{transformer_decoder_forward.18} parent=0 // pred_fallthru
    _
  // Predicated region
  $region10: #{transformer_decoder_forward.18} parent=0 // pred_check
    _
  $region11: #{transformer_decoder_forward.18} parent=0 // pred_check_branch
    %15 = sbr.rel (0) target = $region13
  $region12: #{transformer_decoder_forward.18} parent=0 // pred_region
    _
  $region13: #{transformer_decoder_forward.18} parent=0 // pred_fallthru
    _
  // Predicated region
  $region14: #{transformer_decoder_forward.18} parent=0 // pred_check
    _
  $region15: #{transformer_decoder_forward.18} parent=0 // pred_check_branch
    %17 = sbr.rel (0) target = $region17
  $region16: #{transformer_decoder_forward.18} parent=0 // pred_region
    _
  $region17: #{transformer_decoder_forward.18} parent=0 // pred_fallthru
    _
  // Predicated region
  $region18: #{transformer_decoder_forward.18} parent=0 // pred_check
    _
  $region19: #{transformer_decoder_forward.18} parent=0 // pred_check_branch
    %19 = sbr.rel (0) target = $region21
  $region20: #{transformer_decoder_forward.18} parent=0 // pred_region
    _
  $region21: #{transformer_decoder_forward.18} parent=0 // pred_fallthru
    _
  %p21 = scmp.eq.s32.totalorder 0, 0
  // Predicated region
  $region22: #{transformer_decoder_forward.18} parent=0 // pred_check
    %p22 = pneg %p21
  $region23: #{transformer_decoder_forward.18} parent=0 // pred_check_branch
    %24 = sbr.rel (%p22) target = $region25
  $region24: #{transformer_decoder_forward.18} parent=0 // pred_region
    %vm25 = vcmask 261120
    %26 = vst.msk [vmem:[#allocation2] sm:$0xff] %vm25, 0.0
    %27 = vst.msk [vmem:[#allocation2 + $0x8] sm:$0xff] %vm25, 0.0
  $region25: #{transformer_decoder_forward.18} parent=0 // pred_fallthru
    _
  %v28 = vld [vmem:[%s0] sm:$0xff]
  %v29 = vld [vmem:[%s0 + $0x8] sm:$0xff]
  %v30 = vpack.c.bf16 %v29, %v28
  %v31 = vld [vmem:[%s1] sm:$0xf]
  %v32 = vld [vmem:[%s1 + $0x4] sm:$0xf]
  %v33 = vld [vmem:[%s1 + $0x8] sm:$0xf]
  %v34 = vld [vmem:[%s1 + $0xc] sm:$0xf]
  %v35 = vld [vmem:[%s2] sm:$0x1]
  %v37 = vlaneseq
  %v38 = vshrl.u32 %v37, 7
  %v39 = vsub.s32 0, %v38
  %v40 = vrot.slane %v35, %v39
  %v46 = vunpack.c.l.b16 %v31
  %v47 = vunpack.c.l.b16 %v32
  %v48 = vunpack.c.l.b16 %v33
  %v49 = vunpack.c.l.b16 %v34
  %v50 = vpack.c.b16 %v47, %v46
  %v51 = vpack.c.b16 %v49, %v48
  %vm54 = vcmask 261120
  %v56 = vsel %vm54, %v30, 0
  %58 = vmatprep.subr.bf16.mxu0 0
  %59 = vmatpush1.bf16.msra.mxu0 %v50
  %60 = vmatprep.subr.bf16.mxu0 0
  %61 = vmatpush1.bf16.msra.mxu0 %v51
  %62 = vmatprep.subr.bf16.mxu0 0
  %63 = vmatpush1.bf16.msra.mxu0 0
  %64 = vmatprep.subr.bf16.mxu0 0
  %65 = vmatpush1.bf16.msra.mxu0 0
  %66 = vmatprep.subr.bf16.mxu0 0
  %67 = vmatpush1.bf16.msra.mxu0 0
  %68 = vmatprep.subr.bf16.mxu0 0
  %69 = vmatpush1.bf16.msra.mxu0 0
  %70 = vmatprep.subr.bf16.mxu0 0
  %71 = vmatpush1.bf16.msra.mxu0 0
  %72 = vmatprep.subr.bf16.mxu0 0
  %73 = vmatpush1.bf16.msra.mxu0 0
  %74 = vmatprep.subr.bf16.mxu0 0
  %75 = vmatpush1.bf16.msra.mxu0 0
  %76 = vmatprep.subr.bf16.mxu0 0
  %77 = vmatpush1.bf16.msra.mxu0 0
  %78 = vmatprep.subr.bf16.mxu0 0
  %79 = vmatpush1.bf16.msra.mxu0 0
  %80 = vmatprep.subr.bf16.mxu0 0
  %81 = vmatpush1.bf16.msra.mxu0 0
  %82 = vmatprep.subr.bf16.mxu0 0
  %83 = vmatpush1.bf16.msra.mxu0 0
  %84 = vmatprep.subr.bf16.mxu0 0
  %85 = vmatpush1.bf16.msra.mxu0 0
  %86 = vmatprep.subr.bf16.mxu0 0
  %87 = vmatpush1.bf16.msra.mxu0 0
  %88 = vmatprep.subr.bf16.mxu0 0
  %89 = vmatpush1.bf16.msra.mxu0 0
  %90 = vmatprep.mubr.bf16.mxu0 0
  %91 = vmatmul.mubr.bf16.gmra.mrb[0].mxu0 %v56
  %v92 = vpop.f32.mrb[0].mxu0
  %v93 = vadd.f32 %v40, %v92
  %v94 = vpop.f32.mrb[0].mxu0
  %v95 = vpop.f32.mrb[0].mxu0
  %v96 = vadd.f32 %v40, %v95
  %v97 = vpop.f32.mrb[0].mxu0
  %98 = vdwg.mxu0
  %v99 = vmax.f32 %v93, 0.0
  %v100 = vmax.f32 %v96, 0.0
  %v101 = vld [vmem:[#allocation2] sm:$0xff]
  %v102 = vld [vmem:[#allocation2 + $0x8] sm:$0xff]
  %v103 = vpack.c.bf16 %v100, %v99
  %v104 = vld [vmem:[%s3] sm:$0xf]
  %v105 = vld [vmem:[%s3 + $0x4] sm:$0xf]
  %v106 = vld [vmem:[%s3 + $0x8] sm:$0xf]
  %v107 = vld [vmem:[%s3 + $0xc] sm:$0xf]
  %v108 = vld [vmem:[%s3 + $0x10] sm:$0xf]
  %v109 = vld [vmem:[%s3 + $0x14] sm:$0xf]
  %v110 = vld [vmem:[%s3 + $0x18] sm:$0xf]
  %v111 = vld [vmem:[%s3 + $0x1c] sm:$0xf]
  %v120 = vunpack.c.l.b16 %v104
  %v121 = vunpack.c.l.b16 %v105
  %v122 = vunpack.c.l.b16 %v106
  %v123 = vunpack.c.l.b16 %v107
  %v124 = vunpack.c.l.b16 %v108
  %v125 = vunpack.c.l.b16 %v109
  %v126 = vunpack.c.l.b16 %v110
  %v127 = vunpack.c.l.b16 %v111
  %v128 = vpack.c.b16 %v121, %v120
  %v129 = vpack.c.b16 %v123, %v122
  %v130 = vpack.c.b16 %v125, %v124
  %v131 = vpack.c.b16 %v127, %v126
  %vm136 = vcmask 523264
  %v138 = vsel %vm136, %v103, 0
  %140 = vmatprep.subr.bf16.mxu0 0
  %141 = vmatpush1.bf16.msra.mxu0 %v128
  %142 = vmatprep.subr.bf16.mxu0 0
  %143 = vmatpush1.bf16.msra.mxu0 %v129
  %144 = vmatprep.subr.bf16.mxu0 0
  %145 = vmatpush1.bf16.msra.mxu0 %v130
  %146 = vmatprep.subr.bf16.mxu0 0
  %147 = vmatpush1.bf16.msra.mxu0 %v131
  %148 = vmatprep.subr.bf16.mxu0 0
  %149 = vmatpush1.bf16.msra.mxu0 0
  %150 = vmatprep.subr.bf16.mxu0 0
  %151 = vmatpush1.bf16.msra.mxu0 0
  %152 = vmatprep.subr.bf16.mxu0 0
  %153 = vmatpush1.bf16.msra.mxu0 0
  %154 = vmatprep.subr.bf16.mxu0 0
  %155 = vmatpush1.bf16.msra.mxu0 0
  %156 = vmatprep.subr.bf16.mxu0 0
  %157 = vmatpush1.bf16.msra.mxu0 0
  %158 = vmatprep.subr.bf16.mxu0 0
  %159 = vmatpush1.bf16.msra.mxu0 0
  %160 = vmatprep.subr.bf16.mxu0 0
  %161 = vmatpush1.bf16.msra.mxu0 0
  %162 = vmatprep.subr.bf16.mxu0 0
  %163 = vmatpush1.bf16.msra.mxu0 0
  %164 = vmatprep.subr.bf16.mxu0 0
  %165 = vmatpush1.bf16.msra.mxu0 0
  %166 = vmatprep.subr.bf16.mxu0 0
  %167 = vmatpush1.bf16.msra.mxu0 0
  %168 = vmatprep.subr.bf16.mxu0 0
  %169 = vmatpush1.bf16.msra.mxu0 0
  %170 = vmatprep.subr.bf16.mxu0 0
  %171 = vmatpush1.bf16.msra.mxu0 0
  %172 = vmatprep.mubr.bf16.mxu0 0
  %173 = vmatmul.mubr.bf16.gmra.mrb[0].mxu0 %v138
  %v174 = vpop.f32.mrb[0].mxu0
  %v175 = vadd.f32 0.0, %v174
  %v176 = vpop.f32.mrb[0].mxu0
  %v177 = vpop.f32.mrb[0].mxu0
  %v178 = vadd.f32 0.0, %v177
  %v179 = vpop.f32.mrb[0].mxu0
  %180 = vdwg.mxu0
  %v181 = vadd.f32 %v101, %v175
  %v182 = vadd.f32 %v102, %v178
  %183 = vst.msk [vmem:[#allocation2] sm:$0xff] %vm54, %v181
  %184 = vst.msk [vmem:[#allocation2 + $0x8] sm:$0xff] %vm54, %v182
  // Predicated region
  $region26: #{transformer_decoder_forward.18} parent=0 // pred_check
    %p185 = pneg %p21
  $region27: #{transformer_decoder_forward.18} parent=0 // pred_check_branch
    %187 = sbr.rel (%p185) target = $region29
  $region28: #{transformer_decoder_forward.18} parent=0 // pred_region
    %v188 = vld [vmem:[#allocation2] sm:$0xff]
    %v189 = vld [vmem:[#allocation2 + $0x8] sm:$0xff]
    %v190 = vld [vmem:[%s4] sm:$0x1]
    %v192 = vlaneseq
    %v193 = vshrl.u32 %v192, 7
    %v194 = vsub.s32 0, %v193
    %v195 = vrot.slane %v190, %v194
    %v197 = vadd.f32 %v188, %v195
    %v198 = vadd.f32 %v189, %v195
    %199 = vst.msk [vmem:[%s5] sm:$0xff] %vm54, %v197
    %200 = vst.msk [vmem:[%s5 + $0x8] sm:$0xff] %vm54, %v198
  $region29: #{transformer_decoder_forward.18} parent=0 // pred_fallthru
    _
  // Predicated region
  $region30: #{transformer_decoder_forward.18} parent=0 // pred_check
    _
  $region31: #{transformer_decoder_forward.18} parent=0 // pred_check_branch
    %202 = sbr.rel (0) target = $region33
  $region32: #{transformer_decoder_forward.18} parent=0 // pred_region
    _
  $region33: #{transformer_decoder_forward.18} parent=0 // pred_fallthru
    _
  // Predicated region
  $region34: #{transformer_decoder_forward.18} parent=0 // pred_check
    _
  $region35: #{transformer_decoder_forward.18} parent=0 // pred_check_branch
    %204 = sbr.rel (0) target = $region37
  $region36: #{transformer_decoder_forward.18} parent=0 // pred_region
    _
  $region37: #{transformer_decoder_forward.18} parent=0 // pred_fallthru
    _

// kernel: transformer_decoder_forward.17
$region0: #{transformer_decoder_forward.17}
  #allocation0 [shape = 'u32[]', space=smem, size = 0x4, offset = 0x4, fixed_abs, tag = 'smem constant byte address 0x4 - core index']
  #allocation1 [shape = 'u32[144,128]{1,0:T(1,128)}', space=vmem, size = 0x12000, scoped, tag = 'internal scratch']
  %s0 = inlined_call_operand.vmem [shape: bf16[2,4,8,8], index: 0, kind: input, shape index: {}]
  %s1 = inlined_call_operand.vmem [shape: bf16[2,4,8,8], index: 1, kind: input, shape index: {}]
  %s2 = inlined_call_operand.vmem [shape: bf16[2,4,8,8], index: 2, kind: input, shape index: {}]
  %s3 = inlined_call_operand.vmem [shape: f32[2,1,8], index: 3, kind: input, shape index: {}]
  %s4 = inlined_call_operand.vmem [shape: f32[2,8,32], index: 4, kind: input, shape index: {}]
  %s5 = inlined_call_operand.vmem [shape: bf16[32,32], index: 5, kind: input, shape index: {}]
  %s6 = inlined_call_operand.vmem [shape: f32[1,32], index: 6, kind: input, shape index: {}]
  %s7 = inlined_call_operand.vmem [shape: f32[2,8,32], index: 7, kind: output, shape index: {}]
  %s8 = sld [smem:[#allocation0]]
  $region65: #{transformer_decoder_forward.17} parent=0
    _
  %s10 = ssub.s32 1, %s8
  %s11 = scalar_select 0, %s10, %s8
  loop: start=0, step=1, limit=10
  $region2: #{transformer_decoder_forward.17} parent=0 // loop_pre_header
    _
  $region3: #{transformer_decoder_forward.17} parent=0 // loop_header
    %s13 = sphi 0, %s17
    %p14 = scmp.ge.s32.totalorder %s13, 10
    %s20 = sphi 0, %s39
    %s21 = sphi 0, %s35
    %s22 = sphi 0, %s31
    %s23 = sphi 0, %s20
    %s24 = sphi 0, %s21
    %s25 = sphi 0, %s22
    %s26 = sphi 0, %s23
    %s27 = sphi 0, %s24
    %s28 = sphi 0, %s25
    %s46 = sphi 0, %s48
    %s49 = sphi 0, %s46
    %s50 = sphi 0, %s49
    %s66 = sphi 0, %s50
    %s74 = sphi 0, %s76
    %s77 = sphi 0, %s74
    %s78 = sphi 0, %s77
    %s94 = sphi 0, %s78
    %s102 = sphi 0, %s104
    %s105 = sphi 0, %s102
    %s106 = sphi 0, %s105
    %s122 = sphi 0, %s106
    %s128 = sphi 0, %s130
    %s131 = sphi 0, %s128
    %s132 = sphi 0, %s131
    %s148 = sphi 0, %s132
    %s156 = sphi 0, %s158
    %s159 = sphi 0, %s156
    %s160 = sphi 0, %s159
    %s176 = sphi 0, %s160
    %s182 = sphi 0, %s184
    %s185 = sphi 0, %s182
    %s186 = sphi 0, %s185
    %s202 = sphi 0, %s186
    %s206 = sphi 0, %s206
    %s208 = sphi 0, %s206
    %s209 = sphi 0, %s208
    %s223 = sphi 0, %s209
    %s231 = sphi 0, %s233
    %s234 = sphi 0, %s231
    %s235 = sphi 0, %s234
    %s251 = sphi 0, %s235
  $region4: #{transformer_decoder_forward.17} parent=0 // loop_header_branch
    %16 = sbr.rel (%p14) target = $region8
  $region5: #{transformer_decoder_forward.17} parent=0 // loop_body
    %s18 = ssub.s32 %s13, 1
    %s19 = ssub.s32 %s13, 2
    %s29 = sadd.s32 1, %s22
    %p30 = scmp.ge.s32.totalorder %s29, 4
    %s31 = scalar_select %p30, 0, %s29
    %s32 = sadd.s32 1, %s21
    %s33 = scalar_select %p30, %s32, %s21
    %p34 = scmp.ge.s32.totalorder %s33, 1
    %s35 = scalar_select %p34, 0, %s33
    %s36 = sadd.s32 1, %s20
    %s37 = scalar_select %p34, %s36, %s20
    %p38 = scmp.ge.s32.totalorder %s37, 2
    %s39 = scalar_select %p38, 0, %s37
    %s40 = ssub.s32 %s20, %s39
    %s41 = ssub.s32 %s22, %s31
    %s42 = sor.u32 %s40, %s41
    %s43 = ssub.s32 %s21, %s35
    %s44 = sor.u32 %s42, %s43
    %p45 = scmp.eq.s32.totalorder %s44, 0
    %s47 = sadd.s32 %s46, 1
    %s48 = scalar_select %p45, %s46, %s47
    %p51 = pneg %p45
    %p52 = scmp.eq.s32.totalorder %s13, 7
    %p53 = por %p51, %p52
    %p54 = scmp.ne.s32.totalorder %s46, %s49
    %p55 = scmp.eq.s32.totalorder %s13, 0
    %p56 = por %p54, %p55
    %p57 = scmp.ne.s32.totalorder %s46, %s49
    %p58 = scmp.eq.s32.totalorder %s18, 7
    %p59 = por %p57, %p58
    %p60 = scmp.ne.s32.totalorder %s49, %s50
    %p61 = scmp.eq.s32.totalorder %s18, 0
    %p62 = por %p60, %p61
    %p63 = scmp.ne.s32.totalorder %s49, %s50
    %p64 = scmp.eq.s32.totalorder %s19, 7
    %p65 = por %p63, %p64
    %p67 = scmp.ne.s32.totalorder %s50, %s66
    %p68 = scmp.eq.s32.totalorder %s19, 0
    %p69 = por %p67, %p68
    %s70 = ssub.s32 %s20, %s39
    %s71 = ssub.s32 %s22, %s31
    %s72 = sor.u32 %s70, %s71
    %p73 = scmp.eq.s32.totalorder %s72, 0
    %s75 = sadd.s32 %s74, 1
    %s76 = scalar_select %p73, %s74, %s75
    %p79 = pneg %p73
    %p80 = scmp.eq.s32.totalorder %s13, 7
    %p81 = por %p79, %p80
    %p82 = scmp.ne.s32.totalorder %s74, %s77
    %p83 = scmp.eq.s32.totalorder %s13, 0
    %p84 = por %p82, %p83
    %p85 = scmp.ne.s32.totalorder %s74, %s77
    %p86 = scmp.eq.s32.totalorder %s18, 7
    %p87 = por %p85, %p86
    %p88 = scmp.ne.s32.totalorder %s77, %s78
    %p89 = scmp.eq.s32.totalorder %s18, 0
    %p90 = por %p88, %p89
    %p91 = scmp.ne.s32.totalorder %s77, %s78
    %p92 = scmp.eq.s32.totalorder %s19, 7
    %p93 = por %p91, %p92
    %p95 = scmp.ne.s32.totalorder %s78, %s94
    %p96 = scmp.eq.s32.totalorder %s19, 0
    %p97 = por %p95, %p96
    %s98 = ssub.s32 %s20, %s39
    %s99 = ssub.s32 %s22, %s31
    %s100 = sor.u32 %s98, %s99
    %p101 = scmp.eq.s32.totalorder %s100, 0
    %s103 = sadd.s32 %s102, 1
    %s104 = scalar_select %p101, %s102, %s103
    %p107 = pneg %p101
    %p108 = scmp.eq.s32.totalorder %s13, 7
    %p109 = por %p107, %p108
    %p110 = scmp.ne.s32.totalorder %s102, %s105
    %p111 = scmp.eq.s32.totalorder %s13, 0
    %p112 = por %p110, %p111
    %p113 = scmp.ne.s32.totalorder %s102, %s105
    %p114 = scmp.eq.s32.totalorder %s18, 7
    %p115 = por %p113, %p114
    %p116 = scmp.ne.s32.totalorder %s105, %s106
    %p117 = scmp.eq.s32.totalorder %s18, 0
    %p118 = por %p116, %p117
    %p119 = scmp.ne.s32.totalorder %s105, %s106
    %p120 = scmp.eq.s32.totalorder %s19, 7
    %p121 = por %p119, %p120
    %p123 = scmp.ne.s32.totalorder %s106, %s122
    %p124 = scmp.eq.s32.totalorder %s19, 0
    %p125 = por %p123, %p124
    %s126 = ssub.s32 %s20, %s39
    %p127 = scmp.eq.s32.totalorder %s126, 0
    %s129 = sadd.s32 %s128, 1
    %s130 = scalar_select %p127, %s128, %s129
    %p133 = pneg %p127
    %p134 = scmp.eq.s32.totalorder %s13, 7
    %p135 = por %p133, %p134
    %p136 = scmp.ne.s32.totalorder %s128, %s131
    %p137 = scmp.eq.s32.totalorder %s13, 0
    %p138 = por %p136, %p137
    %p139 = scmp.ne.s32.totalorder %s128, %s131
    %p140 = scmp.eq.s32.totalorder %s18, 7
    %p141 = por %p139, %p140
    %p142 = scmp.ne.s32.totalorder %s131, %s132
    %p143 = scmp.eq.s32.totalorder %s18, 0
    %p144 = por %p142, %p143
    %p145 = scmp.ne.s32.totalorder %s131, %s132
    %p146 = scmp.eq.s32.totalorder %s19, 7
    %p147 = por %p145, %p146
    %p149 = scmp.ne.s32.totalorder %s132, %s148
    %p150 = scmp.eq.s32.totalorder %s19, 0
    %p151 = por %p149, %p150
    %s152 = ssub.s32 %s20, %s39
    %s153 = ssub.s32 %s21, %s35
    %s154 = sor.u32 %s152, %s153
    %p155 = scmp.eq.s32.totalorder %s154, 0
    %s157 = sadd.s32 %s156, 1
    %s158 = scalar_select %p155, %s156, %s157
    %p161 = pneg %p155
    %p162 = scmp.eq.s32.totalorder %s13, 7
    %p163 = por %p161, %p162
    %p164 = scmp.ne.s32.totalorder %s156, %s159
    %p165 = scmp.eq.s32.totalorder %s13, 0
    %p166 = por %p164, %p165
    %p167 = scmp.ne.s32.totalorder %s156, %s159
    %p168 = scmp.eq.s32.totalorder %s18, 7
    %p169 = por %p167, %p168
    %p170 = scmp.ne.s32.totalorder %s159, %s160
    %p171 = scmp.eq.s32.totalorder %s18, 0
    %p172 = por %p170, %p171
    %p173 = scmp.ne.s32.totalorder %s159, %s160
    %p174 = scmp.eq.s32.totalorder %s19, 7
    %p175 = por %p173, %p174
    %p177 = scmp.ne.s32.totalorder %s160, %s176
    %p178 = scmp.eq.s32.totalorder %s19, 0
    %p179 = por %p177, %p178
    %s180 = ssub.s32 %s22, %s31
    %p181 = scmp.eq.s32.totalorder %s180, 0
    %s183 = sadd.s32 %s182, 1
    %s184 = scalar_select %p181, %s182, %s183
    %p187 = pneg %p181
    %p188 = scmp.eq.s32.totalorder %s13, 7
    %p189 = por %p187, %p188
    %p190 = scmp.ne.s32.totalorder %s182, %s185
    %p191 = scmp.eq.s32.totalorder %s13, 0
    %p192 = por %p190, %p191
    %p193 = scmp.ne.s32.totalorder %s182, %s185
    %p194 = scmp.eq.s32.totalorder %s18, 7
    %p195 = por %p193, %p194
    %p196 = scmp.ne.s32.totalorder %s185, %s186
    %p197 = scmp.eq.s32.totalorder %s18, 0
    %p198 = por %p196, %p197
    %p199 = scmp.ne.s32.totalorder %s185, %s186
    %p200 = scmp.eq.s32.totalorder %s19, 7
    %p201 = por %p199, %p200
    %p203 = scmp.ne.s32.totalorder %s186, %s202
    %p204 = scmp.eq.s32.totalorder %s19, 0
    %p205 = por %p203, %p204
    %s207 = sadd.s32 %s206, 1
    %p210 = scmp.eq.s32.totalorder %s13, 7
    %p211 = scmp.ne.s32.totalorder %s206, %s208
    %p212 = scmp.eq.s32.totalorder %s13, 0
    %p213 = por %p211, %p212
    %p214 = scmp.ne.s32.totalorder %s206, %s208
    %p215 = scmp.eq.s32.totalorder %s18, 7
    %p216 = por %p214, %p215
    %p217 = scmp.ne.s32.totalorder %s208, %s209
    %p218 = scmp.eq.s32.totalorder %s18, 0
    %p219 = por %p217, %p218
    %p220 = scmp.ne.s32.totalorder %s208, %s209
    %p221 = scmp.eq.s32.totalorder %s19, 7
    %p222 = por %p220, %p221
    %p224 = scmp.ne.s32.totalorder %s209, %s223
    %p225 = scmp.eq.s32.totalorder %s19, 0
    %p226 = por %p224, %p225
    %s227 = ssub.s32 %s20, %s39
    %s228 = ssub.s32 %s21, %s35
    %s229 = sor.u32 %s227, %s228
    %p230 = scmp.eq.s32.totalorder %s229, 0
    %s232 = sadd.s32 %s231, 1
    %s233 = scalar_select %p230, %s231, %s232
    %p236 = pneg %p230
    %p237 = scmp.eq.s32.totalorder %s13, 7
    %p238 = por %p236, %p237
    %p239 = scmp.ne.s32.totalorder %s231, %s234
    %p240 = scmp.eq.s32.totalorder %s13, 0
    %p241 = por %p239, %p240
    %p242 = scmp.ne.s32.totalorder %s231, %s234
    %p243 = scmp.eq.s32.totalorder %s18, 7
    %p244 = por %p242, %p243
    %p245 = scmp.ne.s32.totalorder %s234, %s235
    %p246 = scmp.eq.s32.totalorder %s18, 0
    %p247 = por %p245, %p246
    %p248 = scmp.ne.s32.totalorder %s234, %s235
    %p249 = scmp.eq.s32.totalorder %s19, 7
    %p250 = por %p248, %p249
    %p252 = scmp.ne.s32.totalorder %s235, %s251
    %p253 = scmp.eq.s32.totalorder %s19, 0
    %p254 = por %p252, %p253
    %p255 = scmp.le.s32.totalorder 1, %s13
    %p256 = scmp.lt.s32.totalorder %s13, 9
    %p257 = pnand %p255, %p256
    %p258 = pneg %p257
    // Predicated region
    $region9: #{transformer_decoder_forward.17} parent=5 // pred_check
      _
    $region10: #{transformer_decoder_forward.17} parent=5 // pred_check_branch
      %260 = sbr.rel (%p257) target = $region12
    $region11: #{transformer_decoder_forward.17} parent=5 // pred_region
      %s261 = ssub.s32 %s13, 1
      // Predicated region
      $region13: #{transformer_decoder_forward.17} parent=11 // pred_check
        %p262 = pneg %p219
      $region14: #{transformer_decoder_forward.17} parent=11 // pred_check_branch
        %264 = sbr.rel (%p262) target = $region16
      $region15: #{transformer_decoder_forward.17} parent=11 // pred_region
        _
      $region16: #{transformer_decoder_forward.17} parent=11 // pred_fallthru
        _
    $region12: #{transformer_decoder_forward.17} parent=5 // pred_fallthru
      _
    %p265 = scmp.lt.s32.totalorder %s13, 8
    // Predicated region
    $region17: #{transformer_decoder_forward.17} parent=5 // pred_check
      %p266 = pneg %p265
    $region18: #{transformer_decoder_forward.17} parent=5 // pred_check_branch
      %268 = sbr.rel (%p266) target = $region20
    $region19: #{transformer_decoder_forward.17} parent=5 // pred_region
      // Predicated region
      $region21: #{transformer_decoder_forward.17} parent=19 // pred_check
        %p269 = pneg %p56
      $region22: #{transformer_decoder_forward.17} parent=19 // pred_check_branch
        %271 = sbr.rel (%p269) target = $region24
      $region23: #{transformer_decoder_forward.17} parent=19 // pred_region
        %p272 = scmp.lt.s32.totalorder %s20, 1
        %s273 = scalar_select %p272, %s20, 1
        %p274 = scmp.lt.s32.totalorder %s22, 3
        %s275 = scalar_select %p274, %s22, 3
        %p276 = scmp.lt.s32.totalorder %s21, 0
        %s277 = scalar_select %p276, %s21, 0
        %s278 = sadd.s32 %s277, %s275
        %s279 = smul.addr %s273, 4
        %s280 = sadd.s32 %s278, %s279
        %s281 = smul.addr %s280, 4
        %s282 = scalar_lea.vmem %s0, %s281
      $region24: #{transformer_decoder_forward.17} parent=19 // pred_fallthru
        _
      // Predicated region
      $region25: #{transformer_decoder_forward.17} parent=19 // pred_check
        %p283 = pneg %p84
      $region26: #{transformer_decoder_forward.17} parent=19 // pred_check_branch
        %285 = sbr.rel (%p283) target = $region28
      $region27: #{transformer_decoder_forward.17} parent=19 // pred_region
        %p286 = scmp.lt.s32.totalorder %s20, 1
        %s287 = scalar_select %p286, %s20, 1
        %p288 = scmp.lt.s32.totalorder %s22, 3
        %s289 = scalar_select %p288, %s22, 3
        %s290 = smul.addr %s287, 4
        %s291 = sadd.s32 %s289, %s290
        %s292 = smul.addr %s291, 4
        %s293 = scalar_lea.vmem %s1, %s292
      $region28: #{transformer_decoder_forward.17} parent=19 // pred_fallthru
        _
      // Predicated region
      $region29: #{transformer_decoder_forward.17} parent=19 // pred_check
        %p294 = pneg %p112
      $region30: #{transformer_decoder_forward.17} parent=19 // pred_check_branch
        %296 = sbr.rel (%p294) target = $region32
      $region31: #{transformer_decoder_forward.17} parent=19 // pred_region
        %p297 = scmp.lt.s32.totalorder %s20, 1
        %s298 = scalar_select %p297, %s20, 1
        %p299 = scmp.lt.s32.totalorder %s22, 3
        %s300 = scalar_select %p299, %s22, 3
        %s301 = smul.addr %s298, 4
        %s302 = sadd.s32 %s300, %s301
        %s303 = smul.addr %s302, 4
        %s304 = scalar_lea.vmem %s2, %s303
      $region32: #{transformer_decoder_forward.17} parent=19 // pred_fallthru
        _
      // Predicated region
      $region33: #{transformer_decoder_forward.17} parent=19 // pred_check
        %p305 = pneg %p138
      $region34: #{transformer_decoder_forward.17} parent=19 // pred_check_branch
        %307 = sbr.rel (%p305) target = $region36
      $region35: #{transformer_decoder_forward.17} parent=19 // pred_region
        %p308 = scmp.lt.s32.totalorder %s20, 1
        %s309 = scalar_select %p308, %s20, 1
        %s310 = scalar_lea.vmem %s3, %s309
      $region36: #{transformer_decoder_forward.17} parent=19 // pred_fallthru
        _
      // Predicated region
      $region37: #{transformer_decoder_forward.17} parent=19 // pred_check
        %p311 = pneg %p166
      $region38: #{transformer_decoder_forward.17} parent=19 // pred_check_branch
        %313 = sbr.rel (%p311) target = $region40
      $region39: #{transformer_decoder_forward.17} parent=19 // pred_region
        %p314 = scmp.lt.s32.totalorder %s20, 1
        %s315 = scalar_select %p314, %s20, 1
        %p316 = scmp.lt.s32.totalorder %s21, 0
        %s317 = scalar_select %p316, %s21, 0
        %s318 = sadd.s32 %s317, %s315
        %s319 = smul.addr %s318, 8
        %s320 = scalar_lea.vmem %s4, %s319
      $region40: #{transformer_decoder_forward.17} parent=19 // pred_fallthru
        _
      // Predicated region
      $region41: #{transformer_decoder_forward.17} parent=19 // pred_check
        %p321 = pneg %p192
      $region42: #{transformer_decoder_forward.17} parent=19 // pred_check_branch
        %323 = sbr.rel (%p321) target = $region44
      $region43: #{transformer_decoder_forward.17} parent=19 // pred_region
        %p324 = scmp.lt.s32.totalorder %s22, 3
        %s325 = scalar_select %p324, %s22, 3
        %s326 = smul.addr %s325, 4
        %s327 = scalar_lea.vmem %s5, %s326
      $region44: #{transformer_decoder_forward.17} parent=19 // pred_fallthru
        _
    $region20: #{transformer_decoder_forward.17} parent=5 // pred_fallthru
      _
    %p328 = scmp.le.s32.totalorder 1, %s13
    %p329 = scmp.lt.s32.totalorder %s13, 9
    %p330 = pnand %p328, %p329
    %p331 = pneg %p330
    // Predicated region
    $region45: #{transformer_decoder_forward.17} parent=5 // pred_check
      _
    $region46: #{transformer_decoder_forward.17} parent=5 // pred_check_branch
      %333 = sbr.rel (%p330) target = $region48
    $region47: #{transformer_decoder_forward.17} parent=5 // pred_region
      %s334 = ssub.s32 %s13, 1
      %p335 = scmp.lt.s32.totalorder %s23, 1
      %s336 = scalar_select %p335, %s23, 1
      %p337 = scmp.lt.s32.totalorder %s25, 3
      %s338 = scalar_select %p337, %s25, 3
      %p339 = scmp.lt.s32.totalorder %s24, 0
      %s340 = scalar_select %p339, %s24, 0
      %s341 = sadd.s32 %s340, %s338
      %s342 = smul.addr %s336, 4
      %s343 = sadd.s32 %s341, %s342
      %s344 = smul.addr %s343, 4
      %s345 = scalar_lea.vmem %s0, %s344
      %p346 = pneg %p62
      %p347 = pneg %p59
      %p348 = scmp.lt.s32.totalorder %s23, 1
      %s349 = scalar_select %p348, %s23, 1
      %p350 = scmp.lt.s32.totalorder %s25, 3
      %s351 = scalar_select %p350, %s25, 3
      %s352 = smul.addr %s349, 4
      %s353 = sadd.s32 %s351, %s352
      %s354 = smul.addr %s353, 4
      %s355 = scalar_lea.vmem %s1, %s354
      %p356 = pneg %p90
      %p357 = pneg %p87
      %p358 = scmp.lt.s32.totalorder %s23, 1
      %s359 = scalar_select %p358, %s23, 1
      %p360 = scmp.lt.s32.totalorder %s25, 3
      %s361 = scalar_select %p360, %s25, 3
      %s362 = smul.addr %s359, 4
      %s363 = sadd.s32 %s361, %s362
      %s364 = smul.addr %s363, 4
      %s365 = scalar_lea.vmem %s2, %s364
      %p366 = pneg %p118
      %p367 = pneg %p115
      %p368 = scmp.lt.s32.totalorder %s23, 1
      %s369 = scalar_select %p368, %s23, 1
      %s370 = scalar_lea.vmem %s3, %s369
      %p371 = pneg %p144
      %p372 = pneg %p141
      %p373 = scmp.lt.s32.totalorder %s23, 1
      %s374 = scalar_select %p373, %s23, 1
      %p375 = scmp.lt.s32.totalorder %s24, 0
      %s376 = scalar_select %p375, %s24, 0
      %s377 = sadd.s32 %s376, %s374
      %s378 = smul.addr %s377, 8
      %s379 = scalar_lea.vmem %s4, %s378
      %p380 = pneg %p172
      %p381 = pneg %p169
      %p382 = scmp.lt.s32.totalorder %s25, 3
      %s383 = scalar_select %p382, %s25, 3
      %s384 = smul.addr %s383, 4
      %s385 = scalar_lea.vmem %s5, %s384
      %p386 = pneg %p198
      %p387 = pneg %p195
      %p388 = pneg %p219
      %p389 = pneg %p216
      %p390 = pneg %p247
      %p391 = pneg %p244
      %p392 = scmp.lt.s32.totalorder %s23, 1
      %s393 = scalar_select %p392, %s23, 1
      %p394 = scmp.lt.s32.totalorder %s24, 0
      %s395 = scalar_select %p394, %s24, 0
      %s396 = sadd.s32 %s395, %s393
      %s397 = smul.addr %s396, 8
      %s398 = scalar_lea.vmem %s7, %s397
      %p399 = scmp.lt.s32.totalorder %s23, 1
      %s400 = scalar_select %p399, %s23, 1
      %p401 = scmp.lt.s32.totalorder %s25, 3
      %s402 = scalar_select %p401, %s25, 3
      %p403 = scmp.lt.s32.totalorder %s24, 0
      %s404 = scalar_select %p403, %s24, 0
      %s405 = sadd.s32 %s404, %s402
      %s406 = smul.addr %s400, 4
      %s407 = sadd.s32 %s405, %s406
      %s408 = smul.addr %s407, 4
      %s409 = scalar_lea.vmem %s0, %s408
      %p410 = scmp.lt.s32.totalorder %s23, 1
      %s411 = scalar_select %p410, %s23, 1
      %p412 = scmp.lt.s32.totalorder %s25, 3
      %s413 = scalar_select %p412, %s25, 3
      %s414 = smul.addr %s411, 4
      %s415 = sadd.s32 %s413, %s414
      %s416 = smul.addr %s415, 4
      %s417 = scalar_lea.vmem %s1, %s416
      %p418 = scmp.lt.s32.totalorder %s23, 1
      %s419 = scalar_select %p418, %s23, 1
      %p420 = scmp.lt.s32.totalorder %s25, 3
      %s421 = scalar_select %p420, %s25, 3
      %s422 = smul.addr %s419, 4
      %s423 = sadd.s32 %s421, %s422
      %s424 = smul.addr %s423, 4
      %s425 = scalar_lea.vmem %s2, %s424
      %p426 = scmp.lt.s32.totalorder %s23, 1
      %s427 = scalar_select %p426, %s23, 1
      %s428 = scalar_lea.vmem %s3, %s427
      %p429 = scmp.lt.s32.totalorder %s23, 1
      %s430 = scalar_select %p429, %s23, 1
      %p431 = scmp.lt.s32.totalorder %s24, 0
      %s432 = scalar_select %p431, %s24, 0
      %s433 = sadd.s32 %s432, %s430
      %s434 = smul.addr %s433, 8
      %s435 = scalar_lea.vmem %s4, %s434
      %p436 = scmp.lt.s32.totalorder %s25, 3
      %s437 = scalar_select %p436, %s25, 3
      %s438 = smul.addr %s437, 4
      %s439 = scalar_lea.vmem %s5, %s438
      %p440 = scmp.lt.s32.totalorder %s23, 1
      %s441 = scalar_select %p440, %s23, 1
      %p442 = scmp.lt.s32.totalorder %s24, 0
      %s443 = scalar_select %p442, %s24, 0
      %s444 = sadd.s32 %s443, %s441
      %s445 = smul.addr %s444, 8
      %s446 = scalar_lea.vmem %s7, %s445
      %p448 = scmp.eq.s32.totalorder %s25, 0
      // Predicated region
      $region49: #{transformer_decoder_forward.17} parent=47 // pred_check
        %p449 = pneg %p448
      $region50: #{transformer_decoder_forward.17} parent=47 // pred_check_branch
        %451 = sbr.rel (%p449) target = $region52
      $region51: #{transformer_decoder_forward.17} parent=47 // pred_region
        %v452 = vld [vmem:[%s435] sm:$0xff]
        %v453 = vld [vmem:[%s6] sm:$0x1]
        %v455 = vlaneseq
        %v456 = vshrl.u32 %v455, 7
        %v457 = vsub.s32 0, %v456
        %v458 = vrot.slane %v453, %v457
        %v460 = vadd.f32 %v452, %v458
        %vm461 = vcmask 261120
        %462 = vst.msk [vmem:[%s446] sm:$0xff] %vm461, %v460
      $region52: #{transformer_decoder_forward.17} parent=47 // pred_fallthru
        _
      %v463 = vld [vmem:[%s409] sm:$0xf]
      %v464 = vld [vmem:[%s417] sm:$0xf]
      %v465 = vld [vmem:[%s425] sm:$0xf]
      %vm466 = vcmask 64512
      %v468 = vsel %vm466, %v463, 0
      %v471 = vsel %vm466, %v464, 0
      %473 = vmatprep.subr.bf16.mxu0 0
      %474 = vmatpush1.bf16.xpose.msra.mxu0 %v471
      %475 = vmatprep.subr.bf16.mxu0 0
      %476 = vmatpush1.bf16.xpose.msra.mxu0 0
      %477 = vmatprep.subr.bf16.mxu0 0
      %478 = vmatpush1.bf16.xpose.msra.mxu0 0
      %479 = vmatprep.subr.bf16.mxu0 0
      %480 = vmatpush1.bf16.xpose.msra.mxu0 0
      %481 = vmatprep.subr.bf16.mxu0 0
      %482 = vmatpush1.bf16.xpose.msra.mxu0 0
      %483 = vmatprep.subr.bf16.mxu0 0
      %484 = vmatpush1.bf16.xpose.msra.mxu0 0
      %485 = vmatprep.subr.bf16.mxu0 0
      %486 = vmatpush1.bf16.xpose.msra.mxu0 0
      %487 = vmatprep.subr.bf16.mxu0 0
      %488 = vmatpush1.bf16.xpose.msra.mxu0 0
      %489 = vmatprep.subr.bf16.mxu0 0
      %490 = vmatpush1.bf16.xpose.msra.mxu0 0
      %491 = vmatprep.subr.bf16.mxu0 0
      %492 = vmatpush1.bf16.xpose.msra.mxu0 0
      %493 = vmatprep.subr.bf16.mxu0 0
      %494 = vmatpush1.bf16.xpose.msra.mxu0 0
      %495 = vmatprep.subr.bf16.mxu0 0
      %496 = vmatpush1.bf16.xpose.msra.mxu0 0
      %497 = vmatprep.subr.bf16.mxu0 0
      %498 = vmatpush1.bf16.xpose.msra.mxu0 0
      %499 = vmatprep.subr.bf16.mxu0 0
      %500 = vmatpush1.bf16.xpose.msra.mxu0 0
      %501 = vmatprep.subr.bf16.mxu0 0
      %502 = vmatpush1.bf16.xpose.msra.mxu0 0
      %503 = vmatprep.subr.bf16.mxu0 0
      %504 = vmatpush1.bf16.xpose.msra.mxu0 0
      %505 = vmatprep.mubr.bf16.mxu0 0
      %506 = vmatmul.mubr.bf16.gmra.mrb[0].mxu0 %v468
      %v507 = vpop.f32.mrb[0].mxu0
      %v508 = vadd.f32 0.0, %v507
      %v509 = vpop.f32.mrb[0].mxu0
      %v510 = vpop.f32.mrb[0].mxu0
      %v511 = vpop.f32.mrb[0].mxu0
      %512 = vdwg.mxu0
      %v513 = vmul.f32 %v508, 0.35355338
      %v514 = vld [vmem:[%s428] sm:$0x1]
      %v516 = vlaneseq
      %v517 = vshrl.u32 %v516, 7
      %v518 = vsub.s32 0, %v517
      %v519 = vrot.slane %v514, %v518
      %v521 = vadd.f32 %v513, %v519
      %v522 = vsel %vm466, %v521, -inf
      %523 = vmax.xlane.f32.xlu0 %v522
      %v524 = vpop.xlane.xlu0 %523
      %v525 = vsub.f32 %v521, %v524
      %v526 = vmul.f32 %v525, 1.442695
      %v527 = vpow.pop %v526
      %v528 = vsel %vm466, %v527, 0.0
      %529 = vadd.xlane.f32.xlu0 %v528
      %v530 = vpop.xlane.xlu0 %529
      %v531 = vrcp.pop %v530
      %v532 = vmul.f32 %v527, %v531
      %v533 = vpack.c.bf16 %v532, %v532
      %v535 = vsel %vm466, %v533, 0
      %vm537 = vcmask 1043456
      %v539 = vsel %vm537, %v465, 0
      %541 = vmatprep.subr.bf16.mxu0 0
      %542 = vmatpush1.bf16.msra.mxu0 %v539
      %543 = vmatprep.subr.bf16.mxu0 0
      %544 = vmatpush1.bf16.msra.mxu0 0
      %545 = vmatprep.subr.bf16.mxu0 0
      %546 = vmatpush1.bf16.msra.mxu0 0
      %547 = vmatprep.subr.bf16.mxu0 0
      %548 = vmatpush1.bf16.msra.mxu0 0
      %549 = vmatprep.subr.bf16.mxu0 0
      %550 = vmatpush1.bf16.msra.mxu0 0
      %551 = vmatprep.subr.bf16.mxu0 0
      %552 = vmatpush1.bf16.msra.mxu0 0
      %553 = vmatprep.subr.bf16.mxu0 0
      %554 = vmatpush1.bf16.msra.mxu0 0
      %555 = vmatprep.subr.bf16.mxu0 0
      %556 = vmatpush1.bf16.msra.mxu0 0
      %557 = vmatprep.subr.bf16.mxu0 0
      %558 = vmatpush1.bf16.msra.mxu0 0
      %559 = vmatprep.subr.bf16.mxu0 0
      %560 = vmatpush1.bf16.msra.mxu0 0
      %561 = vmatprep.subr.bf16.mxu0 0
      %562 = vmatpush1.bf16.msra.mxu0 0
      %563 = vmatprep.subr.bf16.mxu0 0
      %564 = vmatpush1.bf16.msra.mxu0 0
      %565 = vmatprep.subr.bf16.mxu0 0
      %566 = vmatpush1.bf16.msra.mxu0 0
      %567 = vmatprep.subr.bf16.mxu0 0
      %568 = vmatpush1.bf16.msra.mxu0 0
      %569 = vmatprep.subr.bf16.mxu0 0
      %570 = vmatpush1.bf16.msra.mxu0 0
      %571 = vmatprep.subr.bf16.mxu0 0
      %572 = vmatpush1.bf16.msra.mxu0 0
      %573 = vmatprep.mubr.bf16.mxu0 0
      %574 = vmatmul.mubr.bf16.gmra.mrb[0].mxu0 %v535
      %v575 = vpop.f32.mrb[0].mxu0
      %v576 = vadd.f32 0.0, %v575
      %v577 = vpop.f32.mrb[0].mxu0
      %v578 = vpop.f32.mrb[0].mxu0
      %v579 = vpop.f32.mrb[0].mxu0
      %580 = vdwg.mxu0
      %v581 = vld [vmem:[%s446] sm:$0xff]
      %v582 = vpack.c.bf16 %v576, %v576
      %v583 = vld [vmem:[%s439] sm:$0xf]
      %v585 = vsel %vm466, %v582, 0
      %v588 = vsel %vm537, %v583, 0
      %590 = vmatprep.subr.bf16.mxu0 0
      %591 = vmatpush1.bf16.msra.mxu0 %v588
      %592 = vmatprep.subr.bf16.mxu0 0
      %593 = vmatpush1.bf16.msra.mxu0 0
      %594 = vmatprep.subr.bf16.mxu0 0
      %595 = vmatpush1.bf16.msra.mxu0 0
      %596 = vmatprep.subr.bf16.mxu0 0
      %597 = vmatpush1.bf16.msra.mxu0 0
      %598 = vmatprep.subr.bf16.mxu0 0
      %599 = vmatpush1.bf16.msra.mxu0 0
      %600 = vmatprep.subr.bf16.mxu0 0
      %601 = vmatpush1.bf16.msra.mxu0 0
      %602 = vmatprep.subr.bf16.mxu0 0
      %603 = vmatpush1.bf16.msra.mxu0 0
      %604 = vmatprep.subr.bf16.mxu0 0
      %605 = vmatpush1.bf16.msra.mxu0 0
      %606 = vmatprep.subr.bf16.mxu0 0
      %607 = vmatpush1.bf16.msra.mxu0 0
      %608 = vmatprep.subr.bf16.mxu0 0
      %609 = vmatpush1.bf16.msra.mxu0 0
      %610 = vmatprep.subr.bf16.mxu0 0
      %611 = vmatpush1.bf16.msra.mxu0 0
      %612 = vmatprep.subr.bf16.mxu0 0
      %613 = vmatpush1.bf16.msra.mxu0 0
      %614 = vmatprep.subr.bf16.mxu0 0
      %615 = vmatpush1.bf16.msra.mxu0 0
      %616 = vmatprep.subr.bf16.mxu0 0
      %617 = vmatpush1.bf16.msra.mxu0 0
      %618 = vmatprep.subr.bf16.mxu0 0
      %619 = vmatpush1.bf16.msra.mxu0 0
      %620 = vmatprep.subr.bf16.mxu0 0
      %621 = vmatpush1.bf16.msra.mxu0 0
      %622 = vmatprep.mubr.bf16.mxu0 0
      %623 = vmatmul.mubr.bf16.gmra.mrb[0].mxu0 %v585
      %v624 = vpop.f32.mrb[0].mxu0
      %v625 = vadd.f32 0.0, %v624
      %v626 = vpop.f32.mrb[0].mxu0
      %v627 = vpop.f32.mrb[0].mxu0
      %v628 = vpop.f32.mrb[0].mxu0
      %629 = vdwg.mxu0
      %v630 = vadd.f32 %v581, %v625
      %vm631 = vcmask 261120
      %632 = vst.msk [vmem:[%s446] sm:$0xff] %vm631, %v630
      %p633 = scmp.lt.s32.totalorder %s23, 1
      %s634 = scalar_select %p633, %s23, 1
      %p635 = scmp.lt.s32.totalorder %s24, 0
      %s636 = scalar_select %p635, %s24, 0
      %s637 = sadd.s32 %s636, %s634
      %s638 = smul.addr %s637, 8
      %s639 = scalar_lea.vmem %s7, %s638
      // Predicated region
      $region53: #{transformer_decoder_forward.17} parent=47 // pred_check
        %p640 = pneg %p244
      $region54: #{transformer_decoder_forward.17} parent=47 // pred_check_branch
        %642 = sbr.rel (%p640) target = $region56
      $region55: #{transformer_decoder_forward.17} parent=47 // pred_region
        _
      $region56: #{transformer_decoder_forward.17} parent=47 // pred_fallthru
        _
    $region48: #{transformer_decoder_forward.17} parent=5 // pred_fallthru
      _
    %p643 = scmp.le.s32.totalorder 2, %s13
    // Predicated region
    $region57: #{transformer_decoder_forward.17} parent=5 // pred_check
      %p644 = pneg %p643
    $region58: #{transformer_decoder_forward.17} parent=5 // pred_check_branch
      %646 = sbr.rel (%p644) target = $region60
    $region59: #{transformer_decoder_forward.17} parent=5 // pred_region
      %s647 = ssub.s32 %s13, 2
      // Predicated region
      $region61: #{transformer_decoder_forward.17} parent=59 // pred_check
        %p648 = pneg %p250
      $region62: #{transformer_decoder_forward.17} parent=59 // pred_check_branch
        %650 = sbr.rel (%p648) target = $region64
      $region63: #{transformer_decoder_forward.17} parent=59 // pred_region
        %p651 = scmp.lt.s32.totalorder %s26, 1
        %s652 = scalar_select %p651, %s26, 1
        %p653 = scmp.lt.s32.totalorder %s27, 0
        %s654 = scalar_select %p653, %s27, 0
        %s655 = sadd.s32 %s654, %s652
        %s656 = smul.addr %s655, 8
        %s657 = scalar_lea.vmem %s7, %s656
      $region64: #{transformer_decoder_forward.17} parent=59 // pred_fallthru
        _
    $region60: #{transformer_decoder_forward.17} parent=5 // pred_fallthru
      _
  $region6: #{transformer_decoder_forward.17} parent=0 // loop_footer
    %s17 = sadd.s32 1, %s13
  $region7: #{transformer_decoder_forward.17} parent=0 // loop_footer_branch
    %12 = sbr.rel target = $region3
  $region8: #{transformer_decoder_forward.17} parent=0 // loop_exit
    _

</llo_original>
